<compile_context>
chip_gen: v7x
topology: tpu7x:2x2x1
jax: 0.10.0
libtpu: 0.0.40
codegen_flags: <defaults>
</compile_context>

<pallas_src>
import numpy as np

import jax
import jax.numpy as jnp
from jax.experimental import pallas as pl
from jax.experimental.pallas import tpu as pltpu


# --------------------------------------------------------------------------
# Fused SOBE block kernel (one grid step == one batch element)
# --------------------------------------------------------------------------
def make_sobe_kernel(H, W, h, w, C1, C2):

    def kernel(scal_ref, f_l_ref, f_h_ref, pre_ref,
               w_up_ref, b_up_ref,
               w_p1_ref, b_p1_ref, w_p2_ref, b_p2_ref,
               w_e1_ref, b_e1_ref, w_e2_ref, b_e2_ref,
               w_fe_ref, w_fp_ref, b_f_ref, w_out_ref,
               urow_ref, ucolc_ref, ucolb_ref,
               refine_ref, outmap_ref,
               pad_up, pad3, pad7):
        # SMEM scalars (read once at the top)
        alpha = scal_ref[0]
        beta = scal_ref[1]
        out_bias = scal_ref[2]

        # Halo slabs are zeroed exactly once (grid axis is sequential,
        # "arbitrary"); the halo is never written afterwards and the interior
        # is fully overwritten before every use.
        @pl.when(pl.program_id(0) == 0)
        def _zero_halos():
            pad_up[...] = jnp.zeros_like(pad_up)
            pad3[...] = jnp.zeros_like(pad3)
            pad7[...] = jnp.zeros_like(pad7)

        def conv_rows(x, pad_ref, w_ref, K, cin, hin, win, b=None, relu=False):
            """KxK 'same' conv on a channel-packed (hin, win*cin) slab.

            One interior store into the padded slab, then K row-shifted
            full-lane reads matmul'd against host-expanded block-Toeplitz
            weights ((win+K-1)*cin, win*cout).  No im2col patch buffer.
            """
            p = K // 2
            pad_ref[p:p + hin, p * cin:(p + win) * cin] = x
            acc = jnp.dot(pad_ref[0:hin, :], w_ref[0],
                          preferred_element_type=jnp.float32)
            for kh in range(1, K):
                acc = acc + jnp.dot(pad_ref[kh:kh + hin, :], w_ref[kh],
                                    preferred_element_type=jnp.float32)
            if b is not None:
                acc = acc + b
            if relu:
                acc = jnp.maximum(acc, 0.0)
            return acc

        f_l = f_l_ref[0]                                      # (H, W*C2) packed fp32

        # ---- up_f: 7x7 conv (+folded eval-mode BN) + ReLU on high-level feature
        t = conv_rows(f_h_ref[0], pad_up, w_up_ref, 7, C1, h, w,
                      b=b_up_ref[...], relu=True)             # (h, w*C2)

        # ---- x2 bilinear upsample (align_corners=True) + crop, as matmuls
        fh_up = jnp.dot(urow_ref[...], t, preferred_element_type=jnp.float32)
        fh_up = jnp.dot(fh_up, ucolc_ref[...],
                        preferred_element_type=jnp.float32)    # (H, W*C2)

        pre_up = jnp.dot(urow_ref[...], pre_ref[0],
                         preferred_element_type=jnp.float32)
        pre_up = jnp.dot(pre_up, ucolb_ref[...],
                         preferred_element_type=jnp.float32)   # (H, W*C2), 1->C2 bcast folded in

        # ---- position branch: pcbr1(f_h_up * f_l); pcbr2(alpha*. + residual)
        f_pos = conv_rows(fh_up * f_l, pad3, w_p1_ref, 3, C2, H, W,
                          b=b_p1_ref[...], relu=True)
        f_pos = conv_rows(alpha * f_pos + f_l, pad3, w_p2_ref, 3, C2, H, W,
                          b=b_p2_ref[...], relu=True)

        # ---- edge branch: ecbr1(pre_up * f_l); ecbr2(beta*. + residual)
        f_edge = conv_rows(pre_up * f_l, pad3, w_e1_ref, 3, C2, H, W,
                           b=b_e1_ref[...], relu=True)
        f_edge = conv_rows(beta * f_edge + f_l, pad3, w_e2_ref, 3, C2, H, W,
                           b=b_e2_ref[...], relu=True)

        # ---- fusion: torch.cat((f_edge, f_pos), 1) folded into split weights
        acc = conv_rows(f_edge, pad3, w_fe_ref, 3, C2, H, W)
        acc = acc + conv_rows(f_pos, pad3, w_fp_ref, 3, C2, H, W)
        f_refine = jnp.maximum(acc + b_f_ref[...], 0.0)
        refine_ref[0] = f_refine                               # full-lane (H, W*C2) store

        # ---- output_map: 7x7 conv C2 -> 1 (same row-matmul formulation)
        om = conv_rows(f_refine, pad7, w_out_ref, 7, C2, H, W)
        outmap_ref[0] = om + out_bias

    return kernel


# --------------------------------------------------------------------------
# pallas_call wrapper (single fused kernel, grid over batch).  NCHW in/out.
# --------------------------------------------------------------------------
def sobe_block_forward(params, f_l, f_h, pre):
    B, C2, H, W = f_l.shape
    _, C1, h, w = f_h.shape
    assert pre.shape == (B, 1, h, w)
    assert 2 * h >= H and 2 * w >= W       # torch crops the x2 upsample to (H, W)

    # NCHW -> channel-packed lane-dense slabs (B, rows, cols*channels)
    f_l_p = jnp.transpose(f_l, (0, 2, 3, 1)).reshape(B, H, W * C2)
    f_h_p = jnp.transpose(f_h, (0, 2, 3, 1)).reshape(B, h, w * C1)
    pre_p = pre.reshape(B, h, w)

    scalars = jnp.concatenate(
        [params["alpha"], params["beta"], params["b_out"]]).astype(jnp.float32)

    kernel = make_sobe_kernel(H, W, h, w, C1, C2)

    def act(shape):
        nrest = len(shape) - 1
        return pl.BlockSpec(shape, lambda b: (b,) + (0,) * nrest)

    def full(a):
        nd = a.ndim
        return pl.BlockSpec(a.shape, lambda b: (0,) * nd)

    weights = (params["w_up"], params["b_up"],
               params["w_p1"], params["b_p1"], params["w_p2"], params["b_p2"],
               params["w_e1"], params["b_e1"], params["w_e2"], params["b_e2"],
               params["w_fe"], params["w_fp"], params["b_f"], params["w_out"],
               params["u_row"], params["u_colc"], params["u_colb"])

    in_specs = ([pl.BlockSpec(memory_space=pltpu.MemorySpace.SMEM),  # [alpha, beta, out_bias]
                 act((1, H, W * C2)),                                # f_l packed
                 act((1, h, w * C1)),                                # f_h packed
                 act((1, h, w))]                                     # pre packed
                + [full(a) for a in weights])
    out_specs = [act((1, H, W * C2)), act((1, H, W))]
    out_shape = (jax.ShapeDtypeStruct((B, H, W * C2), jnp.float32),
                 jax.ShapeDtypeStruct((B, H, W), jnp.float32))

    scratch_shapes = [
        pltpu.VMEM((h + 6, (w + 6) * C1), jnp.float32),   # 7x7 up-conv halo slab
        pltpu.VMEM((H + 2, (W + 2) * C2), jnp.float32),   # shared 3x3 halo slab
        pltpu.VMEM((H + 6, (W + 6) * C2), jnp.float32),   # 7x7 output_map halo slab
    ]

    refine_p, outmap_p = pl.pallas_call(
        kernel,
        out_shape=out_shape,
        grid=(B,),
        in_specs=in_specs,
        out_specs=out_specs,
        scratch_shapes=scratch_shapes,
        compiler_params=pltpu.CompilerParams(
            # "arbitrary": sequential batch axis keeps the once-only halo
            # zeroing valid.  See TODOs at the top for the v7x spatial axis.
            dimension_semantics=("arbitrary",),
            vmem_limit_bytes=32 * 1024 * 1024),
    )(scalars, f_l_p, f_h_p, pre_p, *weights)

    f_refine = jnp.transpose(refine_p.reshape(B, H, W, C2), (0, 3, 1, 2))
    out_map = outmap_p.reshape(B, 1, H, W)
    return f_refine, out_map


# --------------------------------------------------------------------------
# Host-side parameter preparation
# --------------------------------------------------------------------------
def _fold_bn(w, b, gamma, beta, mean, var, eps=1e-5):
    s = (gamma / np.sqrt(var + eps)).astype(np.float32)
    return (w * s[None, None, None, :]).astype(np.float32), \
           ((b - mean) * s + beta).astype(np.float32)


def _expand_conv_rows(w_hwio, n_cols):
    """(K,K,Cin,Cout) conv kernel -> (K, (n_cols+K-1)*Cin, n_cols*Cout) matrices M
    so that, on a channel-packed row layout, out = sum_kh padded[kh:kh+H, :] @ M[kh]."""
    K, _, cin, cout = w_hwio.shape
    M = np.zeros((K, (n_cols + K - 1) * cin, n_cols * cout), np.float32)
    for kh in range(K):
        for kw in range(K):
            blk = w_hwio[kh, kw].astype(np.float32)
            for j in range(n_cols):
                M[kh, (j + kw) * cin:(j + kw + 1) * cin,
                  j * cout:(j + 1) * cout] = blk
    return jnp.asarray(M)


def _up_table(n_in, n_keep):
    # nn.UpsamplingBilinear2d(scale_factor=2): align_corners=True, out = 2*n_in (cropped)
    denom = max(2 * n_in - 1, 1)
    tab = []
    for j in range(n_keep):
        src = j * (n_in - 1) / denom
        i0 = min(int(np.floor(src)), n_in - 1)
        i1 = min(i0 + 1, n_in - 1)
        tab.append((i0, i1, src - i0))
    return tab


def _upsample_mats(h, w, H, W, C2):
    u_row = np.zeros((H, h), np.float32)                 # row interpolation
    for j, (i0, i1, f) in enumerate(_up_table(h, H)):
        u_row[j, i0] += 1.0 - f
        u_row[j, i1] += f
    u_colc = np.zeros((w * C2, W * C2), np.float32)      # column interp, per-channel identity
    u_colb = np.zeros((w, W * C2), np.float32)           # column interp + 1->C2 channel bcast
    for j, (i0, i1, f) in enumerate(_up_table(w, W)):
        for c in range(C2):
            u_colc[i0 * C2 + c, j * C2 + c] += 1.0 - f
            u_colc[i1 * C2 + c, j * C2 + c] += f
            u_colb[i0, j * C2 + c] += 1.0 - f
            u_colb[i1, j * C2 + c] += f
    return jnp.asarray(u_row), jnp.asarray(u_colc), jnp.asarray(u_colb)


def init_params(key, c1, c2, H, W, h, w):
    """Deterministic synthetic init. Eval-mode BatchNorm folded into the convs;
    conv weights expanded to row-matmul form and biases tiled into the packed lane layout."""
    keys = iter(jax.random.split(key, 64))

    def conv_w(K, cin, cout):
        fan_in = K * K * cin
        x = np.asarray(jax.random.normal(next(keys), (K, K, cin, cout), jnp.float32))
        return (x / np.sqrt(fan_in)).astype(np.float32)

    def conv_b(cout):
        return np.asarray(0.01 * jax.random.normal(next(keys), (cout,), jnp.float32)
                          ).astype(np.float32)

    def bn(c):
        gamma = np.asarray(1.0 + 0.1 * jax.random.normal(next(keys), (c,), jnp.float32))
        beta = np.asarray(0.1 * jax.random.normal(next(keys), (c,), jnp.float32))
        return gamma.astype(np.float32), beta.astype(np.float32), \
            np.zeros((c,), np.float32), np.ones((c,), np.float32)

    def cbr(K, cin, cout):   # Conv + eval-mode BN folded
        return _fold_bn(conv_w(K, cin, cout), conv_b(cout), *bn(cout))

    raw = {}
    raw["w_up"], raw["b_up"] = cbr(7, c1, c2)
    raw["w_p1"], raw["b_p1"] = cbr(3, c2, c2)
    raw["w_p2"], raw["b_p2"] = cbr(3, c2, c2)
    raw["w_e1"], raw["b_e1"] = cbr(3, c2, c2)
    raw["w_e2"], raw["b_e2"] = cbr(3, c2, c2)
    raw["w_f"], raw["b_f"] = cbr(3, 2 * c2, c2)
    raw["w_out"] = conv_w(7, c2, 1)
    raw["b_out"] = conv_b(1)
    raw["alpha"] = np.array([1.0], np.float32)
    raw["beta"] = np.array([1.0], np.float32)

    u_row, u_colc, u_colb = _upsample_mats(h, w, H, W, c2)

    def tiled_bias(b, n_cols):
        return jnp.asarray(np.tile(b.astype(np.float32), n_cols)[None, :])

    p = {
        "w_up": _expand_conv_rows(raw["w_up"], w), "b_up": tiled_bias(raw["b_up"], w),
        "w_p1": _expand_conv_rows(raw["w_p1"], W), "b_p1": tiled_bias(raw["b_p1"], W),
        "w_p2": _expand_conv_rows(raw["w_p2"], W), "b_p2": tiled_bias(raw["b_p2"], W),
        "w_e1": _expand_conv_rows(raw["w_e1"], W), "b_e1": tiled_bias(raw["b_e1"], W),
        "w_e2": _expand_conv_rows(raw["w_e2"], W), "b_e2": tiled_bias(raw["b_e2"], W),
        # fusion Conv2d(2*c2 -> c2) split along input channels so the torch.cat
        # never has to be materialized (first half = edge, second half = position)
        "w_fe": _expand_conv_rows(raw["w_f"][:, :, :c2, :], W),
        "w_fp": _expand_conv_rows(raw["w_f"][:, :, c2:, :], W),
        "b_f": tiled_bias(raw["b_f"], W),
        "w_out": _expand_conv_rows(raw["w_out"], W),
        "b_out": jnp.asarray(raw["b_out"]),
        "alpha": jnp.asarray(raw["alpha"]),
        "beta": jnp.asarray(raw["beta"]),
        "u_row": u_row, "u_colc": u_colc, "u_colb": u_colb,
        # raw HWIO weights kept only for the plain-JAX reference check
        "ref": {k: jnp.asarray(v) for k, v in raw.items()},
    }
    return p


# --------------------------------------------------------------------------
# Plain-JAX reference (same folded fp32 weights) for a correctness check
# --------------------------------------------------------------------------
def _conv_ref(x, wgt, b=None):
    K = wgt.shape[0]
    y = jax.lax.conv_general_dilated(
        x, wgt, window_strides=(1, 1),
        padding=((K // 2, K // 2), (K // 2, K // 2)),
        dimension_numbers=("NHWC", "HWIO", "NHWC"),
        precision=jax.lax.Precision.HIGHEST)
    return y if b is None else y + b


def _upsample_ref(x):  # NHWC, x2, align_corners=True
    _, h, w, _ = x.shape

    def coords(n_in, n_out):
        src = jnp.arange(n_out, dtype=jnp.float32) * (n_in - 1) / max(n_out - 1, 1)
        i0 = jnp.clip(jnp.floor(src).astype(jnp.int32), 0, n_in - 1)
        i1 = jnp.clip(i0 + 1, 0, n_in - 1)
        return i0, i1, src - i0.astype(jnp.float32)

    y0, y1, fy = coords(h, 2 * h)
    x0, x1, fx = coords(w, 2 * w)
    xh = x[:, y0] * (1 - fy)[None, :, None, None] + x[:, y1] * fy[None, :, None, None]
    return (xh[:, :, x0] * (1 - fx)[None, None, :, None]
            + xh[:, :, x1] * fx[None, None, :, None])


def sobe_block_reference(params, f_l, f_h, pre):
    r = params["ref"]
    f_l = jnp.transpose(f_l, (0, 2, 3, 1))
    f_h = jnp.transpose(f_h, (0, 2, 3, 1))
    pre = jnp.transpose(pre, (0, 2, 3, 1))
    B, H, W, C2 = f_l.shape
    residual = f_l
    t = jnp.maximum(_conv_ref(f_h, r["w_up"], r["b_up"]), 0.0)
    f_h_up = _upsample_ref(t)[:, :H, :W, :]
    f_pos = jnp.maximum(_conv_ref(f_h_up * f_l, r["w_p1"], r["b_p1"]), 0.0)
    f_pos = jnp.maximum(_conv_ref(r["alpha"][0] * f_pos + residual,
                                  r["w_p2"], r["b_p2"]), 0.0)
    pre_up = _upsample_ref(pre)[:, :H, :W, :]
    f_edge = jnp.maximum(_conv_ref(pre_up * f_l, r["w_e1"], r["b_e1"]), 0.0)
    f_edge = jnp.maximum(_conv_ref(r["beta"][0] * f_edge + residual,
                                   r["w_e2"], r["b_e2"]), 0.0)
    f_refine = jnp.maximum(_conv_ref(jnp.concatenate([f_edge, f_pos], -1),
                                     r["w_f"], r["b_f"]), 0.0)
    out_map = _conv_ref(f_refine, r["w_out"]) + r["b_out"]
    return (jnp.transpose(f_refine, (0, 3, 1, 2)),
            jnp.transpose(out_map, (0, 3, 1, 2)))


# --------------------------------------------------------------------------
if __name__ == "__main__":
    B, C1, C2, H, W = 2, 4, 8, 16, 16
    h, w = H // 2, W // 2
    key = jax.random.PRNGKey(0)
    k1, k2, k3, kp = jax.random.split(key, 4)

    f_l = jax.random.normal(k1, (B, C2, H, W), jnp.float32)   # low-level feature
    f_h = jax.random.normal(k2, (B, C1, h, w), jnp.float32)   # high-level feature
    pre = jax.random.normal(k3, (B, 1, h, w), jnp.float32)    # low-level prediction

    params = init_params(kp, C1, C2, H, W, h, w)

    fwd = jax.jit(sobe_block_forward)
    f_refine, out_map = fwd(params, f_l, f_h, pre)
    jax.block_until_ready((f_refine, out_map))

    assert f_refine.shape == (B, C2, H, W) and f_refine.dtype == jnp.float32
    assert out_map.shape == (B, 1, H, W) and out_map.dtype == jnp.float32
    assert bool(jnp.all(jnp.isfinite(f_refine))) and bool(jnp.all(jnp.isfinite(out_map)))

    # Correctness vs. plain-JAX reference using the same fp32 folded weights.
    ref_refine, ref_map = jax.jit(sobe_block_reference)(params, f_l, f_h, pre)

    def nmax(a, b):
        return float(jnp.max(jnp.abs(a - b)) / (jnp.max(jnp.abs(b)) + 1e-6))

    assert nmax(f_refine, ref_refine) < 5e-2, nmax(f_refine, ref_refine)
    assert nmax(out_map, ref_map) < 5e-2, nmax(out_map, ref_map)

    print("KERNEL_OK")
</pallas_src>

<mosaic_0001>
module attributes {stable_mosaic.version = 11 : i64} {
  func.func @kernel(%arg0: i32, %arg1: memref<3xf32, #tpu.memory_space<smem>>, %arg2: memref<1x16x128xf32, #tpu.memory_space<vmem>>, %arg3: memref<1x8x32xf32, #tpu.memory_space<vmem>>, %arg4: memref<1x8x8xf32, #tpu.memory_space<vmem>>, %arg5: memref<7x56x64xf32, #tpu.memory_space<vmem>>, %arg6: memref<1x64xf32, #tpu.memory_space<vmem>>, %arg7: memref<3x144x128xf32, #tpu.memory_space<vmem>>, %arg8: memref<1x128xf32, #tpu.memory_space<vmem>>, %arg9: memref<3x144x128xf32, #tpu.memory_space<vmem>>, %arg10: memref<1x128xf32, #tpu.memory_space<vmem>>, %arg11: memref<3x144x128xf32, #tpu.memory_space<vmem>>, %arg12: memref<1x128xf32, #tpu.memory_space<vmem>>, %arg13: memref<3x144x128xf32, #tpu.memory_space<vmem>>, %arg14: memref<1x128xf32, #tpu.memory_space<vmem>>, %arg15: memref<3x144x128xf32, #tpu.memory_space<vmem>>, %arg16: memref<3x144x128xf32, #tpu.memory_space<vmem>>, %arg17: memref<1x128xf32, #tpu.memory_space<vmem>>, %arg18: memref<7x176x16xf32, #tpu.memory_space<vmem>>, %arg19: memref<16x8xf32, #tpu.memory_space<vmem>>, %arg20: memref<64x128xf32, #tpu.memory_space<vmem>>, %arg21: memref<8x128xf32, #tpu.memory_space<vmem>>, %arg22: memref<1x16x128xf32, #tpu.memory_space<vmem>>, %arg23: memref<1x16x16xf32, #tpu.memory_space<vmem>>, %arg24: memref<14x56xf32, #tpu.memory_space<vmem>>, %arg25: memref<18x144xf32, #tpu.memory_space<vmem>>, %arg26: memref<22x176xf32, #tpu.memory_space<vmem>>) attributes {dimension_semantics = [#tpu.dimension_semantics<arbitrary>], iteration_bounds = array<i64: 2>, scalar_prefetch = 0 : i64, scratch_operands = 3 : i64, tpu.core_type = #tpu.core_type<tc>, window_params = [{transform_indices = @transform_0, window_bounds = array<i64: 3>}, {transform_indices = @transform_1, window_bounds = array<i64: 1, 16, 128>}, {transform_indices = @transform_2, window_bounds = array<i64: 1, 8, 32>}, {transform_indices = @transform_3, window_bounds = array<i64: 1, 8, 8>}, {pipeline_mode = #tpu.pipeline_mode<synchronous>, transform_indices = @transform_4, window_bounds = array<i64: 7, 56, 64>}, {pipeline_mode = #tpu.pipeline_mode<synchronous>, transform_indices = @transform_5, window_bounds = array<i64: 1, 64>}, {pipeline_mode = #tpu.pipeline_mode<synchronous>, transform_indices = @transform_6, window_bounds = array<i64: 3, 144, 128>}, {pipeline_mode = #tpu.pipeline_mode<synchronous>, transform_indices = @transform_7, window_bounds = array<i64: 1, 128>}, {pipeline_mode = #tpu.pipeline_mode<synchronous>, transform_indices = @transform_8, window_bounds = array<i64: 3, 144, 128>}, {pipeline_mode = #tpu.pipeline_mode<synchronous>, transform_indices = @transform_9, window_bounds = array<i64: 1, 128>}, {pipeline_mode = #tpu.pipeline_mode<synchronous>, transform_indices = @transform_10, window_bounds = array<i64: 3, 144, 128>}, {pipeline_mode = #tpu.pipeline_mode<synchronous>, transform_indices = @transform_11, window_bounds = array<i64: 1, 128>}, {pipeline_mode = #tpu.pipeline_mode<synchronous>, transform_indices = @transform_12, window_bounds = array<i64: 3, 144, 128>}, {pipeline_mode = #tpu.pipeline_mode<synchronous>, transform_indices = @transform_13, window_bounds = array<i64: 1, 128>}, {pipeline_mode = #tpu.pipeline_mode<synchronous>, transform_indices = @transform_14, window_bounds = array<i64: 3, 144, 128>}, {pipeline_mode = #tpu.pipeline_mode<synchronous>, transform_indices = @transform_15, window_bounds = array<i64: 3, 144, 128>}, {pipeline_mode = #tpu.pipeline_mode<synchronous>, transform_indices = @transform_16, window_bounds = array<i64: 1, 128>}, {pipeline_mode = #tpu.pipeline_mode<synchronous>, transform_indices = @transform_17, window_bounds = array<i64: 7, 176, 16>}, {pipeline_mode = #tpu.pipeline_mode<synchronous>, transform_indices = @transform_18, window_bounds = array<i64: 16, 8>}, {pipeline_mode = #tpu.pipeline_mode<synchronous>, transform_indices = @transform_19, window_bounds = array<i64: 64, 128>}, {pipeline_mode = #tpu.pipeline_mode<synchronous>, transform_indices = @transform_20, window_bounds = array<i64: 8, 128>}, {transform_indices = @transform_21, window_bounds = array<i64: 1, 16, 128>}, {transform_indices = @transform_22, window_bounds = array<i64: 1, 16, 16>}]} {
    %c0 = arith.constant 0 : index
    %0 = memref.load %arg1[%c0] : memref<3xf32, #tpu.memory_space<smem>>
    %c1 = arith.constant 1 : index
    %1 = memref.load %arg1[%c1] : memref<3xf32, #tpu.memory_space<smem>>
    %c2 = arith.constant 2 : index
    %2 = memref.load %arg1[%c2] : memref<3xf32, #tpu.memory_space<smem>>
    %c0_i32 = arith.constant 0 : i32
    %3 = arith.cmpi eq, %arg0, %c0_i32 : i32
    %4 = arith.extui %3 : i1 to i32
    %c0_i32_0 = arith.constant 0 : i32
    %5 = arith.cmpi ne, %4, %c0_i32_0 : i32
    scf.if %5 {
      %cst_246 = arith.constant 0.000000e+00 : f32
      %227 = vector.broadcast %cst_246 : f32 to vector<14x56xf32>
      %c0_247 = arith.constant 0 : index
      %c0_248 = arith.constant 0 : index
      %228 = vector.load %arg24[%c0_247, %c0_248] : memref<14x56xf32, #tpu.memory_space<vmem>>, vector<14x56xf32>
      tpu.vector_store %arg24[%c0_247, %c0_248], %227 {strides = array<i32>} : memref<14x56xf32, #tpu.memory_space<vmem>>, vector<14x56xf32>,
      %cst_249 = arith.constant 0.000000e+00 : f32
      %229 = vector.broadcast %cst_249 : f32 to vector<18x144xf32>
      %c0_250 = arith.constant 0 : index
      %c0_251 = arith.constant 0 : index
      %230 = vector.load %arg25[%c0_250, %c0_251] : memref<18x144xf32, #tpu.memory_space<vmem>>, vector<18x144xf32>
      tpu.vector_store %arg25[%c0_250, %c0_251], %229 {strides = array<i32>} : memref<18x144xf32, #tpu.memory_space<vmem>>, vector<18x144xf32>,
      %cst_252 = arith.constant 0.000000e+00 : f32
      %231 = vector.broadcast %cst_252 : f32 to vector<22x176xf32>
      %c0_253 = arith.constant 0 : index
      %c0_254 = arith.constant 0 : index
      %232 = vector.load %arg26[%c0_253, %c0_254] : memref<22x176xf32, #tpu.memory_space<vmem>>, vector<22x176xf32>
      tpu.vector_store %arg26[%c0_253, %c0_254], %231 {strides = array<i32>} : memref<22x176xf32, #tpu.memory_space<vmem>>, vector<22x176xf32>,
    } else {
    }
    %c0_1 = arith.constant 0 : index
    %c0_2 = arith.constant 0 : index
    %c0_3 = arith.constant 0 : index
    %6 = vector.load %arg2[%c0_1, %c0_2, %c0_3] : memref<1x16x128xf32, #tpu.memory_space<vmem>>, vector<1x16x128xf32>
    %7 = vector.shape_cast %6 : vector<1x16x128xf32> to vector<16x128xf32>
    %c0_4 = arith.constant 0 : index
    %c0_5 = arith.constant 0 : index
    %c0_6 = arith.constant 0 : index
    %8 = vector.load %arg3[%c0_4, %c0_5, %c0_6] : memref<1x8x32xf32, #tpu.memory_space<vmem>>, vector<1x8x32xf32>
    %9 = vector.shape_cast %8 : vector<1x8x32xf32> to vector<8x32xf32>
    %c0_7 = arith.constant 0 : index
    %c0_8 = arith.constant 0 : index
    %10 = vector.load %arg6[%c0_7, %c0_8] : memref<1x64xf32, #tpu.memory_space<vmem>>, vector<1x64xf32>
    %c3 = arith.constant 3 : index
    %c12 = arith.constant 12 : index
    %11 = vector.load %arg24[%c3, %c12] : memref<14x56xf32, #tpu.memory_space<vmem>>, vector<8x32xf32>
    tpu.vector_store %arg24[%c3, %c12], %9 {strides = array<i32>} : memref<14x56xf32, #tpu.memory_space<vmem>>, vector<8x32xf32>,
    %c0_9 = arith.constant 0 : index
    %c0_10 = arith.constant 0 : index
    %12 = vector.load %arg24[%c0_9, %c0_10] : memref<14x56xf32, #tpu.memory_space<vmem>>, vector<8x56xf32>
    %c0_11 = arith.constant 0 : index
    %c0_12 = arith.constant 0 : index
    %c0_13 = arith.constant 0 : index
    %13 = vector.load %arg5[%c0_11, %c0_12, %c0_13] : memref<7x56x64xf32, #tpu.memory_space<vmem>>, vector<1x56x64xf32>
    %14 = vector.shape_cast %13 : vector<1x56x64xf32> to vector<56x64xf32>
    %cst = arith.constant dense<0.000000e+00> : vector<8x64xf32>
    %15 = tpu.matmul %12, %14, %cst {dimension_numbers = #tpu.dot_dimension_numbers<[1], [0], [0], [1], [0, 0, 1, 1], [], []>} : vector<8x56xf32>, vector<56x64xf32>, vector<8x64xf32> -> vector<8x64xf32>
    %c1_14 = arith.constant 1 : index
    %c0_15 = arith.constant 0 : index
    %16 = vector.load %arg24[%c1_14, %c0_15] : memref<14x56xf32, #tpu.memory_space<vmem>>, vector<8x56xf32>
    %c1_16 = arith.constant 1 : index
    %c0_17 = arith.constant 0 : index
    %c0_18 = arith.constant 0 : index
    %17 = vector.load %arg5[%c1_16, %c0_17, %c0_18] : memref<7x56x64xf32, #tpu.memory_space<vmem>>, vector<1x56x64xf32>
    %18 = vector.shape_cast %17 : vector<1x56x64xf32> to vector<56x64xf32>
    %cst_19 = arith.constant dense<0.000000e+00> : vector<8x64xf32>
    %19 = tpu.matmul %16, %18, %cst_19 {dimension_numbers = #tpu.dot_dimension_numbers<[1], [0], [0], [1], [0, 0, 1, 1], [], []>} : vector<8x56xf32>, vector<56x64xf32>, vector<8x64xf32> -> vector<8x64xf32>
    %20 = arith.addf %15, %19 : vector<8x64xf32>
    %c2_20 = arith.constant 2 : index
    %c0_21 = arith.constant 0 : index
    %21 = vector.load %arg24[%c2_20, %c0_21] : memref<14x56xf32, #tpu.memory_space<vmem>>, vector<8x56xf32>
    %c2_22 = arith.constant 2 : index
    %c0_23 = arith.constant 0 : index
    %c0_24 = arith.constant 0 : index
    %22 = vector.load %arg5[%c2_22, %c0_23, %c0_24] : memref<7x56x64xf32, #tpu.memory_space<vmem>>, vector<1x56x64xf32>
    %23 = vector.shape_cast %22 : vector<1x56x64xf32> to vector<56x64xf32>
    %cst_25 = arith.constant dense<0.000000e+00> : vector<8x64xf32>
    %24 = tpu.matmul %21, %23, %cst_25 {dimension_numbers = #tpu.dot_dimension_numbers<[1], [0], [0], [1], [0, 0, 1, 1], [], []>} : vector<8x56xf32>, vector<56x64xf32>, vector<8x64xf32> -> vector<8x64xf32>
    %25 = arith.addf %20, %24 : vector<8x64xf32>
    %c3_26 = arith.constant 3 : index
    %c0_27 = arith.constant 0 : index
    %26 = vector.load %arg24[%c3_26, %c0_27] : memref<14x56xf32, #tpu.memory_space<vmem>>, vector<8x56xf32>
    %c3_28 = arith.constant 3 : index
    %c0_29 = arith.constant 0 : index
    %c0_30 = arith.constant 0 : index
    %27 = vector.load %arg5[%c3_28, %c0_29, %c0_30] : memref<7x56x64xf32, #tpu.memory_space<vmem>>, vector<1x56x64xf32>
    %28 = vector.shape_cast %27 : vector<1x56x64xf32> to vector<56x64xf32>
    %cst_31 = arith.constant dense<0.000000e+00> : vector<8x64xf32>
    %29 = tpu.matmul %26, %28, %cst_31 {dimension_numbers = #tpu.dot_dimension_numbers<[1], [0], [0], [1], [0, 0, 1, 1], [], []>} : vector<8x56xf32>, vector<56x64xf32>, vector<8x64xf32> -> vector<8x64xf32>
    %30 = arith.addf %25, %29 : vector<8x64xf32>
    %c4 = arith.constant 4 : index
    %c0_32 = arith.constant 0 : index
    %31 = vector.load %arg24[%c4, %c0_32] : memref<14x56xf32, #tpu.memory_space<vmem>>, vector<8x56xf32>
    %c4_33 = arith.constant 4 : index
    %c0_34 = arith.constant 0 : index
    %c0_35 = arith.constant 0 : index
    %32 = vector.load %arg5[%c4_33, %c0_34, %c0_35] : memref<7x56x64xf32, #tpu.memory_space<vmem>>, vector<1x56x64xf32>
    %33 = vector.shape_cast %32 : vector<1x56x64xf32> to vector<56x64xf32>
    %cst_36 = arith.constant dense<0.000000e+00> : vector<8x64xf32>
    %34 = tpu.matmul %31, %33, %cst_36 {dimension_numbers = #tpu.dot_dimension_numbers<[1], [0], [0], [1], [0, 0, 1, 1], [], []>} : vector<8x56xf32>, vector<56x64xf32>, vector<8x64xf32> -> vector<8x64xf32>
    %35 = arith.addf %30, %34 : vector<8x64xf32>
    %c5 = arith.constant 5 : index
    %c0_37 = arith.constant 0 : index
    %36 = vector.load %arg24[%c5, %c0_37] : memref<14x56xf32, #tpu.memory_space<vmem>>, vector<8x56xf32>
    %c5_38 = arith.constant 5 : index
    %c0_39 = arith.constant 0 : index
    %c0_40 = arith.constant 0 : index
    %37 = vector.load %arg5[%c5_38, %c0_39, %c0_40] : memref<7x56x64xf32, #tpu.memory_space<vmem>>, vector<1x56x64xf32>
    %38 = vector.shape_cast %37 : vector<1x56x64xf32> to vector<56x64xf32>
    %cst_41 = arith.constant dense<0.000000e+00> : vector<8x64xf32>
    %39 = tpu.matmul %36, %38, %cst_41 {dimension_numbers = #tpu.dot_dimension_numbers<[1], [0], [0], [1], [0, 0, 1, 1], [], []>} : vector<8x56xf32>, vector<56x64xf32>, vector<8x64xf32> -> vector<8x64xf32>
    %40 = arith.addf %35, %39 : vector<8x64xf32>
    %c6 = arith.constant 6 : index
    %c0_42 = arith.constant 0 : index
    %41 = vector.load %arg24[%c6, %c0_42] : memref<14x56xf32, #tpu.memory_space<vmem>>, vector<8x56xf32>
    %c6_43 = arith.constant 6 : index
    %c0_44 = arith.constant 0 : index
    %c0_45 = arith.constant 0 : index
    %42 = vector.load %arg5[%c6_43, %c0_44, %c0_45] : memref<7x56x64xf32, #tpu.memory_space<vmem>>, vector<1x56x64xf32>
    %43 = vector.shape_cast %42 : vector<1x56x64xf32> to vector<56x64xf32>
    %cst_46 = arith.constant dense<0.000000e+00> : vector<8x64xf32>
    %44 = tpu.matmul %41, %43, %cst_46 {dimension_numbers = #tpu.dot_dimension_numbers<[1], [0], [0], [1], [0, 0, 1, 1], [], []>} : vector<8x56xf32>, vector<56x64xf32>, vector<8x64xf32> -> vector<8x64xf32>
    %45 = arith.addf %40, %44 : vector<8x64xf32>
    %46 = vector.broadcast %10 : vector<1x64xf32> to vector<8x64xf32>
    %47 = arith.addf %45, %46 : vector<8x64xf32>
    %cst_47 = arith.constant 0.000000e+00 : f32
    %48 = vector.broadcast %cst_47 : f32 to vector<8x64xf32>
    %49 = arith.maximumf %47, %48 : vector<8x64xf32>
    %c0_48 = arith.constant 0 : index
    %c0_49 = arith.constant 0 : index
    %50 = vector.load %arg19[%c0_48, %c0_49] : memref<16x8xf32, #tpu.memory_space<vmem>>, vector<16x8xf32>
    %cst_50 = arith.constant dense<0.000000e+00> : vector<16x64xf32>
    %51 = tpu.matmul %50, %49, %cst_50 {dimension_numbers = #tpu.dot_dimension_numbers<[1], [0], [0], [1], [0, 0, 1, 1], [], []>} : vector<16x8xf32>, vector<8x64xf32>, vector<16x64xf32> -> vector<16x64xf32>
    %c0_51 = arith.constant 0 : index
    %c0_52 = arith.constant 0 : index
    %52 = vector.load %arg20[%c0_51, %c0_52] : memref<64x128xf32, #tpu.memory_space<vmem>>, vector<64x128xf32>
    %cst_53 = arith.constant dense<0.000000e+00> : vector<16x128xf32>
    %53 = tpu.matmul %51, %52, %cst_53 {dimension_numbers = #tpu.dot_dimension_numbers<[1], [0], [0], [1], [0, 0, 1, 1], [], []>} : vector<16x64xf32>, vector<64x128xf32>, vector<16x128xf32> -> vector<16x128xf32>
    %c0_54 = arith.constant 0 : index
    %c0_55 = arith.constant 0 : index
    %54 = vector.load %arg19[%c0_54, %c0_55] : memref<16x8xf32, #tpu.memory_space<vmem>>, vector<16x8xf32>
    %c0_56 = arith.constant 0 : index
    %c0_57 = arith.constant 0 : index
    %c0_58 = arith.constant 0 : index
    %55 = vector.load %arg4[%c0_56, %c0_57, %c0_58] : memref<1x8x8xf32, #tpu.memory_space<vmem>>, vector<1x8x8xf32>
    %56 = vector.shape_cast %55 : vector<1x8x8xf32> to vector<8x8xf32>
    %cst_59 = arith.constant dense<0.000000e+00> : vector<16x8xf32>
    %57 = tpu.matmul %54, %56, %cst_59 {dimension_numbers = #tpu.dot_dimension_numbers<[1], [0], [0], [1], [0, 0, 1, 1], [], []>} : vector<16x8xf32>, vector<8x8xf32>, vector<16x8xf32> -> vector<16x8xf32>
    %c0_60 = arith.constant 0 : index
    %c0_61 = arith.constant 0 : index
    %58 = vector.load %arg21[%c0_60, %c0_61] : memref<8x128xf32, #tpu.memory_space<vmem>>, vector<8x128xf32>
    %cst_62 = arith.constant dense<0.000000e+00> : vector<16x128xf32>
    %59 = tpu.matmul %57, %58, %cst_62 {dimension_numbers = #tpu.dot_dimension_numbers<[1], [0], [0], [1], [0, 0, 1, 1], [], []>} : vector<16x8xf32>, vector<8x128xf32>, vector<16x128xf32> -> vector<16x128xf32>
    %60 = arith.mulf %53, %7 : vector<16x128xf32>
    %c0_63 = arith.constant 0 : index
    %c0_64 = arith.constant 0 : index
    %61 = vector.load %arg8[%c0_63, %c0_64] : memref<1x128xf32, #tpu.memory_space<vmem>>, vector<1x128xf32>
    %c1_65 = arith.constant 1 : index
    %c8 = arith.constant 8 : index
    %62 = vector.load %arg25[%c1_65, %c8] : memref<18x144xf32, #tpu.memory_space<vmem>>, vector<16x128xf32>
    tpu.vector_store %arg25[%c1_65, %c8], %60 {strides = array<i32>} : memref<18x144xf32, #tpu.memory_space<vmem>>, vector<16x128xf32>,
    %c0_66 = arith.constant 0 : index
    %c0_67 = arith.constant 0 : index
    %63 = vector.load %arg25[%c0_66, %c0_67] : memref<18x144xf32, #tpu.memory_space<vmem>>, vector<16x144xf32>
    %c0_68 = arith.constant 0 : index
    %c0_69 = arith.constant 0 : index
    %c0_70 = arith.constant 0 : index
    %64 = vector.load %arg7[%c0_68, %c0_69, %c0_70] : memref<3x144x128xf32, #tpu.memory_space<vmem>>, vector<1x144x128xf32>
    %65 = vector.shape_cast %64 : vector<1x144x128xf32> to vector<144x128xf32>
    %cst_71 = arith.constant dense<0.000000e+00> : vector<16x128xf32>
    %66 = tpu.matmul %63, %65, %cst_71 {dimension_numbers = #tpu.dot_dimension_numbers<[1], [0], [0], [1], [0, 0, 1, 1], [], []>} : vector<16x144xf32>, vector<144x128xf32>, vector<16x128xf32> -> vector<16x128xf32>
    %c1_72 = arith.constant 1 : index
    %c0_73 = arith.constant 0 : index
    %67 = vector.load %arg25[%c1_72, %c0_73] : memref<18x144xf32, #tpu.memory_space<vmem>>, vector<16x144xf32>
    %c1_74 = arith.constant 1 : index
    %c0_75 = arith.constant 0 : index
    %c0_76 = arith.constant 0 : index
    %68 = vector.load %arg7[%c1_74, %c0_75, %c0_76] : memref<3x144x128xf32, #tpu.memory_space<vmem>>, vector<1x144x128xf32>
    %69 = vector.shape_cast %68 : vector<1x144x128xf32> to vector<144x128xf32>
    %cst_77 = arith.constant dense<0.000000e+00> : vector<16x128xf32>
    %70 = tpu.matmul %67, %69, %cst_77 {dimension_numbers = #tpu.dot_dimension_numbers<[1], [0], [0], [1], [0, 0, 1, 1], [], []>} : vector<16x144xf32>, vector<144x128xf32>, vector<16x128xf32> -> vector<16x128xf32>
    %71 = arith.addf %66, %70 : vector<16x128xf32>
    %c2_78 = arith.constant 2 : index
    %c0_79 = arith.constant 0 : index
    %72 = vector.load %arg25[%c2_78, %c0_79] : memref<18x144xf32, #tpu.memory_space<vmem>>, vector<16x144xf32>
    %c2_80 = arith.constant 2 : index
    %c0_81 = arith.constant 0 : index
    %c0_82 = arith.constant 0 : index
    %73 = vector.load %arg7[%c2_80, %c0_81, %c0_82] : memref<3x144x128xf32, #tpu.memory_space<vmem>>, vector<1x144x128xf32>
    %74 = vector.shape_cast %73 : vector<1x144x128xf32> to vector<144x128xf32>
    %cst_83 = arith.constant dense<0.000000e+00> : vector<16x128xf32>
    %75 = tpu.matmul %72, %74, %cst_83 {dimension_numbers = #tpu.dot_dimension_numbers<[1], [0], [0], [1], [0, 0, 1, 1], [], []>} : vector<16x144xf32>, vector<144x128xf32>, vector<16x128xf32> -> vector<16x128xf32>
    %76 = arith.addf %71, %75 : vector<16x128xf32>
    %77 = vector.broadcast %61 : vector<1x128xf32> to vector<16x128xf32>
    %78 = arith.addf %76, %77 : vector<16x128xf32>
    %cst_84 = arith.constant 0.000000e+00 : f32
    %79 = vector.broadcast %cst_84 : f32 to vector<16x128xf32>
    %80 = arith.maximumf %78, %79 : vector<16x128xf32>
    %81 = vector.broadcast %0 : f32 to vector<16x128xf32>
    %82 = arith.mulf %81, %80 : vector<16x128xf32>
    %83 = arith.addf %82, %7 : vector<16x128xf32>
    %c0_85 = arith.constant 0 : index
    %c0_86 = arith.constant 0 : index
    %84 = vector.load %arg10[%c0_85, %c0_86] : memref<1x128xf32, #tpu.memory_space<vmem>>, vector<1x128xf32>
    %c1_87 = arith.constant 1 : index
    %c8_88 = arith.constant 8 : index
    %85 = vector.load %arg25[%c1_87, %c8_88] : memref<18x144xf32, #tpu.memory_space<vmem>>, vector<16x128xf32>
    tpu.vector_store %arg25[%c1_87, %c8_88], %83 {strides = array<i32>} : memref<18x144xf32, #tpu.memory_space<vmem>>, vector<16x128xf32>,
    %c0_89 = arith.constant 0 : index
    %c0_90 = arith.constant 0 : index
    %86 = vector.load %arg25[%c0_89, %c0_90] : memref<18x144xf32, #tpu.memory_space<vmem>>, vector<16x144xf32>
    %c0_91 = arith.constant 0 : index
    %c0_92 = arith.constant 0 : index
    %c0_93 = arith.constant 0 : index
    %87 = vector.load %arg9[%c0_91, %c0_92, %c0_93] : memref<3x144x128xf32, #tpu.memory_space<vmem>>, vector<1x144x128xf32>
    %88 = vector.shape_cast %87 : vector<1x144x128xf32> to vector<144x128xf32>
    %cst_94 = arith.constant dense<0.000000e+00> : vector<16x128xf32>
    %89 = tpu.matmul %86, %88, %cst_94 {dimension_numbers = #tpu.dot_dimension_numbers<[1], [0], [0], [1], [0, 0, 1, 1], [], []>} : vector<16x144xf32>, vector<144x128xf32>, vector<16x128xf32> -> vector<16x128xf32>
    %c1_95 = arith.constant 1 : index
    %c0_96 = arith.constant 0 : index
    %90 = vector.load %arg25[%c1_95, %c0_96] : memref<18x144xf32, #tpu.memory_space<vmem>>, vector<16x144xf32>
    %c1_97 = arith.constant 1 : index
    %c0_98 = arith.constant 0 : index
    %c0_99 = arith.constant 0 : index
    %91 = vector.load %arg9[%c1_97, %c0_98, %c0_99] : memref<3x144x128xf32, #tpu.memory_space<vmem>>, vector<1x144x128xf32>
    %92 = vector.shape_cast %91 : vector<1x144x128xf32> to vector<144x128xf32>
    %cst_100 = arith.constant dense<0.000000e+00> : vector<16x128xf32>
    %93 = tpu.matmul %90, %92, %cst_100 {dimension_numbers = #tpu.dot_dimension_numbers<[1], [0], [0], [1], [0, 0, 1, 1], [], []>} : vector<16x144xf32>, vector<144x128xf32>, vector<16x128xf32> -> vector<16x128xf32>
    %94 = arith.addf %89, %93 : vector<16x128xf32>
    %c2_101 = arith.constant 2 : index
    %c0_102 = arith.constant 0 : index
    %95 = vector.load %arg25[%c2_101, %c0_102] : memref<18x144xf32, #tpu.memory_space<vmem>>, vector<16x144xf32>
    %c2_103 = arith.constant 2 : index
    %c0_104 = arith.constant 0 : index
    %c0_105 = arith.constant 0 : index
    %96 = vector.load %arg9[%c2_103, %c0_104, %c0_105] : memref<3x144x128xf32, #tpu.memory_space<vmem>>, vector<1x144x128xf32>
    %97 = vector.shape_cast %96 : vector<1x144x128xf32> to vector<144x128xf32>
    %cst_106 = arith.constant dense<0.000000e+00> : vector<16x128xf32>
    %98 = tpu.matmul %95, %97, %cst_106 {dimension_numbers = #tpu.dot_dimension_numbers<[1], [0], [0], [1], [0, 0, 1, 1], [], []>} : vector<16x144xf32>, vector<144x128xf32>, vector<16x128xf32> -> vector<16x128xf32>
    %99 = arith.addf %94, %98 : vector<16x128xf32>
    %100 = vector.broadcast %84 : vector<1x128xf32> to vector<16x128xf32>
    %101 = arith.addf %99, %100 : vector<16x128xf32>
    %cst_107 = arith.constant 0.000000e+00 : f32
    %102 = vector.broadcast %cst_107 : f32 to vector<16x128xf32>
    %103 = arith.maximumf %101, %102 : vector<16x128xf32>
    %104 = arith.mulf %59, %7 : vector<16x128xf32>
    %c0_108 = arith.constant 0 : index
    %c0_109 = arith.constant 0 : index
    %105 = vector.load %arg12[%c0_108, %c0_109] : memref<1x128xf32, #tpu.memory_space<vmem>>, vector<1x128xf32>
    %c1_110 = arith.constant 1 : index
    %c8_111 = arith.constant 8 : index
    %106 = vector.load %arg25[%c1_110, %c8_111] : memref<18x144xf32, #tpu.memory_space<vmem>>, vector<16x128xf32>
    tpu.vector_store %arg25[%c1_110, %c8_111], %104 {strides = array<i32>} : memref<18x144xf32, #tpu.memory_space<vmem>>, vector<16x128xf32>,
    %c0_112 = arith.constant 0 : index
    %c0_113 = arith.constant 0 : index
    %107 = vector.load %arg25[%c0_112, %c0_113] : memref<18x144xf32, #tpu.memory_space<vmem>>, vector<16x144xf32>
    %c0_114 = arith.constant 0 : index
    %c0_115 = arith.constant 0 : index
    %c0_116 = arith.constant 0 : index
    %108 = vector.load %arg11[%c0_114, %c0_115, %c0_116] : memref<3x144x128xf32, #tpu.memory_space<vmem>>, vector<1x144x128xf32>
    %109 = vector.shape_cast %108 : vector<1x144x128xf32> to vector<144x128xf32>
    %cst_117 = arith.constant dense<0.000000e+00> : vector<16x128xf32>
    %110 = tpu.matmul %107, %109, %cst_117 {dimension_numbers = #tpu.dot_dimension_numbers<[1], [0], [0], [1], [0, 0, 1, 1], [], []>} : vector<16x144xf32>, vector<144x128xf32>, vector<16x128xf32> -> vector<16x128xf32>
    %c1_118 = arith.constant 1 : index
    %c0_119 = arith.constant 0 : index
    %111 = vector.load %arg25[%c1_118, %c0_119] : memref<18x144xf32, #tpu.memory_space<vmem>>, vector<16x144xf32>
    %c1_120 = arith.constant 1 : index
    %c0_121 = arith.constant 0 : index
    %c0_122 = arith.constant 0 : index
    %112 = vector.load %arg11[%c1_120, %c0_121, %c0_122] : memref<3x144x128xf32, #tpu.memory_space<vmem>>, vector<1x144x128xf32>
    %113 = vector.shape_cast %112 : vector<1x144x128xf32> to vector<144x128xf32>
    %cst_123 = arith.constant dense<0.000000e+00> : vector<16x128xf32>
    %114 = tpu.matmul %111, %113, %cst_123 {dimension_numbers = #tpu.dot_dimension_numbers<[1], [0], [0], [1], [0, 0, 1, 1], [], []>} : vector<16x144xf32>, vector<144x128xf32>, vector<16x128xf32> -> vector<16x128xf32>
    %115 = arith.addf %110, %114 : vector<16x128xf32>
    %c2_124 = arith.constant 2 : index
    %c0_125 = arith.constant 0 : index
    %116 = vector.load %arg25[%c2_124, %c0_125] : memref<18x144xf32, #tpu.memory_space<vmem>>, vector<16x144xf32>
    %c2_126 = arith.constant 2 : index
    %c0_127 = arith.constant 0 : index
    %c0_128 = arith.constant 0 : index
    %117 = vector.load %arg11[%c2_126, %c0_127, %c0_128] : memref<3x144x128xf32, #tpu.memory_space<vmem>>, vector<1x144x128xf32>
    %118 = vector.shape_cast %117 : vector<1x144x128xf32> to vector<144x128xf32>
    %cst_129 = arith.constant dense<0.000000e+00> : vector<16x128xf32>
    %119 = tpu.matmul %116, %118, %cst_129 {dimension_numbers = #tpu.dot_dimension_numbers<[1], [0], [0], [1], [0, 0, 1, 1], [], []>} : vector<16x144xf32>, vector<144x128xf32>, vector<16x128xf32> -> vector<16x128xf32>
    %120 = arith.addf %115, %119 : vector<16x128xf32>
    %121 = vector.broadcast %105 : vector<1x128xf32> to vector<16x128xf32>
    %122 = arith.addf %120, %121 : vector<16x128xf32>
    %cst_130 = arith.constant 0.000000e+00 : f32
    %123 = vector.broadcast %cst_130 : f32 to vector<16x128xf32>
    %124 = arith.maximumf %122, %123 : vector<16x128xf32>
    %125 = vector.broadcast %1 : f32 to vector<16x128xf32>
    %126 = arith.mulf %125, %124 : vector<16x128xf32>
    %127 = arith.addf %126, %7 : vector<16x128xf32>
    %c0_131 = arith.constant 0 : index
    %c0_132 = arith.constant 0 : index
    %128 = vector.load %arg14[%c0_131, %c0_132] : memref<1x128xf32, #tpu.memory_space<vmem>>, vector<1x128xf32>
    %c1_133 = arith.constant 1 : index
    %c8_134 = arith.constant 8 : index
    %129 = vector.load %arg25[%c1_133, %c8_134] : memref<18x144xf32, #tpu.memory_space<vmem>>, vector<16x128xf32>
    tpu.vector_store %arg25[%c1_133, %c8_134], %127 {strides = array<i32>} : memref<18x144xf32, #tpu.memory_space<vmem>>, vector<16x128xf32>,
    %c0_135 = arith.constant 0 : index
    %c0_136 = arith.constant 0 : index
    %130 = vector.load %arg25[%c0_135, %c0_136] : memref<18x144xf32, #tpu.memory_space<vmem>>, vector<16x144xf32>
    %c0_137 = arith.constant 0 : index
    %c0_138 = arith.constant 0 : index
    %c0_139 = arith.constant 0 : index
    %131 = vector.load %arg13[%c0_137, %c0_138, %c0_139] : memref<3x144x128xf32, #tpu.memory_space<vmem>>, vector<1x144x128xf32>
    %132 = vector.shape_cast %131 : vector<1x144x128xf32> to vector<144x128xf32>
    %cst_140 = arith.constant dense<0.000000e+00> : vector<16x128xf32>
    %133 = tpu.matmul %130, %132, %cst_140 {dimension_numbers = #tpu.dot_dimension_numbers<[1], [0], [0], [1], [0, 0, 1, 1], [], []>} : vector<16x144xf32>, vector<144x128xf32>, vector<16x128xf32> -> vector<16x128xf32>
    %c1_141 = arith.constant 1 : index
    %c0_142 = arith.constant 0 : index
    %134 = vector.load %arg25[%c1_141, %c0_142] : memref<18x144xf32, #tpu.memory_space<vmem>>, vector<16x144xf32>
    %c1_143 = arith.constant 1 : index
    %c0_144 = arith.constant 0 : index
    %c0_145 = arith.constant 0 : index
    %135 = vector.load %arg13[%c1_143, %c0_144, %c0_145] : memref<3x144x128xf32, #tpu.memory_space<vmem>>, vector<1x144x128xf32>
    %136 = vector.shape_cast %135 : vector<1x144x128xf32> to vector<144x128xf32>
    %cst_146 = arith.constant dense<0.000000e+00> : vector<16x128xf32>
    %137 = tpu.matmul %134, %136, %cst_146 {dimension_numbers = #tpu.dot_dimension_numbers<[1], [0], [0], [1], [0, 0, 1, 1], [], []>} : vector<16x144xf32>, vector<144x128xf32>, vector<16x128xf32> -> vector<16x128xf32>
    %138 = arith.addf %133, %137 : vector<16x128xf32>
    %c2_147 = arith.constant 2 : index
    %c0_148 = arith.constant 0 : index
    %139 = vector.load %arg25[%c2_147, %c0_148] : memref<18x144xf32, #tpu.memory_space<vmem>>, vector<16x144xf32>
    %c2_149 = arith.constant 2 : index
    %c0_150 = arith.constant 0 : index
    %c0_151 = arith.constant 0 : index
    %140 = vector.load %arg13[%c2_149, %c0_150, %c0_151] : memref<3x144x128xf32, #tpu.memory_space<vmem>>, vector<1x144x128xf32>
    %141 = vector.shape_cast %140 : vector<1x144x128xf32> to vector<144x128xf32>
    %cst_152 = arith.constant dense<0.000000e+00> : vector<16x128xf32>
    %142 = tpu.matmul %139, %141, %cst_152 {dimension_numbers = #tpu.dot_dimension_numbers<[1], [0], [0], [1], [0, 0, 1, 1], [], []>} : vector<16x144xf32>, vector<144x128xf32>, vector<16x128xf32> -> vector<16x128xf32>
    %143 = arith.addf %138, %142 : vector<16x128xf32>
    %144 = vector.broadcast %128 : vector<1x128xf32> to vector<16x128xf32>
    %145 = arith.addf %143, %144 : vector<16x128xf32>
    %cst_153 = arith.constant 0.000000e+00 : f32
    %146 = vector.broadcast %cst_153 : f32 to vector<16x128xf32>
    %147 = arith.maximumf %145, %146 : vector<16x128xf32>
    %c1_154 = arith.constant 1 : index
    %c8_155 = arith.constant 8 : index
    %148 = vector.load %arg25[%c1_154, %c8_155] : memref<18x144xf32, #tpu.memory_space<vmem>>, vector<16x128xf32>
    tpu.vector_store %arg25[%c1_154, %c8_155], %147 {strides = array<i32>} : memref<18x144xf32, #tpu.memory_space<vmem>>, vector<16x128xf32>,
    %c0_156 = arith.constant 0 : index
    %c0_157 = arith.constant 0 : index
    %149 = vector.load %arg25[%c0_156, %c0_157] : memref<18x144xf32, #tpu.memory_space<vmem>>, vector<16x144xf32>
    %c0_158 = arith.constant 0 : index
    %c0_159 = arith.constant 0 : index
    %c0_160 = arith.constant 0 : index
    %150 = vector.load %arg15[%c0_158, %c0_159, %c0_160] : memref<3x144x128xf32, #tpu.memory_space<vmem>>, vector<1x144x128xf32>
    %151 = vector.shape_cast %150 : vector<1x144x128xf32> to vector<144x128xf32>
    %cst_161 = arith.constant dense<0.000000e+00> : vector<16x128xf32>
    %152 = tpu.matmul %149, %151, %cst_161 {dimension_numbers = #tpu.dot_dimension_numbers<[1], [0], [0], [1], [0, 0, 1, 1], [], []>} : vector<16x144xf32>, vector<144x128xf32>, vector<16x128xf32> -> vector<16x128xf32>
    %c1_162 = arith.constant 1 : index
    %c0_163 = arith.constant 0 : index
    %153 = vector.load %arg25[%c1_162, %c0_163] : memref<18x144xf32, #tpu.memory_space<vmem>>, vector<16x144xf32>
    %c1_164 = arith.constant 1 : index
    %c0_165 = arith.constant 0 : index
    %c0_166 = arith.constant 0 : index
    %154 = vector.load %arg15[%c1_164, %c0_165, %c0_166] : memref<3x144x128xf32, #tpu.memory_space<vmem>>, vector<1x144x128xf32>
    %155 = vector.shape_cast %154 : vector<1x144x128xf32> to vector<144x128xf32>
    %cst_167 = arith.constant dense<0.000000e+00> : vector<16x128xf32>
    %156 = tpu.matmul %153, %155, %cst_167 {dimension_numbers = #tpu.dot_dimension_numbers<[1], [0], [0], [1], [0, 0, 1, 1], [], []>} : vector<16x144xf32>, vector<144x128xf32>, vector<16x128xf32> -> vector<16x128xf32>
    %157 = arith.addf %152, %156 : vector<16x128xf32>
    %c2_168 = arith.constant 2 : index
    %c0_169 = arith.constant 0 : index
    %158 = vector.load %arg25[%c2_168, %c0_169] : memref<18x144xf32, #tpu.memory_space<vmem>>, vector<16x144xf32>
    %c2_170 = arith.constant 2 : index
    %c0_171 = arith.constant 0 : index
    %c0_172 = arith.constant 0 : index
    %159 = vector.load %arg15[%c2_170, %c0_171, %c0_172] : memref<3x144x128xf32, #tpu.memory_space<vmem>>, vector<1x144x128xf32>
    %160 = vector.shape_cast %159 : vector<1x144x128xf32> to vector<144x128xf32>
    %cst_173 = arith.constant dense<0.000000e+00> : vector<16x128xf32>
    %161 = tpu.matmul %158, %160, %cst_173 {dimension_numbers = #tpu.dot_dimension_numbers<[1], [0], [0], [1], [0, 0, 1, 1], [], []>} : vector<16x144xf32>, vector<144x128xf32>, vector<16x128xf32> -> vector<16x128xf32>
    %162 = arith.addf %157, %161 : vector<16x128xf32>
    %c1_174 = arith.constant 1 : index
    %c8_175 = arith.constant 8 : index
    %163 = vector.load %arg25[%c1_174, %c8_175] : memref<18x144xf32, #tpu.memory_space<vmem>>, vector<16x128xf32>
    tpu.vector_store %arg25[%c1_174, %c8_175], %103 {strides = array<i32>} : memref<18x144xf32, #tpu.memory_space<vmem>>, vector<16x128xf32>,
    %c0_176 = arith.constant 0 : index
    %c0_177 = arith.constant 0 : index
    %164 = vector.load %arg25[%c0_176, %c0_177] : memref<18x144xf32, #tpu.memory_space<vmem>>, vector<16x144xf32>
    %c0_178 = arith.constant 0 : index
    %c0_179 = arith.constant 0 : index
    %c0_180 = arith.constant 0 : index
    %165 = vector.load %arg16[%c0_178, %c0_179, %c0_180] : memref<3x144x128xf32, #tpu.memory_space<vmem>>, vector<1x144x128xf32>
    %166 = vector.shape_cast %165 : vector<1x144x128xf32> to vector<144x128xf32>
    %cst_181 = arith.constant dense<0.000000e+00> : vector<16x128xf32>
    %167 = tpu.matmul %164, %166, %cst_181 {dimension_numbers = #tpu.dot_dimension_numbers<[1], [0], [0], [1], [0, 0, 1, 1], [], []>} : vector<16x144xf32>, vector<144x128xf32>, vector<16x128xf32> -> vector<16x128xf32>
    %c1_182 = arith.constant 1 : index
    %c0_183 = arith.constant 0 : index
    %168 = vector.load %arg25[%c1_182, %c0_183] : memref<18x144xf32, #tpu.memory_space<vmem>>, vector<16x144xf32>
    %c1_184 = arith.constant 1 : index
    %c0_185 = arith.constant 0 : index
    %c0_186 = arith.constant 0 : index
    %169 = vector.load %arg16[%c1_184, %c0_185, %c0_186] : memref<3x144x128xf32, #tpu.memory_space<vmem>>, vector<1x144x128xf32>
    %170 = vector.shape_cast %169 : vector<1x144x128xf32> to vector<144x128xf32>
    %cst_187 = arith.constant dense<0.000000e+00> : vector<16x128xf32>
    %171 = tpu.matmul %168, %170, %cst_187 {dimension_numbers = #tpu.dot_dimension_numbers<[1], [0], [0], [1], [0, 0, 1, 1], [], []>} : vector<16x144xf32>, vector<144x128xf32>, vector<16x128xf32> -> vector<16x128xf32>
    %172 = arith.addf %167, %171 : vector<16x128xf32>
    %c2_188 = arith.constant 2 : index
    %c0_189 = arith.constant 0 : index
    %173 = vector.load %arg25[%c2_188, %c0_189] : memref<18x144xf32, #tpu.memory_space<vmem>>, vector<16x144xf32>
    %c2_190 = arith.constant 2 : index
    %c0_191 = arith.constant 0 : index
    %c0_192 = arith.constant 0 : index
    %174 = vector.load %arg16[%c2_190, %c0_191, %c0_192] : memref<3x144x128xf32, #tpu.memory_space<vmem>>, vector<1x144x128xf32>
    %175 = vector.shape_cast %174 : vector<1x144x128xf32> to vector<144x128xf32>
    %cst_193 = arith.constant dense<0.000000e+00> : vector<16x128xf32>
    %176 = tpu.matmul %173, %175, %cst_193 {dimension_numbers = #tpu.dot_dimension_numbers<[1], [0], [0], [1], [0, 0, 1, 1], [], []>} : vector<16x144xf32>, vector<144x128xf32>, vector<16x128xf32> -> vector<16x128xf32>
    %177 = arith.addf %172, %176 : vector<16x128xf32>
    %178 = arith.addf %162, %177 : vector<16x128xf32>
    %c0_194 = arith.constant 0 : index
    %c0_195 = arith.constant 0 : index
    %179 = vector.load %arg17[%c0_194, %c0_195] : memref<1x128xf32, #tpu.memory_space<vmem>>, vector<1x128xf32>
    %180 = vector.broadcast %179 : vector<1x128xf32> to vector<16x128xf32>
    %181 = arith.addf %178, %180 : vector<16x128xf32>
    %cst_196 = arith.constant 0.000000e+00 : f32
    %182 = vector.broadcast %cst_196 : f32 to vector<16x128xf32>
    %183 = arith.maximumf %181, %182 : vector<16x128xf32>
    %c0_197 = arith.constant 0 : index
    %c0_198 = arith.constant 0 : index
    %c0_199 = arith.constant 0 : index
    %184 = vector.load %arg22[%c0_197, %c0_198, %c0_199] : memref<1x16x128xf32, #tpu.memory_space<vmem>>, vector<1x16x128xf32>
    %185 = vector.shape_cast %184 : vector<1x16x128xf32> to vector<16x128xf32>
    %186 = vector.shape_cast %183 : vector<16x128xf32> to vector<1x16x128xf32>
    tpu.vector_store %arg22[%c0_197, %c0_198, %c0_199], %186 {strides = array<i32>} : memref<1x16x128xf32, #tpu.memory_space<vmem>>, vector<1x16x128xf32>,
    %c3_200 = arith.constant 3 : index
    %c24 = arith.constant 24 : index
    %187 = vector.load %arg26[%c3_200, %c24] : memref<22x176xf32, #tpu.memory_space<vmem>>, vector<16x128xf32>
    tpu.vector_store %arg26[%c3_200, %c24], %183 {strides = array<i32>} : memref<22x176xf32, #tpu.memory_space<vmem>>, vector<16x128xf32>,
    %c0_201 = arith.constant 0 : index
    %c0_202 = arith.constant 0 : index
    %188 = vector.load %arg26[%c0_201, %c0_202] : memref<22x176xf32, #tpu.memory_space<vmem>>, vector<16x176xf32>
    %c0_203 = arith.constant 0 : index
    %c0_204 = arith.constant 0 : index
    %c0_205 = arith.constant 0 : index
    %189 = vector.load %arg18[%c0_203, %c0_204, %c0_205] : memref<7x176x16xf32, #tpu.memory_space<vmem>>, vector<1x176x16xf32>
    %190 = vector.shape_cast %189 : vector<1x176x16xf32> to vector<176x16xf32>
    %cst_206 = arith.constant dense<0.000000e+00> : vector<16x16xf32>
    %191 = tpu.matmul %188, %190, %cst_206 {dimension_numbers = #tpu.dot_dimension_numbers<[1], [0], [0], [1], [0, 0, 1, 1], [], []>} : vector<16x176xf32>, vector<176x16xf32>, vector<16x16xf32> -> vector<16x16xf32>
    %c1_207 = arith.constant 1 : index
    %c0_208 = arith.constant 0 : index
    %192 = vector.load %arg26[%c1_207, %c0_208] : memref<22x176xf32, #tpu.memory_space<vmem>>, vector<16x176xf32>
    %c1_209 = arith.constant 1 : index
    %c0_210 = arith.constant 0 : index
    %c0_211 = arith.constant 0 : index
    %193 = vector.load %arg18[%c1_209, %c0_210, %c0_211] : memref<7x176x16xf32, #tpu.memory_space<vmem>>, vector<1x176x16xf32>
    %194 = vector.shape_cast %193 : vector<1x176x16xf32> to vector<176x16xf32>
    %cst_212 = arith.constant dense<0.000000e+00> : vector<16x16xf32>
    %195 = tpu.matmul %192, %194, %cst_212 {dimension_numbers = #tpu.dot_dimension_numbers<[1], [0], [0], [1], [0, 0, 1, 1], [], []>} : vector<16x176xf32>, vector<176x16xf32>, vector<16x16xf32> -> vector<16x16xf32>
    %196 = arith.addf %191, %195 : vector<16x16xf32>
    %c2_213 = arith.constant 2 : index
    %c0_214 = arith.constant 0 : index
    %197 = vector.load %arg26[%c2_213, %c0_214] : memref<22x176xf32, #tpu.memory_space<vmem>>, vector<16x176xf32>
    %c2_215 = arith.constant 2 : index
    %c0_216 = arith.constant 0 : index
    %c0_217 = arith.constant 0 : index
    %198 = vector.load %arg18[%c2_215, %c0_216, %c0_217] : memref<7x176x16xf32, #tpu.memory_space<vmem>>, vector<1x176x16xf32>
    %199 = vector.shape_cast %198 : vector<1x176x16xf32> to vector<176x16xf32>
    %cst_218 = arith.constant dense<0.000000e+00> : vector<16x16xf32>
    %200 = tpu.matmul %197, %199, %cst_218 {dimension_numbers = #tpu.dot_dimension_numbers<[1], [0], [0], [1], [0, 0, 1, 1], [], []>} : vector<16x176xf32>, vector<176x16xf32>, vector<16x16xf32> -> vector<16x16xf32>
    %201 = arith.addf %196, %200 : vector<16x16xf32>
    %c3_219 = arith.constant 3 : index
    %c0_220 = arith.constant 0 : index
    %202 = vector.load %arg26[%c3_219, %c0_220] : memref<22x176xf32, #tpu.memory_space<vmem>>, vector<16x176xf32>
    %c3_221 = arith.constant 3 : index
    %c0_222 = arith.constant 0 : index
    %c0_223 = arith.constant 0 : index
    %203 = vector.load %arg18[%c3_221, %c0_222, %c0_223] : memref<7x176x16xf32, #tpu.memory_space<vmem>>, vector<1x176x16xf32>
    %204 = vector.shape_cast %203 : vector<1x176x16xf32> to vector<176x16xf32>
    %cst_224 = arith.constant dense<0.000000e+00> : vector<16x16xf32>
    %205 = tpu.matmul %202, %204, %cst_224 {dimension_numbers = #tpu.dot_dimension_numbers<[1], [0], [0], [1], [0, 0, 1, 1], [], []>} : vector<16x176xf32>, vector<176x16xf32>, vector<16x16xf32> -> vector<16x16xf32>
    %206 = arith.addf %201, %205 : vector<16x16xf32>
    %c4_225 = arith.constant 4 : index
    %c0_226 = arith.constant 0 : index
    %207 = vector.load %arg26[%c4_225, %c0_226] : memref<22x176xf32, #tpu.memory_space<vmem>>, vector<16x176xf32>
    %c4_227 = arith.constant 4 : index
    %c0_228 = arith.constant 0 : index
    %c0_229 = arith.constant 0 : index
    %208 = vector.load %arg18[%c4_227, %c0_228, %c0_229] : memref<7x176x16xf32, #tpu.memory_space<vmem>>, vector<1x176x16xf32>
    %209 = vector.shape_cast %208 : vector<1x176x16xf32> to vector<176x16xf32>
    %cst_230 = arith.constant dense<0.000000e+00> : vector<16x16xf32>
    %210 = tpu.matmul %207, %209, %cst_230 {dimension_numbers = #tpu.dot_dimension_numbers<[1], [0], [0], [1], [0, 0, 1, 1], [], []>} : vector<16x176xf32>, vector<176x16xf32>, vector<16x16xf32> -> vector<16x16xf32>
    %211 = arith.addf %206, %210 : vector<16x16xf32>
    %c5_231 = arith.constant 5 : index
    %c0_232 = arith.constant 0 : index
    %212 = vector.load %arg26[%c5_231, %c0_232] : memref<22x176xf32, #tpu.memory_space<vmem>>, vector<16x176xf32>
    %c5_233 = arith.constant 5 : index
    %c0_234 = arith.constant 0 : index
    %c0_235 = arith.constant 0 : index
    %213 = vector.load %arg18[%c5_233, %c0_234, %c0_235] : memref<7x176x16xf32, #tpu.memory_space<vmem>>, vector<1x176x16xf32>
    %214 = vector.shape_cast %213 : vector<1x176x16xf32> to vector<176x16xf32>
    %cst_236 = arith.constant dense<0.000000e+00> : vector<16x16xf32>
    %215 = tpu.matmul %212, %214, %cst_236 {dimension_numbers = #tpu.dot_dimension_numbers<[1], [0], [0], [1], [0, 0, 1, 1], [], []>} : vector<16x176xf32>, vector<176x16xf32>, vector<16x16xf32> -> vector<16x16xf32>
    %216 = arith.addf %211, %215 : vector<16x16xf32>
    %c6_237 = arith.constant 6 : index
    %c0_238 = arith.constant 0 : index
    %217 = vector.load %arg26[%c6_237, %c0_238] : memref<22x176xf32, #tpu.memory_space<vmem>>, vector<16x176xf32>
    %c6_239 = arith.constant 6 : index
    %c0_240 = arith.constant 0 : index
    %c0_241 = arith.constant 0 : index
    %218 = vector.load %arg18[%c6_239, %c0_240, %c0_241] : memref<7x176x16xf32, #tpu.memory_space<vmem>>, vector<1x176x16xf32>
    %219 = vector.shape_cast %218 : vector<1x176x16xf32> to vector<176x16xf32>
    %cst_242 = arith.constant dense<0.000000e+00> : vector<16x16xf32>
    %220 = tpu.matmul %217, %219, %cst_242 {dimension_numbers = #tpu.dot_dimension_numbers<[1], [0], [0], [1], [0, 0, 1, 1], [], []>} : vector<16x176xf32>, vector<176x16xf32>, vector<16x16xf32> -> vector<16x16xf32>
    %221 = arith.addf %216, %220 : vector<16x16xf32>
    %222 = vector.broadcast %2 : f32 to vector<16x16xf32>
    %223 = arith.addf %221, %222 : vector<16x16xf32>
    %c0_243 = arith.constant 0 : index
    %c0_244 = arith.constant 0 : index
    %c0_245 = arith.constant 0 : index
    %224 = vector.load %arg23[%c0_243, %c0_244, %c0_245] : memref<1x16x16xf32, #tpu.memory_space<vmem>>, vector<1x16x16xf32>
    %225 = vector.shape_cast %224 : vector<1x16x16xf32> to vector<16x16xf32>
    %226 = vector.shape_cast %223 : vector<16x16xf32> to vector<1x16x16xf32>
    tpu.vector_store %arg23[%c0_243, %c0_244, %c0_245], %226 {strides = array<i32>} : memref<1x16x16xf32, #tpu.memory_space<vmem>>, vector<1x16x16xf32>,
    return
  }
  func.func @transform_0(%arg0: i32) -> i32 {
    %c0_i32 = arith.constant 0 : i32
    %c0_i32_0 = arith.constant 0 : i32
    return %c0_i32 : i32
  }
  func.func @transform_1(%arg0: i32) -> (i32, i32, i32) {
    %c0_i32 = arith.constant 0 : i32
    %c0_i32_0 = arith.constant 0 : i32
    %c0_i32_1 = arith.constant 0 : i32
    return %arg0, %c0_i32, %c0_i32_0 : i32, i32, i32
  }
  func.func @transform_2(%arg0: i32) -> (i32, i32, i32) {
    %c0_i32 = arith.constant 0 : i32
    %c0_i32_0 = arith.constant 0 : i32
    %c0_i32_1 = arith.constant 0 : i32
    return %arg0, %c0_i32, %c0_i32_0 : i32, i32, i32
  }
  func.func @transform_3(%arg0: i32) -> (i32, i32, i32) {
    %c0_i32 = arith.constant 0 : i32
    %c0_i32_0 = arith.constant 0 : i32
    %c0_i32_1 = arith.constant 0 : i32
    return %arg0, %c0_i32, %c0_i32_0 : i32, i32, i32
  }
  func.func @transform_4(%arg0: i32) -> (i32, i32, i32) {
    %c0_i32 = arith.constant 0 : i32
    %c0_i32_0 = arith.constant 0 : i32
    %c0_i32_1 = arith.constant 0 : i32
    %c0_i32_2 = arith.constant 0 : i32
    return %c0_i32, %c0_i32_0, %c0_i32_1 : i32, i32, i32
  }
  func.func @transform_5(%arg0: i32) -> (i32, i32) {
    %c0_i32 = arith.constant 0 : i32
    %c0_i32_0 = arith.constant 0 : i32
    %c0_i32_1 = arith.constant 0 : i32
    return %c0_i32, %c0_i32_0 : i32, i32
  }
  func.func @transform_6(%arg0: i32) -> (i32, i32, i32) {
    %c0_i32 = arith.constant 0 : i32
    %c0_i32_0 = arith.constant 0 : i32
    %c0_i32_1 = arith.constant 0 : i32
    %c0_i32_2 = arith.constant 0 : i32
    return %c0_i32, %c0_i32_0, %c0_i32_1 : i32, i32, i32
  }
  func.func @transform_7(%arg0: i32) -> (i32, i32) {
    %c0_i32 = arith.constant 0 : i32
    %c0_i32_0 = arith.constant 0 : i32
    %c0_i32_1 = arith.constant 0 : i32
    return %c0_i32, %c0_i32_0 : i32, i32
  }
  func.func @transform_8(%arg0: i32) -> (i32, i32, i32) {
    %c0_i32 = arith.constant 0 : i32
    %c0_i32_0 = arith.constant 0 : i32
    %c0_i32_1 = arith.constant 0 : i32
    %c0_i32_2 = arith.constant 0 : i32
    return %c0_i32, %c0_i32_0, %c0_i32_1 : i32, i32, i32
  }
  func.func @transform_9(%arg0: i32) -> (i32, i32) {
    %c0_i32 = arith.constant 0 : i32
    %c0_i32_0 = arith.constant 0 : i32
    %c0_i32_1 = arith.constant 0 : i32
    return %c0_i32, %c0_i32_0 : i32, i32
  }
  func.func @transform_10(%arg0: i32) -> (i32, i32, i32) {
    %c0_i32 = arith.constant 0 : i32
    %c0_i32_0 = arith.constant 0 : i32
    %c0_i32_1 = arith.constant 0 : i32
    %c0_i32_2 = arith.constant 0 : i32
    return %c0_i32, %c0_i32_0, %c0_i32_1 : i32, i32, i32
  }
  func.func @transform_11(%arg0: i32) -> (i32, i32) {
    %c0_i32 = arith.constant 0 : i32
    %c0_i32_0 = arith.constant 0 : i32
    %c0_i32_1 = arith.constant 0 : i32
    return %c0_i32, %c0_i32_0 : i32, i32
  }
  func.func @transform_12(%arg0: i32) -> (i32, i32, i32) {
    %c0_i32 = arith.constant 0 : i32
    %c0_i32_0 = arith.constant 0 : i32
    %c0_i32_1 = arith.constant 0 : i32
    %c0_i32_2 = arith.constant 0 : i32
    return %c0_i32, %c0_i32_0, %c0_i32_1 : i32, i32, i32
  }
  func.func @transform_13(%arg0: i32) -> (i32, i32) {
    %c0_i32 = arith.constant 0 : i32
    %c0_i32_0 = arith.constant 0 : i32
    %c0_i32_1 = arith.constant 0 : i32
    return %c0_i32, %c0_i32_0 : i32, i32
  }
  func.func @transform_14(%arg0: i32) -> (i32, i32, i32) {
    %c0_i32 = arith.constant 0 : i32
    %c0_i32_0 = arith.constant 0 : i32
    %c0_i32_1 = arith.constant 0 : i32
    %c0_i32_2 = arith.constant 0 : i32
    return %c0_i32, %c0_i32_0, %c0_i32_1 : i32, i32, i32
  }
  func.func @transform_15(%arg0: i32) -> (i32, i32, i32) {
    %c0_i32 = arith.constant 0 : i32
    %c0_i32_0 = arith.constant 0 : i32
    %c0_i32_1 = arith.constant 0 : i32
    %c0_i32_2 = arith.constant 0 : i32
    return %c0_i32, %c0_i32_0, %c0_i32_1 : i32, i32, i32
  }
  func.func @transform_16(%arg0: i32) -> (i32, i32) {
    %c0_i32 = arith.constant 0 : i32
    %c0_i32_0 = arith.constant 0 : i32
    %c0_i32_1 = arith.constant 0 : i32
    return %c0_i32, %c0_i32_0 : i32, i32
  }
  func.func @transform_17(%arg0: i32) -> (i32, i32, i32) {
    %c0_i32 = arith.constant 0 : i32
    %c0_i32_0 = arith.constant 0 : i32
    %c0_i32_1 = arith.constant 0 : i32
    %c0_i32_2 = arith.constant 0 : i32
    return %c0_i32, %c0_i32_0, %c0_i32_1 : i32, i32, i32
  }
  func.func @transform_18(%arg0: i32) -> (i32, i32) {
    %c0_i32 = arith.constant 0 : i32
    %c0_i32_0 = arith.constant 0 : i32
    %c0_i32_1 = arith.constant 0 : i32
    return %c0_i32, %c0_i32_0 : i32, i32
  }
  func.func @transform_19(%arg0: i32) -> (i32, i32) {
    %c0_i32 = arith.constant 0 : i32
    %c0_i32_0 = arith.constant 0 : i32
    %c0_i32_1 = arith.constant 0 : i32
    return %c0_i32, %c0_i32_0 : i32, i32
  }
  func.func @transform_20(%arg0: i32) -> (i32, i32) {
    %c0_i32 = arith.constant 0 : i32
    %c0_i32_0 = arith.constant 0 : i32
    %c0_i32_1 = arith.constant 0 : i32
    return %c0_i32, %c0_i32_0 : i32, i32
  }
  func.func @transform_21(%arg0: i32) -> (i32, i32, i32) {
    %c0_i32 = arith.constant 0 : i32
    %c0_i32_0 = arith.constant 0 : i32
    %c0_i32_1 = arith.constant 0 : i32
    return %arg0, %c0_i32, %c0_i32_0 : i32, i32, i32
  }
  func.func @transform_22(%arg0: i32) -> (i32, i32, i32) {
    %c0_i32 = arith.constant 0 : i32
    %c0_i32_0 = arith.constant 0 : i32
    %c0_i32_1 = arith.constant 0 : i32
    return %arg0, %c0_i32, %c0_i32_0 : i32, i32, i32
  }
}

</mosaic_0001>

<llo_original>
// kernel: sobe_block_forward.1
$region0: #{sobe_block_forward.1}
  #allocation0 [shape = 'u32[]', space=smem, size = 0x4, offset = 0x4, fixed_abs, tag = 'smem constant byte address 0x4 - core index']
  #allocation1 [shape = 'u32[144,128]{1,0:T(1,128)}', space=vmem, size = 0x12000, scoped, tag = 'internal scratch']
  #allocation2 [shape = 'f32[14,56]{1,0:T(8,128)}', space=vmem, size = 0x2000, scoped, tag = 'scratch operand']
  #allocation3 [shape = 'f32[18,144]{1,0:T(8,128)}', space=vmem, size = 0x6000, scoped, tag = 'scratch operand']
  #allocation4 [shape = 'f32[22,176]{1,0:T(8,128)}', space=vmem, size = 0x6000, scoped, tag = 'scratch operand']
  %s0 = inlined_call_operand.vmem [shape: f32[3], index: 0, kind: input, shape index: {}]
  %s1 = inlined_call_operand.vmem [shape: f32[2,16,128], index: 1, kind: input, shape index: {}]
  %s2 = inlined_call_operand.vmem [shape: f32[2,8,32], index: 2, kind: input, shape index: {}]
  %s3 = inlined_call_operand.vmem [shape: f32[2,8,8], index: 3, kind: input, shape index: {}]
  %s4 = inlined_call_operand.vmem [shape: f32[7,56,64], index: 4, kind: input, shape index: {}]
  %s5 = inlined_call_operand.hbm [shape: f32[1,64], index: 5, kind: input, shape index: {}]
  %s6 = inlined_call_operand.vmem [shape: f32[3,144,128], index: 6, kind: input, shape index: {}]
  %s7 = inlined_call_operand.hbm [shape: f32[1,128], index: 7, kind: input, shape index: {}]
  %s8 = inlined_call_operand.vmem [shape: f32[3,144,128], index: 8, kind: input, shape index: {}]
  %s9 = inlined_call_operand.hbm [shape: f32[1,128], index: 9, kind: input, shape index: {}]
  %s10 = inlined_call_operand.vmem [shape: f32[3,144,128], index: 10, kind: input, shape index: {}]
  %s11 = inlined_call_operand.hbm [shape: f32[1,128], index: 11, kind: input, shape index: {}]
  %s12 = inlined_call_operand.vmem [shape: f32[3,144,128], index: 12, kind: input, shape index: {}]
  %s13 = inlined_call_operand.hbm [shape: f32[1,128], index: 13, kind: input, shape index: {}]
  %s14 = inlined_call_operand.vmem [shape: f32[3,144,128], index: 14, kind: input, shape index: {}]
  %s15 = inlined_call_operand.hbm [shape: f32[3,144,128], index: 15, kind: input, shape index: {}]
  %s16 = inlined_call_operand.hbm [shape: f32[1,128], index: 16, kind: input, shape index: {}]
  %s17 = inlined_call_operand.vmem [shape: f32[7,176,16], index: 17, kind: input, shape index: {}]
  %s18 = inlined_call_operand.vmem [shape: f32[16,8], index: 18, kind: input, shape index: {}]
  %s19 = inlined_call_operand.hbm [shape: f32[64,128], index: 19, kind: input, shape index: {}]
  %s20 = inlined_call_operand.hbm [shape: f32[8,128], index: 20, kind: input, shape index: {}]
  %s21 = inlined_call_operand.vmem [shape: f32[2,16,128], index: 21, kind: output, shape index: {0}]
  %s22 = inlined_call_operand.hbm [shape: f32[2,16,16], index: 22, kind: output, shape index: {1}]
  %23 = xla_tuple %s21, %s22
  %s24 = sld [smem:[#allocation0]]
  $region169: #{sobe_block_forward.1} parent=0
    _
  %s26 = ssub.s32 1, %s24
  %s27 = scalar_select 0, %s26, %s24
  $region1: #{sobe_block_forward.1} parent=0
    #allocation5 [shape = 'u8[512]{0}', space=smem, size = 0x200, scoped, tag = 'input window, operand 0, single buffered']
    #allocation6 [shape = 's32[2]{0}', space=sflag, size = 0x8, scoped, tag = 'scoped memory for sobe_block_forward.1']
    #allocation7 [shape = 's32[2]{0}', space=sflag, size = 0x8, scoped, tag = 'scoped memory for sobe_block_forward.1']
    #allocation8 [shape = 's32[2]{0}', space=sflag, size = 0x8, scoped, tag = 'scoped memory for sobe_block_forward.1']
    #allocation9 [shape = 'u8[512]{0}', space=vmem, size = 0x400, scoped, tag = 'input window, operand 5, single buffered']
    #allocation10 [shape = 'u8[512]{0}', space=vmem, size = 0x400, scoped, tag = 'input window, operand 7, single buffered']
    #allocation11 [shape = 's32[1]{0}', space=sflag, size = 0x4, scoped, tag = 'scoped memory for sobe_block_forward.1']
    #allocation12 [shape = 'u8[512]{0}', space=vmem, size = 0x400, scoped, tag = 'input window, operand 9, single buffered']
    #allocation13 [shape = 'u8[512]{0}', space=vmem, size = 0x400, scoped, tag = 'input window, operand 11, single buffered']
    #allocation14 [shape = 's32[1]{0}', space=sflag, size = 0x4, scoped, tag = 'scoped memory for sobe_block_forward.1']
    #allocation15 [shape = 'u8[512]{0}', space=vmem, size = 0x400, scoped, tag = 'input window, operand 13, single buffered']
    #allocation16 [shape = 'u8[221184]{0}', space=vmem, size = 0x36000, scoped, tag = 'input window, operand 15, single buffered']
    #allocation17 [shape = 's32[1]{0}', space=sflag, size = 0x4, scoped, tag = 'scoped memory for sobe_block_forward.1']
    #allocation18 [shape = 'u8[512]{0}', space=vmem, size = 0x400, scoped, tag = 'input window, operand 16, single buffered']
    #allocation19 [shape = 'u8[32768]{0}', space=vmem, size = 0x8000, scoped, tag = 'input window, operand 19, single buffered']
    #allocation20 [shape = 's32[1]{0}', space=sflag, size = 0x4, scoped, tag = 'scoped memory for sobe_block_forward.1']
    #allocation21 [shape = 'u8[4096]{0}', space=vmem, size = 0x1000, scoped, tag = 'input window, operand 20, single buffered']
    #allocation22 [shape = 'u8[16384]{0}', space=vmem, size = 0x4000, scoped, tag = 'output window, operand 1']
    %28 = vsyncpa [#allocation8], 0
    %29 = vsyncpa [#allocation6], 0
    %30 = vsyncpa [#allocation11], 0
    %31 = vsyncpa [#allocation14], 0
    %32 = vsyncpa [#allocation17], 0
    %33 = vsyncpa [#allocation20], 0
    %34 = vsyncpa [#allocation7], 0
    %s35 = scalar_lea.sflag [#allocation7], 1
    %36 = vsyncpa %s35, 0
    loop: start=0, step=1, limit=4
    $region2: #{sobe_block_forward.1} parent=1 // loop_pre_header
      _
    $region3: #{sobe_block_forward.1} parent=1 // loop_header
      %s38 = sphi 0, %s42
      %p39 = scmp.ge.s32.totalorder %s38, 4
      %s46 = sphi 0, %s46
      %s48 = sphi 0, %s46
      %s49 = sphi 0, %s48
      %s63 = sphi 0, %s49
      %s69 = sphi 0, %s71
      %s72 = sphi 0, %s69
      %s73 = sphi 0, %s72
      %s89 = sphi 0, %s73
      %s95 = sphi 0, %s97
      %s98 = sphi 0, %s95
      %s99 = sphi 0, %s98
      %s115 = sphi 0, %s99
      %s121 = sphi 0, %s123
      %s124 = sphi 0, %s121
      %s125 = sphi 0, %s124
      %s141 = sphi 0, %s125
      %s145 = sphi 0, %s145
      %s147 = sphi 0, %s145
      %s148 = sphi 0, %s147
      %s162 = sphi 0, %s148
      %s166 = sphi 0, %s166
      %s168 = sphi 0, %s166
      %s169 = sphi 0, %s168
      %s183 = sphi 0, %s169
      %s187 = sphi 0, %s187
      %s189 = sphi 0, %s187
      %s190 = sphi 0, %s189
      %s204 = sphi 0, %s190
      %s208 = sphi 0, %s208
      %s210 = sphi 0, %s208
      %s211 = sphi 0, %s210
      %s225 = sphi 0, %s211
      %s229 = sphi 0, %s229
      %s231 = sphi 0, %s229
      %s232 = sphi 0, %s231
      %s246 = sphi 0, %s232
      %s250 = sphi 0, %s250
      %s252 = sphi 0, %s250
      %s253 = sphi 0, %s252
      %s267 = sphi 0, %s253
      %s271 = sphi 0, %s271
      %s273 = sphi 0, %s271
      %s274 = sphi 0, %s273
      %s288 = sphi 0, %s274
      %s292 = sphi 0, %s292
      %s294 = sphi 0, %s292
      %s295 = sphi 0, %s294
      %s309 = sphi 0, %s295
      %s313 = sphi 0, %s313
      %s315 = sphi 0, %s313
      %s316 = sphi 0, %s315
      %s330 = sphi 0, %s316
      %s334 = sphi 0, %s334
      %s336 = sphi 0, %s334
      %s337 = sphi 0, %s336
      %s351 = sphi 0, %s337
      %s355 = sphi 0, %s355
      %s357 = sphi 0, %s355
      %s358 = sphi 0, %s357
      %s372 = sphi 0, %s358
      %s376 = sphi 0, %s376
      %s378 = sphi 0, %s376
      %s379 = sphi 0, %s378
      %s393 = sphi 0, %s379
      %s397 = sphi 0, %s397
      %s399 = sphi 0, %s397
      %s400 = sphi 0, %s399
      %s414 = sphi 0, %s400
      %s418 = sphi 0, %s418
      %s420 = sphi 0, %s418
      %s421 = sphi 0, %s420
      %s435 = sphi 0, %s421
      %s439 = sphi 0, %s439
      %s441 = sphi 0, %s439
      %s442 = sphi 0, %s441
      %s456 = sphi 0, %s442
      %s460 = sphi 0, %s460
      %s462 = sphi 0, %s460
      %s463 = sphi 0, %s462
      %s477 = sphi 0, %s463
      %s481 = sphi 0, %s481
      %s483 = sphi 0, %s481
      %s484 = sphi 0, %s483
      %s498 = sphi 0, %s484
      %s504 = sphi 0, %s506
      %s507 = sphi 0, %s504
      %s508 = sphi 0, %s507
      %s524 = sphi 0, %s508
      %s530 = sphi 0, %s532
      %s533 = sphi 0, %s530
      %s534 = sphi 0, %s533
      %s550 = sphi 0, %s534
    $region4: #{sobe_block_forward.1} parent=1 // loop_header_branch
      %41 = sbr.rel (%p39) target = $region8
    $region5: #{sobe_block_forward.1} parent=1 // loop_body
      %s43 = ssub.s32 %s38, 1
      %s44 = ssub.s32 %s38, 2
      %s45 = sadd.s32 %s38, 1
      %s47 = sadd.s32 %s46, 1
      %p50 = scmp.eq.s32.totalorder %s38, 1
      %p51 = scmp.ne.s32.totalorder %s46, %s48
      %p52 = scmp.eq.s32.totalorder %s38, 0
      %p53 = por %p51, %p52
      %p54 = scmp.ne.s32.totalorder %s46, %s48
      %p55 = scmp.eq.s32.totalorder %s43, 1
      %p56 = por %p54, %p55
      %p57 = scmp.ne.s32.totalorder %s48, %s49
      %p58 = scmp.eq.s32.totalorder %s43, 0
      %p59 = por %p57, %p58
      %p60 = scmp.ne.s32.totalorder %s48, %s49
      %p61 = scmp.eq.s32.totalorder %s44, 1
      %p62 = por %p60, %p61
      %p64 = scmp.ne.s32.totalorder %s49, %s63
      %p65 = scmp.eq.s32.totalorder %s44, 0
      %p66 = por %p64, %p65
      %s67 = ssub.s32 %s38, %s45
      %p68 = scmp.eq.s32.totalorder %s67, 0
      %s70 = sadd.s32 %s69, 1
      %s71 = scalar_select %p68, %s69, %s70
      %p74 = pneg %p68
      %p75 = scmp.eq.s32.totalorder %s38, 1
      %p76 = por %p74, %p75
      %p77 = scmp.ne.s32.totalorder %s69, %s72
      %p78 = scmp.eq.s32.totalorder %s38, 0
      %p79 = por %p77, %p78
      %p80 = scmp.ne.s32.totalorder %s69, %s72
      %p81 = scmp.eq.s32.totalorder %s43, 1
      %p82 = por %p80, %p81
      %p83 = scmp.ne.s32.totalorder %s72, %s73
      %p84 = scmp.eq.s32.totalorder %s43, 0
      %p85 = por %p83, %p84
      %p86 = scmp.ne.s32.totalorder %s72, %s73
      %p87 = scmp.eq.s32.totalorder %s44, 1
      %p88 = por %p86, %p87
      %p90 = scmp.ne.s32.totalorder %s73, %s89
      %p91 = scmp.eq.s32.totalorder %s44, 0
      %p92 = por %p90, %p91
      %s93 = ssub.s32 %s38, %s45
      %p94 = scmp.eq.s32.totalorder %s93, 0
      %s96 = sadd.s32 %s95, 1
      %s97 = scalar_select %p94, %s95, %s96
      %p100 = pneg %p94
      %p101 = scmp.eq.s32.totalorder %s38, 1
      %p102 = por %p100, %p101
      %p103 = scmp.ne.s32.totalorder %s95, %s98
      %p104 = scmp.eq.s32.totalorder %s38, 0
      %p105 = por %p103, %p104
      %p106 = scmp.ne.s32.totalorder %s95, %s98
      %p107 = scmp.eq.s32.totalorder %s43, 1
      %p108 = por %p106, %p107
      %p109 = scmp.ne.s32.totalorder %s98, %s99
      %p110 = scmp.eq.s32.totalorder %s43, 0
      %p111 = por %p109, %p110
      %p112 = scmp.ne.s32.totalorder %s98, %s99
      %p113 = scmp.eq.s32.totalorder %s44, 1
      %p114 = por %p112, %p113
      %p116 = scmp.ne.s32.totalorder %s99, %s115
      %p117 = scmp.eq.s32.totalorder %s44, 0
      %p118 = por %p116, %p117
      %s119 = ssub.s32 %s38, %s45
      %p120 = scmp.eq.s32.totalorder %s119, 0
      %s122 = sadd.s32 %s121, 1
      %s123 = scalar_select %p120, %s121, %s122
      %p126 = pneg %p120
      %p127 = scmp.eq.s32.totalorder %s38, 1
      %p128 = por %p126, %p127
      %p129 = scmp.ne.s32.totalorder %s121, %s124
      %p130 = scmp.eq.s32.totalorder %s38, 0
      %p131 = por %p129, %p130
      %p132 = scmp.ne.s32.totalorder %s121, %s124
      %p133 = scmp.eq.s32.totalorder %s43, 1
      %p134 = por %p132, %p133
      %p135 = scmp.ne.s32.totalorder %s124, %s125
      %p136 = scmp.eq.s32.totalorder %s43, 0
      %p137 = por %p135, %p136
      %p138 = scmp.ne.s32.totalorder %s124, %s125
      %p139 = scmp.eq.s32.totalorder %s44, 1
      %p140 = por %p138, %p139
      %p142 = scmp.ne.s32.totalorder %s125, %s141
      %p143 = scmp.eq.s32.totalorder %s44, 0
      %p144 = por %p142, %p143
      %s146 = sadd.s32 %s145, 1
      %p149 = scmp.eq.s32.totalorder %s38, 1
      %p150 = scmp.ne.s32.totalorder %s145, %s147
      %p151 = scmp.eq.s32.totalorder %s38, 0
      %p152 = por %p150, %p151
      %p153 = scmp.ne.s32.totalorder %s145, %s147
      %p154 = scmp.eq.s32.totalorder %s43, 1
      %p155 = por %p153, %p154
      %p156 = scmp.ne.s32.totalorder %s147, %s148
      %p157 = scmp.eq.s32.totalorder %s43, 0
      %p158 = por %p156, %p157
      %p159 = scmp.ne.s32.totalorder %s147, %s148
      %p160 = scmp.eq.s32.totalorder %s44, 1
      %p161 = por %p159, %p160
      %p163 = scmp.ne.s32.totalorder %s148, %s162
      %p164 = scmp.eq.s32.totalorder %s44, 0
      %p165 = por %p163, %p164
      %s167 = sadd.s32 %s166, 1
      %p170 = scmp.eq.s32.totalorder %s38, 1
      %p171 = scmp.ne.s32.totalorder %s166, %s168
      %p172 = scmp.eq.s32.totalorder %s38, 0
      %p173 = por %p171, %p172
      %p174 = scmp.ne.s32.totalorder %s166, %s168
      %p175 = scmp.eq.s32.totalorder %s43, 1
      %p176 = por %p174, %p175
      %p177 = scmp.ne.s32.totalorder %s168, %s169
      %p178 = scmp.eq.s32.totalorder %s43, 0
      %p179 = por %p177, %p178
      %p180 = scmp.ne.s32.totalorder %s168, %s169
      %p181 = scmp.eq.s32.totalorder %s44, 1
      %p182 = por %p180, %p181
      %p184 = scmp.ne.s32.totalorder %s169, %s183
      %p185 = scmp.eq.s32.totalorder %s44, 0
      %p186 = por %p184, %p185
      %s188 = sadd.s32 %s187, 1
      %p191 = scmp.eq.s32.totalorder %s38, 1
      %p192 = scmp.ne.s32.totalorder %s187, %s189
      %p193 = scmp.eq.s32.totalorder %s38, 0
      %p194 = por %p192, %p193
      %p195 = scmp.ne.s32.totalorder %s187, %s189
      %p196 = scmp.eq.s32.totalorder %s43, 1
      %p197 = por %p195, %p196
      %p198 = scmp.ne.s32.totalorder %s189, %s190
      %p199 = scmp.eq.s32.totalorder %s43, 0
      %p200 = por %p198, %p199
      %p201 = scmp.ne.s32.totalorder %s189, %s190
      %p202 = scmp.eq.s32.totalorder %s44, 1
      %p203 = por %p201, %p202
      %p205 = scmp.ne.s32.totalorder %s190, %s204
      %p206 = scmp.eq.s32.totalorder %s44, 0
      %p207 = por %p205, %p206
      %s209 = sadd.s32 %s208, 1
      %p212 = scmp.eq.s32.totalorder %s38, 1
      %p213 = scmp.ne.s32.totalorder %s208, %s210
      %p214 = scmp.eq.s32.totalorder %s38, 0
      %p215 = por %p213, %p214
      %p216 = scmp.ne.s32.totalorder %s208, %s210
      %p217 = scmp.eq.s32.totalorder %s43, 1
      %p218 = por %p216, %p217
      %p219 = scmp.ne.s32.totalorder %s210, %s211
      %p220 = scmp.eq.s32.totalorder %s43, 0
      %p221 = por %p219, %p220
      %p222 = scmp.ne.s32.totalorder %s210, %s211
      %p223 = scmp.eq.s32.totalorder %s44, 1
      %p224 = por %p222, %p223
      %p226 = scmp.ne.s32.totalorder %s211, %s225
      %p227 = scmp.eq.s32.totalorder %s44, 0
      %p228 = por %p226, %p227
      %s230 = sadd.s32 %s229, 1
      %p233 = scmp.eq.s32.totalorder %s38, 1
      %p234 = scmp.ne.s32.totalorder %s229, %s231
      %p235 = scmp.eq.s32.totalorder %s38, 0
      %p236 = por %p234, %p235
      %p237 = scmp.ne.s32.totalorder %s229, %s231
      %p238 = scmp.eq.s32.totalorder %s43, 1
      %p239 = por %p237, %p238
      %p240 = scmp.ne.s32.totalorder %s231, %s232
      %p241 = scmp.eq.s32.totalorder %s43, 0
      %p242 = por %p240, %p241
      %p243 = scmp.ne.s32.totalorder %s231, %s232
      %p244 = scmp.eq.s32.totalorder %s44, 1
      %p245 = por %p243, %p244
      %p247 = scmp.ne.s32.totalorder %s232, %s246
      %p248 = scmp.eq.s32.totalorder %s44, 0
      %p249 = por %p247, %p248
      %s251 = sadd.s32 %s250, 1
      %p254 = scmp.eq.s32.totalorder %s38, 1
      %p255 = scmp.ne.s32.totalorder %s250, %s252
      %p256 = scmp.eq.s32.totalorder %s38, 0
      %p257 = por %p255, %p256
      %p258 = scmp.ne.s32.totalorder %s250, %s252
      %p259 = scmp.eq.s32.totalorder %s43, 1
      %p260 = por %p258, %p259
      %p261 = scmp.ne.s32.totalorder %s252, %s253
      %p262 = scmp.eq.s32.totalorder %s43, 0
      %p263 = por %p261, %p262
      %p264 = scmp.ne.s32.totalorder %s252, %s253
      %p265 = scmp.eq.s32.totalorder %s44, 1
      %p266 = por %p264, %p265
      %p268 = scmp.ne.s32.totalorder %s253, %s267
      %p269 = scmp.eq.s32.totalorder %s44, 0
      %p270 = por %p268, %p269
      %s272 = sadd.s32 %s271, 1
      %p275 = scmp.eq.s32.totalorder %s38, 1
      %p276 = scmp.ne.s32.totalorder %s271, %s273
      %p277 = scmp.eq.s32.totalorder %s38, 0
      %p278 = por %p276, %p277
      %p279 = scmp.ne.s32.totalorder %s271, %s273
      %p280 = scmp.eq.s32.totalorder %s43, 1
      %p281 = por %p279, %p280
      %p282 = scmp.ne.s32.totalorder %s273, %s274
      %p283 = scmp.eq.s32.totalorder %s43, 0
      %p284 = por %p282, %p283
      %p285 = scmp.ne.s32.totalorder %s273, %s274
      %p286 = scmp.eq.s32.totalorder %s44, 1
      %p287 = por %p285, %p286
      %p289 = scmp.ne.s32.totalorder %s274, %s288
      %p290 = scmp.eq.s32.totalorder %s44, 0
      %p291 = por %p289, %p290
      %s293 = sadd.s32 %s292, 1
      %p296 = scmp.eq.s32.totalorder %s38, 1
      %p297 = scmp.ne.s32.totalorder %s292, %s294
      %p298 = scmp.eq.s32.totalorder %s38, 0
      %p299 = por %p297, %p298
      %p300 = scmp.ne.s32.totalorder %s292, %s294
      %p301 = scmp.eq.s32.totalorder %s43, 1
      %p302 = por %p300, %p301
      %p303 = scmp.ne.s32.totalorder %s294, %s295
      %p304 = scmp.eq.s32.totalorder %s43, 0
      %p305 = por %p303, %p304
      %p306 = scmp.ne.s32.totalorder %s294, %s295
      %p307 = scmp.eq.s32.totalorder %s44, 1
      %p308 = por %p306, %p307
      %p310 = scmp.ne.s32.totalorder %s295, %s309
      %p311 = scmp.eq.s32.totalorder %s44, 0
      %p312 = por %p310, %p311
      %s314 = sadd.s32 %s313, 1
      %p317 = scmp.eq.s32.totalorder %s38, 1
      %p318 = scmp.ne.s32.totalorder %s313, %s315
      %p319 = scmp.eq.s32.totalorder %s38, 0
      %p320 = por %p318, %p319
      %p321 = scmp.ne.s32.totalorder %s313, %s315
      %p322 = scmp.eq.s32.totalorder %s43, 1
      %p323 = por %p321, %p322
      %p324 = scmp.ne.s32.totalorder %s315, %s316
      %p325 = scmp.eq.s32.totalorder %s43, 0
      %p326 = por %p324, %p325
      %p327 = scmp.ne.s32.totalorder %s315, %s316
      %p328 = scmp.eq.s32.totalorder %s44, 1
      %p329 = por %p327, %p328
      %p331 = scmp.ne.s32.totalorder %s316, %s330
      %p332 = scmp.eq.s32.totalorder %s44, 0
      %p333 = por %p331, %p332
      %s335 = sadd.s32 %s334, 1
      %p338 = scmp.eq.s32.totalorder %s38, 1
      %p339 = scmp.ne.s32.totalorder %s334, %s336
      %p340 = scmp.eq.s32.totalorder %s38, 0
      %p341 = por %p339, %p340
      %p342 = scmp.ne.s32.totalorder %s334, %s336
      %p343 = scmp.eq.s32.totalorder %s43, 1
      %p344 = por %p342, %p343
      %p345 = scmp.ne.s32.totalorder %s336, %s337
      %p346 = scmp.eq.s32.totalorder %s43, 0
      %p347 = por %p345, %p346
      %p348 = scmp.ne.s32.totalorder %s336, %s337
      %p349 = scmp.eq.s32.totalorder %s44, 1
      %p350 = por %p348, %p349
      %p352 = scmp.ne.s32.totalorder %s337, %s351
      %p353 = scmp.eq.s32.totalorder %s44, 0
      %p354 = por %p352, %p353
      %s356 = sadd.s32 %s355, 1
      %p359 = scmp.eq.s32.totalorder %s38, 1
      %p360 = scmp.ne.s32.totalorder %s355, %s357
      %p361 = scmp.eq.s32.totalorder %s38, 0
      %p362 = por %p360, %p361
      %p363 = scmp.ne.s32.totalorder %s355, %s357
      %p364 = scmp.eq.s32.totalorder %s43, 1
      %p365 = por %p363, %p364
      %p366 = scmp.ne.s32.totalorder %s357, %s358
      %p367 = scmp.eq.s32.totalorder %s43, 0
      %p368 = por %p366, %p367
      %p369 = scmp.ne.s32.totalorder %s357, %s358
      %p370 = scmp.eq.s32.totalorder %s44, 1
      %p371 = por %p369, %p370
      %p373 = scmp.ne.s32.totalorder %s358, %s372
      %p374 = scmp.eq.s32.totalorder %s44, 0
      %p375 = por %p373, %p374
      %s377 = sadd.s32 %s376, 1
      %p380 = scmp.eq.s32.totalorder %s38, 1
      %p381 = scmp.ne.s32.totalorder %s376, %s378
      %p382 = scmp.eq.s32.totalorder %s38, 0
      %p383 = por %p381, %p382
      %p384 = scmp.ne.s32.totalorder %s376, %s378
      %p385 = scmp.eq.s32.totalorder %s43, 1
      %p386 = por %p384, %p385
      %p387 = scmp.ne.s32.totalorder %s378, %s379
      %p388 = scmp.eq.s32.totalorder %s43, 0
      %p389 = por %p387, %p388
      %p390 = scmp.ne.s32.totalorder %s378, %s379
      %p391 = scmp.eq.s32.totalorder %s44, 1
      %p392 = por %p390, %p391
      %p394 = scmp.ne.s32.totalorder %s379, %s393
      %p395 = scmp.eq.s32.totalorder %s44, 0
      %p396 = por %p394, %p395
      %s398 = sadd.s32 %s397, 1
      %p401 = scmp.eq.s32.totalorder %s38, 1
      %p402 = scmp.ne.s32.totalorder %s397, %s399
      %p403 = scmp.eq.s32.totalorder %s38, 0
      %p404 = por %p402, %p403
      %p405 = scmp.ne.s32.totalorder %s397, %s399
      %p406 = scmp.eq.s32.totalorder %s43, 1
      %p407 = por %p405, %p406
      %p408 = scmp.ne.s32.totalorder %s399, %s400
      %p409 = scmp.eq.s32.totalorder %s43, 0
      %p410 = por %p408, %p409
      %p411 = scmp.ne.s32.totalorder %s399, %s400
      %p412 = scmp.eq.s32.totalorder %s44, 1
      %p413 = por %p411, %p412
      %p415 = scmp.ne.s32.totalorder %s400, %s414
      %p416 = scmp.eq.s32.totalorder %s44, 0
      %p417 = por %p415, %p416
      %s419 = sadd.s32 %s418, 1
      %p422 = scmp.eq.s32.totalorder %s38, 1
      %p423 = scmp.ne.s32.totalorder %s418, %s420
      %p424 = scmp.eq.s32.totalorder %s38, 0
      %p425 = por %p423, %p424
      %p426 = scmp.ne.s32.totalorder %s418, %s420
      %p427 = scmp.eq.s32.totalorder %s43, 1
      %p428 = por %p426, %p427
      %p429 = scmp.ne.s32.totalorder %s420, %s421
      %p430 = scmp.eq.s32.totalorder %s43, 0
      %p431 = por %p429, %p430
      %p432 = scmp.ne.s32.totalorder %s420, %s421
      %p433 = scmp.eq.s32.totalorder %s44, 1
      %p434 = por %p432, %p433
      %p436 = scmp.ne.s32.totalorder %s421, %s435
      %p437 = scmp.eq.s32.totalorder %s44, 0
      %p438 = por %p436, %p437
      %s440 = sadd.s32 %s439, 1
      %p443 = scmp.eq.s32.totalorder %s38, 1
      %p444 = scmp.ne.s32.totalorder %s439, %s441
      %p445 = scmp.eq.s32.totalorder %s38, 0
      %p446 = por %p444, %p445
      %p447 = scmp.ne.s32.totalorder %s439, %s441
      %p448 = scmp.eq.s32.totalorder %s43, 1
      %p449 = por %p447, %p448
      %p450 = scmp.ne.s32.totalorder %s441, %s442
      %p451 = scmp.eq.s32.totalorder %s43, 0
      %p452 = por %p450, %p451
      %p453 = scmp.ne.s32.totalorder %s441, %s442
      %p454 = scmp.eq.s32.totalorder %s44, 1
      %p455 = por %p453, %p454
      %p457 = scmp.ne.s32.totalorder %s442, %s456
      %p458 = scmp.eq.s32.totalorder %s44, 0
      %p459 = por %p457, %p458
      %s461 = sadd.s32 %s460, 1
      %p464 = scmp.eq.s32.totalorder %s38, 1
      %p465 = scmp.ne.s32.totalorder %s460, %s462
      %p466 = scmp.eq.s32.totalorder %s38, 0
      %p467 = por %p465, %p466
      %p468 = scmp.ne.s32.totalorder %s460, %s462
      %p469 = scmp.eq.s32.totalorder %s43, 1
      %p470 = por %p468, %p469
      %p471 = scmp.ne.s32.totalorder %s462, %s463
      %p472 = scmp.eq.s32.totalorder %s43, 0
      %p473 = por %p471, %p472
      %p474 = scmp.ne.s32.totalorder %s462, %s463
      %p475 = scmp.eq.s32.totalorder %s44, 1
      %p476 = por %p474, %p475
      %p478 = scmp.ne.s32.totalorder %s463, %s477
      %p479 = scmp.eq.s32.totalorder %s44, 0
      %p480 = por %p478, %p479
      %s482 = sadd.s32 %s481, 1
      %p485 = scmp.eq.s32.totalorder %s38, 1
      %p486 = scmp.ne.s32.totalorder %s481, %s483
      %p487 = scmp.eq.s32.totalorder %s38, 0
      %p488 = por %p486, %p487
      %p489 = scmp.ne.s32.totalorder %s481, %s483
      %p490 = scmp.eq.s32.totalorder %s43, 1
      %p491 = por %p489, %p490
      %p492 = scmp.ne.s32.totalorder %s483, %s484
      %p493 = scmp.eq.s32.totalorder %s43, 0
      %p494 = por %p492, %p493
      %p495 = scmp.ne.s32.totalorder %s483, %s484
      %p496 = scmp.eq.s32.totalorder %s44, 1
      %p497 = por %p495, %p496
      %p499 = scmp.ne.s32.totalorder %s484, %s498
      %p500 = scmp.eq.s32.totalorder %s44, 0
      %p501 = por %p499, %p500
      %s502 = ssub.s32 %s38, %s45
      %p503 = scmp.eq.s32.totalorder %s502, 0
      %s505 = sadd.s32 %s504, 1
      %s506 = scalar_select %p503, %s504, %s505
      %p509 = pneg %p503
      %p510 = scmp.eq.s32.totalorder %s38, 1
      %p511 = por %p509, %p510
      %p512 = scmp.ne.s32.totalorder %s504, %s507
      %p513 = scmp.eq.s32.totalorder %s38, 0
      %p514 = por %p512, %p513
      %p515 = scmp.ne.s32.totalorder %s504, %s507
      %p516 = scmp.eq.s32.totalorder %s43, 1
      %p517 = por %p515, %p516
      %p518 = scmp.ne.s32.totalorder %s507, %s508
      %p519 = scmp.eq.s32.totalorder %s43, 0
      %p520 = por %p518, %p519
      %p521 = scmp.ne.s32.totalorder %s507, %s508
      %p522 = scmp.eq.s32.totalorder %s44, 1
      %p523 = por %p521, %p522
      %p525 = scmp.ne.s32.totalorder %s508, %s524
      %p526 = scmp.eq.s32.totalorder %s44, 0
      %p527 = por %p525, %p526
      %s528 = ssub.s32 %s38, %s45
      %p529 = scmp.eq.s32.totalorder %s528, 0
      %s531 = sadd.s32 %s530, 1
      %s532 = scalar_select %p529, %s530, %s531
      %p535 = pneg %p529
      %p536 = scmp.eq.s32.totalorder %s38, 1
      %p537 = por %p535, %p536
      %p538 = scmp.ne.s32.totalorder %s530, %s533
      %p539 = scmp.eq.s32.totalorder %s38, 0
      %p540 = por %p538, %p539
      %p541 = scmp.ne.s32.totalorder %s530, %s533
      %p542 = scmp.eq.s32.totalorder %s43, 1
      %p543 = por %p541, %p542
      %p544 = scmp.ne.s32.totalorder %s533, %s534
      %p545 = scmp.eq.s32.totalorder %s43, 0
      %p546 = por %p544, %p545
      %p547 = scmp.ne.s32.totalorder %s533, %s534
      %p548 = scmp.eq.s32.totalorder %s44, 1
      %p549 = por %p547, %p548
      %p551 = scmp.ne.s32.totalorder %s534, %s550
      %p552 = scmp.eq.s32.totalorder %s44, 0
      %p553 = por %p551, %p552
      %p554 = scmp.le.s32.totalorder 1, %s38
      %p555 = scmp.lt.s32.totalorder %s38, 3
      %p556 = pnand %p554, %p555
      %p557 = pneg %p556
      // Predicated region
      $region9: #{sobe_block_forward.1} parent=5 // pred_check
        _
      $region10: #{sobe_block_forward.1} parent=5 // pred_check_branch
        %559 = sbr.rel (%p556) target = $region12
      $region11: #{sobe_block_forward.1} parent=5 // pred_region
        %s560 = ssub.s32 %s38, 1
        // Predicated region
        $region13: #{sobe_block_forward.1} parent=11 // pred_check
          %p561 = pneg %p59
        $region14: #{sobe_block_forward.1} parent=11 // pred_check_branch
          %563 = sbr.rel (%p561) target = $region16
        $region15: #{sobe_block_forward.1} parent=11 // pred_region
          %s565 = ssub.s32 16, 16
          %566 = vsyncadd [#allocation8], %s565
          %s568 = sshll.u32 %s0, 4
          %s569 = int_to_ptr.vmem [resolvable:$true] %s568
          %571 = dma.vmem_to_smem %s569, 16, [#allocation5], [#allocation8]
        $region16: #{sobe_block_forward.1} parent=11 // pred_fallthru
          _
        // Predicated region
        $region17: #{sobe_block_forward.1} parent=11 // pred_check
          %p572 = pneg %p158
        $region18: #{sobe_block_forward.1} parent=11 // pred_check_branch
          %574 = sbr.rel (%p572) target = $region20
        $region19: #{sobe_block_forward.1} parent=11 // pred_region
          _
        $region20: #{sobe_block_forward.1} parent=11 // pred_fallthru
          _
        // Predicated region
        $region21: #{sobe_block_forward.1} parent=11 // pred_check
          %p575 = pneg %p179
        $region22: #{sobe_block_forward.1} parent=11 // pred_check_branch
          %577 = sbr.rel (%p575) target = $region24
        $region23: #{sobe_block_forward.1} parent=11 // pred_region
          %s579 = ssub.s32 16, 16
          %580 = vsyncadd [#allocation6], %s579
          %s582 = sshll.u32 [#allocation9], 4
          %s583 = int_to_ptr.vmem [resolvable:$true] %s582
          %585 = dma.hbm_to_vmem [thread:$0]  %s5, 16, %s583, [#allocation6]
        $region24: #{sobe_block_forward.1} parent=11 // pred_fallthru
          _
        // Predicated region
        $region25: #{sobe_block_forward.1} parent=11 // pred_check
          %p586 = pneg %p200
        $region26: #{sobe_block_forward.1} parent=11 // pred_check_branch
          %588 = sbr.rel (%p586) target = $region28
        $region27: #{sobe_block_forward.1} parent=11 // pred_region
          _
        $region28: #{sobe_block_forward.1} parent=11 // pred_fallthru
          _
        // Predicated region
        $region29: #{sobe_block_forward.1} parent=11 // pred_check
          %p589 = pneg %p221
        $region30: #{sobe_block_forward.1} parent=11 // pred_check_branch
          %591 = sbr.rel (%p589) target = $region32
        $region31: #{sobe_block_forward.1} parent=11 // pred_region
          %s593 = ssub.s32 16, 16
          %594 = vsyncadd [#allocation11], %s593
          %s596 = sshll.u32 [#allocation10], 4
          %s597 = int_to_ptr.vmem [resolvable:$true] %s596
          %599 = dma.hbm_to_vmem [thread:$0]  %s7, 16, %s597, [#allocation11]
        $region32: #{sobe_block_forward.1} parent=11 // pred_fallthru
          _
        // Predicated region
        $region33: #{sobe_block_forward.1} parent=11 // pred_check
          %p600 = pneg %p242
        $region34: #{sobe_block_forward.1} parent=11 // pred_check_branch
          %602 = sbr.rel (%p600) target = $region36
        $region35: #{sobe_block_forward.1} parent=11 // pred_region
          _
        $region36: #{sobe_block_forward.1} parent=11 // pred_fallthru
          _
        // Predicated region
        $region37: #{sobe_block_forward.1} parent=11 // pred_check
          %p603 = pneg %p263
        $region38: #{sobe_block_forward.1} parent=11 // pred_check_branch
          %605 = sbr.rel (%p603) target = $region40
        $region39: #{sobe_block_forward.1} parent=11 // pred_region
          %s607 = ssub.s32 16, 16
          %608 = vsyncadd [#allocation11], %s607
          %s610 = sshll.u32 [#allocation12], 4
          %s611 = int_to_ptr.vmem [resolvable:$true] %s610
          %613 = dma.hbm_to_vmem [thread:$0]  %s9, 16, %s611, [#allocation11]
        $region40: #{sobe_block_forward.1} parent=11 // pred_fallthru
          _
        // Predicated region
        $region41: #{sobe_block_forward.1} parent=11 // pred_check
          %p614 = pneg %p284
        $region42: #{sobe_block_forward.1} parent=11 // pred_check_branch
          %616 = sbr.rel (%p614) target = $region44
        $region43: #{sobe_block_forward.1} parent=11 // pred_region
          _
        $region44: #{sobe_block_forward.1} parent=11 // pred_fallthru
          _
        // Predicated region
        $region45: #{sobe_block_forward.1} parent=11 // pred_check
          %p617 = pneg %p305
        $region46: #{sobe_block_forward.1} parent=11 // pred_check_branch
          %619 = sbr.rel (%p617) target = $region48
        $region47: #{sobe_block_forward.1} parent=11 // pred_region
          %s621 = ssub.s32 16, 16
          %622 = vsyncadd [#allocation14], %s621
          %s624 = sshll.u32 [#allocation13], 4
          %s625 = int_to_ptr.vmem [resolvable:$true] %s624
          %627 = dma.hbm_to_vmem [thread:$0]  %s11, 16, %s625, [#allocation14]
        $region48: #{sobe_block_forward.1} parent=11 // pred_fallthru
          _
        // Predicated region
        $region49: #{sobe_block_forward.1} parent=11 // pred_check
          %p628 = pneg %p326
        $region50: #{sobe_block_forward.1} parent=11 // pred_check_branch
          %630 = sbr.rel (%p628) target = $region52
        $region51: #{sobe_block_forward.1} parent=11 // pred_region
          _
        $region52: #{sobe_block_forward.1} parent=11 // pred_fallthru
          _
        // Predicated region
        $region53: #{sobe_block_forward.1} parent=11 // pred_check
          %p631 = pneg %p347
        $region54: #{sobe_block_forward.1} parent=11 // pred_check_branch
          %633 = sbr.rel (%p631) target = $region56
        $region55: #{sobe_block_forward.1} parent=11 // pred_region
          %s635 = ssub.s32 16, 16
          %636 = vsyncadd [#allocation14], %s635
          %s638 = sshll.u32 [#allocation15], 4
          %s639 = int_to_ptr.vmem [resolvable:$true] %s638
          %641 = dma.hbm_to_vmem [thread:$0]  %s13, 16, %s639, [#allocation14]
        $region56: #{sobe_block_forward.1} parent=11 // pred_fallthru
          _
        // Predicated region
        $region57: #{sobe_block_forward.1} parent=11 // pred_check
          %p642 = pneg %p368
        $region58: #{sobe_block_forward.1} parent=11 // pred_check_branch
          %644 = sbr.rel (%p642) target = $region60
        $region59: #{sobe_block_forward.1} parent=11 // pred_region
          _
        $region60: #{sobe_block_forward.1} parent=11 // pred_fallthru
          _
        // Predicated region
        $region61: #{sobe_block_forward.1} parent=11 // pred_check
          %p645 = pneg %p389
        $region62: #{sobe_block_forward.1} parent=11 // pred_check_branch
          %647 = sbr.rel (%p645) target = $region64
        $region63: #{sobe_block_forward.1} parent=11 // pred_region
          %s649 = ssub.s32 6912, 6912
          %650 = vsyncadd [#allocation17], %s649
          %s651 = sshll.u32 [#allocation16], 4
          %s652 = int_to_ptr.vmem [resolvable:$true] %s651
          %657 = dma.hbm_to_vmem [thread:$0]  %s15, 6912, %s652, [#allocation17], 128, 128, 8
        $region64: #{sobe_block_forward.1} parent=11 // pred_fallthru
          _
        // Predicated region
        $region65: #{sobe_block_forward.1} parent=11 // pred_check
          %p658 = pneg %p410
        $region66: #{sobe_block_forward.1} parent=11 // pred_check_branch
          %660 = sbr.rel (%p658) target = $region68
        $region67: #{sobe_block_forward.1} parent=11 // pred_region
          %s662 = ssub.s32 16, 16
          %663 = vsyncadd [#allocation17], %s662
          %s665 = sshll.u32 [#allocation18], 4
          %s666 = int_to_ptr.vmem [resolvable:$true] %s665
          %668 = dma.hbm_to_vmem [thread:$0]  %s16, 16, %s666, [#allocation17]
        $region68: #{sobe_block_forward.1} parent=11 // pred_fallthru
          _
        // Predicated region
        $region69: #{sobe_block_forward.1} parent=11 // pred_check
          %p669 = pneg %p431
        $region70: #{sobe_block_forward.1} parent=11 // pred_check_branch
          %671 = sbr.rel (%p669) target = $region72
        $region71: #{sobe_block_forward.1} parent=11 // pred_region
          _
        $region72: #{sobe_block_forward.1} parent=11 // pred_fallthru
          _
        // Predicated region
        $region73: #{sobe_block_forward.1} parent=11 // pred_check
          %p672 = pneg %p452
        $region74: #{sobe_block_forward.1} parent=11 // pred_check_branch
          %674 = sbr.rel (%p672) target = $region76
        $region75: #{sobe_block_forward.1} parent=11 // pred_region
          _
        $region76: #{sobe_block_forward.1} parent=11 // pred_fallthru
          _
        // Predicated region
        $region77: #{sobe_block_forward.1} parent=11 // pred_check
          %p675 = pneg %p473
        $region78: #{sobe_block_forward.1} parent=11 // pred_check_branch
          %677 = sbr.rel (%p675) target = $region80
        $region79: #{sobe_block_forward.1} parent=11 // pred_region
          %s679 = ssub.s32 1024, 1024
          %680 = vsyncadd [#allocation20], %s679
          %s681 = sshll.u32 [#allocation19], 4
          %s682 = int_to_ptr.vmem [resolvable:$true] %s681
          %687 = dma.hbm_to_vmem [thread:$0]  %s19, 1024, %s682, [#allocation20], 128, 128, 8
        $region80: #{sobe_block_forward.1} parent=11 // pred_fallthru
          _
        // Predicated region
        $region81: #{sobe_block_forward.1} parent=11 // pred_check
          %p688 = pneg %p494
        $region82: #{sobe_block_forward.1} parent=11 // pred_check_branch
          %690 = sbr.rel (%p688) target = $region84
        $region83: #{sobe_block_forward.1} parent=11 // pred_region
          %s692 = ssub.s32 128, 128
          %693 = vsyncadd [#allocation20], %s692
          %s695 = sshll.u32 [#allocation21], 4
          %s696 = int_to_ptr.vmem [resolvable:$true] %s695
          %698 = dma.hbm_to_vmem [thread:$0]  %s20, 128, %s696, [#allocation20]
        $region84: #{sobe_block_forward.1} parent=11 // pred_fallthru
          _
      $region12: #{sobe_block_forward.1} parent=5 // pred_fallthru
        _
      %p699 = scmp.lt.s32.totalorder %s38, 2
      // Predicated region
      $region85: #{sobe_block_forward.1} parent=5 // pred_check
        %p700 = pneg %p699
      $region86: #{sobe_block_forward.1} parent=5 // pred_check_branch
        %702 = sbr.rel (%p700) target = $region88
      $region87: #{sobe_block_forward.1} parent=5 // pred_region
        // Predicated region
        $region89: #{sobe_block_forward.1} parent=87 // pred_check
          %p703 = pneg %p79
        $region90: #{sobe_block_forward.1} parent=87 // pred_check_branch
          %705 = sbr.rel (%p703) target = $region92
        $region91: #{sobe_block_forward.1} parent=87 // pred_region
          %p706 = scmp.lt.s32.totalorder %s38, 1
          %s707 = scalar_select %p706, %s38, 1
          %s708 = smul.addr %s707, 2
          %s709 = smul.addr %s708, 8
          %s710 = scalar_lea.vmem %s1, %s709
        $region92: #{sobe_block_forward.1} parent=87 // pred_fallthru
          _
        // Predicated region
        $region93: #{sobe_block_forward.1} parent=87 // pred_check
          %p711 = pneg %p105
        $region94: #{sobe_block_forward.1} parent=87 // pred_check_branch
          %713 = sbr.rel (%p711) target = $region96
        $region95: #{sobe_block_forward.1} parent=87 // pred_region
          %p714 = scmp.lt.s32.totalorder %s38, 1
          %s715 = scalar_select %p714, %s38, 1
          %s716 = smul.addr %s715, 8
          %s717 = scalar_lea.vmem %s2, %s716
        $region96: #{sobe_block_forward.1} parent=87 // pred_fallthru
          _
        // Predicated region
        $region97: #{sobe_block_forward.1} parent=87 // pred_check
          %p718 = pneg %p131
        $region98: #{sobe_block_forward.1} parent=87 // pred_check_branch
          %720 = sbr.rel (%p718) target = $region100
        $region99: #{sobe_block_forward.1} parent=87 // pred_region
          %p721 = scmp.lt.s32.totalorder %s38, 1
          %s722 = scalar_select %p721, %s38, 1
          %s723 = smul.addr %s722, 8
          %s724 = scalar_lea.vmem %s3, %s723
        $region100: #{sobe_block_forward.1} parent=87 // pred_fallthru
          _
      $region88: #{sobe_block_forward.1} parent=5 // pred_fallthru
        _
      %p725 = scmp.le.s32.totalorder 1, %s38
      %p726 = scmp.lt.s32.totalorder %s38, 3
      %p727 = pnand %p725, %p726
      %p728 = pneg %p727
      // Predicated region
      $region101: #{sobe_block_forward.1} parent=5 // pred_check
        _
      $region102: #{sobe_block_forward.1} parent=5 // pred_check_branch
        %730 = sbr.rel (%p727) target = $region104
      $region103: #{sobe_block_forward.1} parent=5 // pred_region
        %s731 = ssub.s32 %s38, 1
        // Predicated region
        $region105: #{sobe_block_forward.1} parent=103 // pred_check
          %p732 = pneg %p59
        $region106: #{sobe_block_forward.1} parent=103 // pred_check_branch
          %734 = sbr.rel (%p732) target = $region108
        $region107: #{sobe_block_forward.1} parent=103 // pred_region
          %735 = dma.done [#allocation8], 16
        $region108: #{sobe_block_forward.1} parent=103 // pred_fallthru
          _
        // Predicated region
        $region109: #{sobe_block_forward.1} parent=103 // pred_check
          %p736 = pneg %p179
        $region110: #{sobe_block_forward.1} parent=103 // pred_check_branch
          %738 = sbr.rel (%p736) target = $region112
        $region111: #{sobe_block_forward.1} parent=103 // pred_region
          %739 = dma.done [#allocation6], 16
        $region112: #{sobe_block_forward.1} parent=103 // pred_fallthru
          _
        // Predicated region
        $region113: #{sobe_block_forward.1} parent=103 // pred_check
          %p740 = pneg %p221
        $region114: #{sobe_block_forward.1} parent=103 // pred_check_branch
          %742 = sbr.rel (%p740) target = $region116
        $region115: #{sobe_block_forward.1} parent=103 // pred_region
          %743 = dma.done [#allocation11], 16
        $region116: #{sobe_block_forward.1} parent=103 // pred_fallthru
          _
        // Predicated region
        $region117: #{sobe_block_forward.1} parent=103 // pred_check
          %p744 = pneg %p263
        $region118: #{sobe_block_forward.1} parent=103 // pred_check_branch
          %746 = sbr.rel (%p744) target = $region120
        $region119: #{sobe_block_forward.1} parent=103 // pred_region
          %747 = dma.done [#allocation11], 16
        $region120: #{sobe_block_forward.1} parent=103 // pred_fallthru
          _
        // Predicated region
        $region121: #{sobe_block_forward.1} parent=103 // pred_check
          %p748 = pneg %p305
        $region122: #{sobe_block_forward.1} parent=103 // pred_check_branch
          %750 = sbr.rel (%p748) target = $region124
        $region123: #{sobe_block_forward.1} parent=103 // pred_region
          %751 = dma.done [#allocation14], 16
        $region124: #{sobe_block_forward.1} parent=103 // pred_fallthru
          _
        // Predicated region
        $region125: #{sobe_block_forward.1} parent=103 // pred_check
          %p752 = pneg %p347
        $region126: #{sobe_block_forward.1} parent=103 // pred_check_branch
          %754 = sbr.rel (%p752) target = $region128
        $region127: #{sobe_block_forward.1} parent=103 // pred_region
          %755 = dma.done [#allocation14], 16
        $region128: #{sobe_block_forward.1} parent=103 // pred_fallthru
          _
        // Predicated region
        $region129: #{sobe_block_forward.1} parent=103 // pred_check
          %p756 = pneg %p389
        $region130: #{sobe_block_forward.1} parent=103 // pred_check_branch
          %758 = sbr.rel (%p756) target = $region132
        $region131: #{sobe_block_forward.1} parent=103 // pred_region
          %759 = dma.done [#allocation17], 6912
        $region132: #{sobe_block_forward.1} parent=103 // pred_fallthru
          _
        // Predicated region
        $region133: #{sobe_block_forward.1} parent=103 // pred_check
          %p760 = pneg %p410
        $region134: #{sobe_block_forward.1} parent=103 // pred_check_branch
          %762 = sbr.rel (%p760) target = $region136
        $region135: #{sobe_block_forward.1} parent=103 // pred_region
          %763 = dma.done [#allocation17], 16
        $region136: #{sobe_block_forward.1} parent=103 // pred_fallthru
          _
        // Predicated region
        $region137: #{sobe_block_forward.1} parent=103 // pred_check
          %p764 = pneg %p473
        $region138: #{sobe_block_forward.1} parent=103 // pred_check_branch
          %766 = sbr.rel (%p764) target = $region140
        $region139: #{sobe_block_forward.1} parent=103 // pred_region
          %767 = dma.done [#allocation20], 1024
        $region140: #{sobe_block_forward.1} parent=103 // pred_fallthru
          _
        // Predicated region
        $region141: #{sobe_block_forward.1} parent=103 // pred_check
          %p768 = pneg %p494
        $region142: #{sobe_block_forward.1} parent=103 // pred_check_branch
          %770 = sbr.rel (%p768) target = $region144
        $region143: #{sobe_block_forward.1} parent=103 // pred_region
          %771 = dma.done [#allocation20], 128
        $region144: #{sobe_block_forward.1} parent=103 // pred_fallthru
          _
        %772 = sfence
        %p773 = pneg %p59
        %p774 = pneg %p56
        %p775 = scmp.lt.s32.totalorder %s43, 1
        %s776 = scalar_select %p775, %s43, 1
        %s777 = smul.addr %s776, 2
        %s778 = smul.addr %s777, 8
        %s779 = scalar_lea.vmem %s1, %s778
        %p780 = pneg %p85
        %p781 = pneg %p82
        %p782 = scmp.lt.s32.totalorder %s43, 1
        %s783 = scalar_select %p782, %s43, 1
        %s784 = smul.addr %s783, 8
        %s785 = scalar_lea.vmem %s2, %s784
        %p786 = pneg %p111
        %p787 = pneg %p108
        %p788 = scmp.lt.s32.totalorder %s43, 1
        %s789 = scalar_select %p788, %s43, 1
        %s790 = smul.addr %s789, 8
        %s791 = scalar_lea.vmem %s3, %s790
        %p792 = pneg %p137
        %p793 = pneg %p134
        %p794 = pneg %p158
        %p795 = pneg %p155
        %p796 = pneg %p179
        %p797 = pneg %p176
        %p798 = pneg %p200
        %p799 = pneg %p197
        %p800 = pneg %p221
        %p801 = pneg %p218
        %p802 = pneg %p242
        %p803 = pneg %p239
        %p804 = pneg %p263
        %p805 = pneg %p260
        %p806 = pneg %p284
        %p807 = pneg %p281
        %p808 = pneg %p305
        %p809 = pneg %p302
        %p810 = pneg %p326
        %p811 = pneg %p323
        %p812 = pneg %p347
        %p813 = pneg %p344
        %p814 = pneg %p368
        %p815 = pneg %p365
        %p816 = pneg %p389
        %p817 = pneg %p386
        %p818 = pneg %p410
        %p819 = pneg %p407
        %p820 = pneg %p431
        %p821 = pneg %p428
        %p822 = pneg %p452
        %p823 = pneg %p449
        %p824 = pneg %p473
        %p825 = pneg %p470
        %p826 = pneg %p494
        %p827 = pneg %p491
        %p828 = pneg %p520
        %p829 = pneg %p517
        %p830 = scmp.lt.s32.totalorder %s43, 1
        %s831 = scalar_select %p830, %s43, 1
        %s832 = smul.addr %s831, 2
        %s833 = smul.addr %s832, 8
        %s834 = scalar_lea.vmem %s21, %s833
        %p835 = pneg %p546
        %p836 = pneg %p543
        %s837 = sand.u32 %s533, 1
        %s838 = scalar_lea.sflag [#allocation7], %s837
        %s839 = sand.u32 %s533, 1
        %s840 = smul.addr %s839, 16
        %s841 = scalar_lea.vmem [#allocation22], %s840
        %p842 = scmp.lt.s32.totalorder %s43, 1
        %s843 = scalar_select %p842, %s43, 1
        %s844 = smul.addr %s843, 2
        %s845 = smul.addr %s844, 8
        %s846 = scalar_lea.vmem %s1, %s845
        %p847 = scmp.lt.s32.totalorder %s43, 1
        %s848 = scalar_select %p847, %s43, 1
        %s849 = smul.addr %s848, 8
        %s850 = scalar_lea.vmem %s2, %s849
        %p851 = scmp.lt.s32.totalorder %s43, 1
        %s852 = scalar_select %p851, %s43, 1
        %s853 = smul.addr %s852, 8
        %s854 = scalar_lea.vmem %s3, %s853
        %p855 = scmp.lt.s32.totalorder %s43, 1
        %s856 = scalar_select %p855, %s43, 1
        %s857 = smul.addr %s856, 2
        %s858 = smul.addr %s857, 8
        %s859 = scalar_lea.vmem %s21, %s858
        %s860 = sld [smem:[#allocation5]]
        %s861 = sld [smem:[#allocation5 + $0x1]]
        %s862 = sld [smem:[#allocation5 + $0x2]]
        %p863 = scmp.eq.s32.totalorder %s43, 0
        // Predicated region
        $region145: #{sobe_block_forward.1} parent=103 // pred_check
          %p864 = pneg %p863
        $region146: #{sobe_block_forward.1} parent=103 // pred_check_branch
          %866 = sbr.rel (%p864) target = $region148
        $region147: #{sobe_block_forward.1} parent=103 // pred_region
          %vm867 = vcmask 457728
          %868 = vst.msk [vmem:[#allocation2] sm:$0xff] %vm867, 0.0
          %vm869 = vcmask 455680
          %870 = vst.msk [vmem:[#allocation2 + $0x8] sm:$0x3f] %vm869, 0.0
          %871 = vst [vmem:[#allocation3] sm:$0xff] 0.0
          %vm872 = vcmask 130048
          %873 = vst.msk [vmem:[#allocation3 + $0x8] sm:$0xff] %vm872, 0.0
          %874 = vst [vmem:[#allocation3 + $0x10] sm:$0xff] 0.0
          %875 = vst.msk [vmem:[#allocation3 + $0x18] sm:$0xff] %vm872, 0.0
          %876 = vst [vmem:[#allocation3 + $0x20] sm:$0x3] 0.0
          %vm877 = vcmask 123904
          %878 = vst.msk [vmem:[#allocation3 + $0x28] sm:$0x3] %vm877, 0.0
          %879 = vst [vmem:[#allocation4] sm:$0xff] 0.0
          %vm880 = vcmask 392192
          %881 = vst.msk [vmem:[#allocation4 + $0x8] sm:$0xff] %vm880, 0.0
          %882 = vst [vmem:[#allocation4 + $0x10] sm:$0xff] 0.0
          %883 = vst.msk [vmem:[#allocation4 + $0x18] sm:$0xff] %vm880, 0.0
          %884 = vst [vmem:[#allocation4 + $0x20] sm:$0x3f] 0.0
          %vm885 = vcmask 390144
          %886 = vst.msk [vmem:[#allocation4 + $0x28] sm:$0x3f] %vm885, 0.0
        $region148: #{sobe_block_forward.1} parent=103 // pred_fallthru
          _
        %v887 = vld [vmem:[%s846] sm:$0xff]
        %v888 = vld [vmem:[%s846 + $0x8] sm:$0xff]
        %v889 = vld [vmem:[%s850] sm:$0xff]
        %v890 = vld [vmem:[#allocation9] sm:$0x1]
        %892 = vrot.lane.b32.xlu0 %v889, 12
        %v893 = vpop.permute.xlu0 %892
        %vm895 = vcmask 359520
        %896 = vst.msk [vmem:[#allocation2 + $0x3] sm:$0xff] %vm895, %v893
        %v897 = vld [vmem:[#allocation2] sm:$0xff]
        %v898 = vld [vmem:[%s4] sm:$0xff]
        %v899 = vld [vmem:[%s4 + $0x8] sm:$0xff]
        %v900 = vld [vmem:[%s4 + $0x10] sm:$0xff]
        %v901 = vld [vmem:[%s4 + $0x18] sm:$0xff]
        %v902 = vld [vmem:[%s4 + $0x20] sm:$0xff]
        %v903 = vld [vmem:[%s4 + $0x28] sm:$0xff]
        %v904 = vld [vmem:[%s4 + $0x30] sm:$0xff]
        %v905 = vld [vmem:[#allocation2 + $0x1] sm:$0xff]
        %s906 = scalar_lea.vmem %s4, 56
        %v907 = vld [vmem:[%s906] sm:$0xff]
        %v908 = vld [vmem:[%s906 + $0x8] sm:$0xff]
        %v909 = vld [vmem:[%s906 + $0x10] sm:$0xff]
        %v910 = vld [vmem:[%s906 + $0x18] sm:$0xff]
        %v911 = vld [vmem:[%s906 + $0x20] sm:$0xff]
        %v912 = vld [vmem:[%s906 + $0x28] sm:$0xff]
        %v913 = vld [vmem:[%s906 + $0x30] sm:$0xff]
        %vm914 = vcmask 457728
        %v916 = vsel %vm914, %v905, 0
        %918 = vmatprep.subr.mxu0 0.0
        %919 = vmatpush1.msra.mxu0 %v907
        %920 = vmatprep.subr.mxu0 0.0
        %921 = vmatpush1.msra.mxu0 %v908
        %922 = vmatprep.subr.mxu0 0.0
        %923 = vmatpush1.msra.mxu0 %v909
        %924 = vmatprep.subr.mxu0 0.0
        %925 = vmatpush1.msra.mxu0 %v910
        %926 = vmatprep.subr.mxu0 0.0
        %927 = vmatpush1.msra.mxu0 %v911
        %928 = vmatprep.subr.mxu0 0.0
        %929 = vmatpush1.msra.mxu0 %v912
        %930 = vmatprep.subr.mxu0 0.0
        %931 = vmatpush1.msra.mxu0 %v913
        %932 = vmatprep.subr.mxu0 0.0
        %933 = vmatpush1.msra.mxu0 0.0
        %934 = vmatprep.subr.mxu0 0.0
        %935 = vmatpush1.msra.mxu0 0.0
        %936 = vmatprep.subr.mxu0 0.0
        %937 = vmatpush1.msra.mxu0 0.0
        %938 = vmatprep.subr.mxu0 0.0
        %939 = vmatpush1.msra.mxu0 0.0
        %940 = vmatprep.subr.mxu0 0.0
        %941 = vmatpush1.msra.mxu0 0.0
        %942 = vmatprep.subr.mxu0 0.0
        %943 = vmatpush1.msra.mxu0 0.0
        %944 = vmatprep.subr.mxu0 0.0
        %945 = vmatpush1.msra.mxu0 0.0
        %946 = vmatprep.subr.mxu0 0.0
        %947 = vmatpush1.msra.mxu0 0.0
        %948 = vmatprep.subr.mxu0 0.0
        %949 = vmatpush1.msra.mxu0 0.0
        %950 = vmatprep.subr.mxu0 0.0
        %951 = vmatpush1.msra.mxu0 0.0
        %952 = vmatprep.subr.mxu0 0.0
        %953 = vmatpush1.msra.mxu0 0.0
        %954 = vmatprep.subr.mxu0 0.0
        %955 = vmatpush1.msra.mxu0 0.0
        %956 = vmatprep.subr.mxu0 0.0
        %957 = vmatpush1.msra.mxu0 0.0
        %958 = vmatprep.subr.mxu0 0.0
        %959 = vmatpush1.msra.mxu0 0.0
        %960 = vmatprep.subr.mxu0 0.0
        %961 = vmatpush1.msra.mxu0 0.0
        %962 = vmatprep.subr.mxu0 0.0
        %963 = vmatpush1.msra.mxu0 0.0
        %964 = vmatprep.subr.mxu0 0.0
        %965 = vmatpush1.msra.mxu0 0.0
        %966 = vmatprep.subr.mxu0 0.0
        %967 = vmatpush1.msra.mxu0 0.0
        %968 = vmatprep.subr.mxu0 0.0
        %969 = vmatpush1.msra.mxu0 0.0
        %970 = vmatprep.subr.mxu0 0.0
        %971 = vmatpush1.msra.mxu0 0.0
        %972 = vmatprep.subr.mxu0 0.0
        %973 = vmatpush1.msra.mxu0 0.0
        %974 = vmatprep.subr.mxu0 0.0
        %975 = vmatpush1.msra.mxu0 0.0
        %976 = vmatprep.subr.mxu0 0.0
        %977 = vmatpush1.msra.mxu0 0.0
        %978 = vmatprep.subr.mxu0 0.0
        %979 = vmatpush1.msra.mxu0 0.0
        %980 = vmatprep.subr.mxu0 0.0
        %981 = vmatpush1.msra.mxu0 0.0
        %982 = vmatprep.mubr.f32.mxu0 0.0
        %983 = vmatmul.mubr.f32.gmra.mrb[0].mxu0 %v916
        %v984 = vpop.f32.mrb[0].mxu0
        %v985 = vadd.f32 0.0, %v984
        %v986 = vpop.f32.mrb[0].mxu0
        %987 = vdwg.mxu0
        %v989 = vsel %vm914, %v897, 0
        %991 = vmatprep.subr.mxu0 0.0
        %992 = vmatpush1.msra.mxu0 %v898
        %993 = vmatprep.subr.mxu0 0.0
        %994 = vmatpush1.msra.mxu0 %v899
        %995 = vmatprep.subr.mxu0 0.0
        %996 = vmatpush1.msra.mxu0 %v900
        %997 = vmatprep.subr.mxu0 0.0
        %998 = vmatpush1.msra.mxu0 %v901
        %999 = vmatprep.subr.mxu0 0.0
        %1000 = vmatpush1.msra.mxu0 %v902
        %1001 = vmatprep.subr.mxu0 0.0
        %1002 = vmatpush1.msra.mxu0 %v903
        %1003 = vmatprep.subr.mxu0 0.0
        %1004 = vmatpush1.msra.mxu0 %v904
        %1005 = vmatprep.subr.mxu0 0.0
        %1006 = vmatpush1.msra.mxu0 0.0
        %1007 = vmatprep.subr.mxu0 0.0
        %1008 = vmatpush1.msra.mxu0 0.0
        %1009 = vmatprep.subr.mxu0 0.0
        %1010 = vmatpush1.msra.mxu0 0.0
        %1011 = vmatprep.subr.mxu0 0.0
        %1012 = vmatpush1.msra.mxu0 0.0
        %1013 = vmatprep.subr.mxu0 0.0
        %1014 = vmatpush1.msra.mxu0 0.0
        %1015 = vmatprep.subr.mxu0 0.0
        %1016 = vmatpush1.msra.mxu0 0.0
        %1017 = vmatprep.subr.mxu0 0.0
        %1018 = vmatpush1.msra.mxu0 0.0
        %1019 = vmatprep.subr.mxu0 0.0
        %1020 = vmatpush1.msra.mxu0 0.0
        %1021 = vmatprep.subr.mxu0 0.0
        %1022 = vmatpush1.msra.mxu0 0.0
        %1023 = vmatprep.subr.mxu0 0.0
        %1024 = vmatpush1.msra.mxu0 0.0
        %1025 = vmatprep.subr.mxu0 0.0
        %1026 = vmatpush1.msra.mxu0 0.0
        %1027 = vmatprep.subr.mxu0 0.0
        %1028 = vmatpush1.msra.mxu0 0.0
        %1029 = vmatprep.subr.mxu0 0.0
        %1030 = vmatpush1.msra.mxu0 0.0
        %1031 = vmatprep.subr.mxu0 0.0
        %1032 = vmatpush1.msra.mxu0 0.0
        %1033 = vmatprep.subr.mxu0 0.0
        %1034 = vmatpush1.msra.mxu0 0.0
        %1035 = vmatprep.subr.mxu0 0.0
        %1036 = vmatpush1.msra.mxu0 0.0
        %1037 = vmatprep.subr.mxu0 0.0
        %1038 = vmatpush1.msra.mxu0 0.0
        %1039 = vmatprep.subr.mxu0 0.0
        %1040 = vmatpush1.msra.mxu0 0.0
        %1041 = vmatprep.subr.mxu0 0.0
        %1042 = vmatpush1.msra.mxu0 0.0
        %1043 = vmatprep.subr.mxu0 0.0
        %1044 = vmatpush1.msra.mxu0 0.0
        %1045 = vmatprep.subr.mxu0 0.0
        %1046 = vmatpush1.msra.mxu0 0.0
        %1047 = vmatprep.subr.mxu0 0.0
        %1048 = vmatpush1.msra.mxu0 0.0
        %1049 = vmatprep.subr.mxu0 0.0
        %1050 = vmatpush1.msra.mxu0 0.0
        %1051 = vmatprep.subr.mxu0 0.0
        %1052 = vmatpush1.msra.mxu0 0.0
        %1053 = vmatprep.subr.mxu0 0.0
        %1054 = vmatpush1.msra.mxu0 0.0
        %1055 = vmatprep.mubr.f32.mxu0 0.0
        %1056 = vmatmul.mubr.f32.gmra.mrb[0].mxu0 %v989
        %v1057 = vpop.f32.mrb[0].mxu0
        %v1058 = vadd.f32 %v985, %v1057
        %v1059 = vpop.f32.mrb[0].mxu0
        %1060 = vdwg.mxu0
        %v1061 = vld [vmem:[#allocation2 + $0x2] sm:$0xff]
        %s1062 = scalar_lea.vmem %s4, 112
        %v1063 = vld [vmem:[%s1062] sm:$0xff]
        %v1064 = vld [vmem:[%s1062 + $0x8] sm:$0xff]
        %v1065 = vld [vmem:[%s1062 + $0x10] sm:$0xff]
        %v1066 = vld [vmem:[%s1062 + $0x18] sm:$0xff]
        %v1067 = vld [vmem:[%s1062 + $0x20] sm:$0xff]
        %v1068 = vld [vmem:[%s1062 + $0x28] sm:$0xff]
        %v1069 = vld [vmem:[%s1062 + $0x30] sm:$0xff]
        %v1071 = vsel %vm914, %v1061, 0
        %1073 = vmatprep.subr.mxu0 0.0
        %1074 = vmatpush1.msra.mxu0 %v1063
        %1075 = vmatprep.subr.mxu0 0.0
        %1076 = vmatpush1.msra.mxu0 %v1064
        %1077 = vmatprep.subr.mxu0 0.0
        %1078 = vmatpush1.msra.mxu0 %v1065
        %1079 = vmatprep.subr.mxu0 0.0
        %1080 = vmatpush1.msra.mxu0 %v1066
        %1081 = vmatprep.subr.mxu0 0.0
        %1082 = vmatpush1.msra.mxu0 %v1067
        %1083 = vmatprep.subr.mxu0 0.0
        %1084 = vmatpush1.msra.mxu0 %v1068
        %1085 = vmatprep.subr.mxu0 0.0
        %1086 = vmatpush1.msra.mxu0 %v1069
        %1087 = vmatprep.subr.mxu0 0.0
        %1088 = vmatpush1.msra.mxu0 0.0
        %1089 = vmatprep.subr.mxu0 0.0
        %1090 = vmatpush1.msra.mxu0 0.0
        %1091 = vmatprep.subr.mxu0 0.0
        %1092 = vmatpush1.msra.mxu0 0.0
        %1093 = vmatprep.subr.mxu0 0.0
        %1094 = vmatpush1.msra.mxu0 0.0
        %1095 = vmatprep.subr.mxu0 0.0
        %1096 = vmatpush1.msra.mxu0 0.0
        %1097 = vmatprep.subr.mxu0 0.0
        %1098 = vmatpush1.msra.mxu0 0.0
        %1099 = vmatprep.subr.mxu0 0.0
        %1100 = vmatpush1.msra.mxu0 0.0
        %1101 = vmatprep.subr.mxu0 0.0
        %1102 = vmatpush1.msra.mxu0 0.0
        %1103 = vmatprep.subr.mxu0 0.0
        %1104 = vmatpush1.msra.mxu0 0.0
        %1105 = vmatprep.subr.mxu0 0.0
        %1106 = vmatpush1.msra.mxu0 0.0
        %1107 = vmatprep.subr.mxu0 0.0
        %1108 = vmatpush1.msra.mxu0 0.0
        %1109 = vmatprep.subr.mxu0 0.0
        %1110 = vmatpush1.msra.mxu0 0.0
        %1111 = vmatprep.subr.mxu0 0.0
        %1112 = vmatpush1.msra.mxu0 0.0
        %1113 = vmatprep.subr.mxu0 0.0
        %1114 = vmatpush1.msra.mxu0 0.0
        %1115 = vmatprep.subr.mxu0 0.0
        %1116 = vmatpush1.msra.mxu0 0.0
        %1117 = vmatprep.subr.mxu0 0.0
        %1118 = vmatpush1.msra.mxu0 0.0
        %1119 = vmatprep.subr.mxu0 0.0
        %1120 = vmatpush1.msra.mxu0 0.0
        %1121 = vmatprep.subr.mxu0 0.0
        %1122 = vmatpush1.msra.mxu0 0.0
        %1123 = vmatprep.subr.mxu0 0.0
        %1124 = vmatpush1.msra.mxu0 0.0
        %1125 = vmatprep.subr.mxu0 0.0
        %1126 = vmatpush1.msra.mxu0 0.0
        %1127 = vmatprep.subr.mxu0 0.0
        %1128 = vmatpush1.msra.mxu0 0.0
        %1129 = vmatprep.subr.mxu0 0.0
        %1130 = vmatpush1.msra.mxu0 0.0
        %1131 = vmatprep.subr.mxu0 0.0
        %1132 = vmatpush1.msra.mxu0 0.0
        %1133 = vmatprep.subr.mxu0 0.0
        %1134 = vmatpush1.msra.mxu0 0.0
        %1135 = vmatprep.subr.mxu0 0.0
        %1136 = vmatpush1.msra.mxu0 0.0
        %1137 = vmatprep.mubr.f32.mxu0 0.0
        %1138 = vmatmul.mubr.f32.gmra.mrb[0].mxu0 %v1071
        %v1139 = vpop.f32.mrb[0].mxu0
        %v1140 = vadd.f32 0.0, %v1139
        %v1141 = vpop.f32.mrb[0].mxu0
        %1142 = vdwg.mxu0
        %v1143 = vadd.f32 %v1058, %v1140
        %v1144 = vld [vmem:[#allocation2 + $0x3] sm:$0xff]
        %s1145 = scalar_lea.vmem %s4, 168
        %v1146 = vld [vmem:[%s1145] sm:$0xff]
        %v1147 = vld [vmem:[%s1145 + $0x8] sm:$0xff]
        %v1148 = vld [vmem:[%s1145 + $0x10] sm:$0xff]
        %v1149 = vld [vmem:[%s1145 + $0x18] sm:$0xff]
        %v1150 = vld [vmem:[%s1145 + $0x20] sm:$0xff]
        %v1151 = vld [vmem:[%s1145 + $0x28] sm:$0xff]
        %v1152 = vld [vmem:[%s1145 + $0x30] sm:$0xff]
        %v1154 = vsel %vm914, %v1144, 0
        %1156 = vmatprep.subr.mxu0 0.0
        %1157 = vmatpush1.msra.mxu0 %v1146
        %1158 = vmatprep.subr.mxu0 0.0
        %1159 = vmatpush1.msra.mxu0 %v1147
        %1160 = vmatprep.subr.mxu0 0.0
        %1161 = vmatpush1.msra.mxu0 %v1148
        %1162 = vmatprep.subr.mxu0 0.0
        %1163 = vmatpush1.msra.mxu0 %v1149
        %1164 = vmatprep.subr.mxu0 0.0
        %1165 = vmatpush1.msra.mxu0 %v1150
        %1166 = vmatprep.subr.mxu0 0.0
        %1167 = vmatpush1.msra.mxu0 %v1151
        %1168 = vmatprep.subr.mxu0 0.0
        %1169 = vmatpush1.msra.mxu0 %v1152
        %1170 = vmatprep.subr.mxu0 0.0
        %1171 = vmatpush1.msra.mxu0 0.0
        %1172 = vmatprep.subr.mxu0 0.0
        %1173 = vmatpush1.msra.mxu0 0.0
        %1174 = vmatprep.subr.mxu0 0.0
        %1175 = vmatpush1.msra.mxu0 0.0
        %1176 = vmatprep.subr.mxu0 0.0
        %1177 = vmatpush1.msra.mxu0 0.0
        %1178 = vmatprep.subr.mxu0 0.0
        %1179 = vmatpush1.msra.mxu0 0.0
        %1180 = vmatprep.subr.mxu0 0.0
        %1181 = vmatpush1.msra.mxu0 0.0
        %1182 = vmatprep.subr.mxu0 0.0
        %1183 = vmatpush1.msra.mxu0 0.0
        %1184 = vmatprep.subr.mxu0 0.0
        %1185 = vmatpush1.msra.mxu0 0.0
        %1186 = vmatprep.subr.mxu0 0.0
        %1187 = vmatpush1.msra.mxu0 0.0
        %1188 = vmatprep.subr.mxu0 0.0
        %1189 = vmatpush1.msra.mxu0 0.0
        %1190 = vmatprep.subr.mxu0 0.0
        %1191 = vmatpush1.msra.mxu0 0.0
        %1192 = vmatprep.subr.mxu0 0.0
        %1193 = vmatpush1.msra.mxu0 0.0
        %1194 = vmatprep.subr.mxu0 0.0
        %1195 = vmatpush1.msra.mxu0 0.0
        %1196 = vmatprep.subr.mxu0 0.0
        %1197 = vmatpush1.msra.mxu0 0.0
        %1198 = vmatprep.subr.mxu0 0.0
        %1199 = vmatpush1.msra.mxu0 0.0
        %1200 = vmatprep.subr.mxu0 0.0
        %1201 = vmatpush1.msra.mxu0 0.0
        %1202 = vmatprep.subr.mxu0 0.0
        %1203 = vmatpush1.msra.mxu0 0.0
        %1204 = vmatprep.subr.mxu0 0.0
        %1205 = vmatpush1.msra.mxu0 0.0
        %1206 = vmatprep.subr.mxu0 0.0
        %1207 = vmatpush1.msra.mxu0 0.0
        %1208 = vmatprep.subr.mxu0 0.0
        %1209 = vmatpush1.msra.mxu0 0.0
        %1210 = vmatprep.subr.mxu0 0.0
        %1211 = vmatpush1.msra.mxu0 0.0
        %1212 = vmatprep.subr.mxu0 0.0
        %1213 = vmatpush1.msra.mxu0 0.0
        %1214 = vmatprep.subr.mxu0 0.0
        %1215 = vmatpush1.msra.mxu0 0.0
        %1216 = vmatprep.subr.mxu0 0.0
        %1217 = vmatpush1.msra.mxu0 0.0
        %1218 = vmatprep.subr.mxu0 0.0
        %1219 = vmatpush1.msra.mxu0 0.0
        %1220 = vmatprep.mubr.f32.mxu0 0.0
        %1221 = vmatmul.mubr.f32.gmra.mrb[0].mxu0 %v1154
        %v1222 = vpop.f32.mrb[0].mxu0
        %v1223 = vadd.f32 0.0, %v1222
        %v1224 = vpop.f32.mrb[0].mxu0
        %1225 = vdwg.mxu0
        %v1226 = vadd.f32 %v1143, %v1223
        %v1227 = vld [vmem:[#allocation2 + $0x4] sm:$0xff]
        %s1228 = scalar_lea.vmem %s4, 224
        %v1229 = vld [vmem:[%s1228] sm:$0xff]
        %v1230 = vld [vmem:[%s1228 + $0x8] sm:$0xff]
        %v1231 = vld [vmem:[%s1228 + $0x10] sm:$0xff]
        %v1232 = vld [vmem:[%s1228 + $0x18] sm:$0xff]
        %v1233 = vld [vmem:[%s1228 + $0x20] sm:$0xff]
        %v1234 = vld [vmem:[%s1228 + $0x28] sm:$0xff]
        %v1235 = vld [vmem:[%s1228 + $0x30] sm:$0xff]
        %v1237 = vsel %vm914, %v1227, 0
        %1239 = vmatprep.subr.mxu0 0.0
        %1240 = vmatpush1.msra.mxu0 %v1229
        %1241 = vmatprep.subr.mxu0 0.0
        %1242 = vmatpush1.msra.mxu0 %v1230
        %1243 = vmatprep.subr.mxu0 0.0
        %1244 = vmatpush1.msra.mxu0 %v1231
        %1245 = vmatprep.subr.mxu0 0.0
        %1246 = vmatpush1.msra.mxu0 %v1232
        %1247 = vmatprep.subr.mxu0 0.0
        %1248 = vmatpush1.msra.mxu0 %v1233
        %1249 = vmatprep.subr.mxu0 0.0
        %1250 = vmatpush1.msra.mxu0 %v1234
        %1251 = vmatprep.subr.mxu0 0.0
        %1252 = vmatpush1.msra.mxu0 %v1235
        %1253 = vmatprep.subr.mxu0 0.0
        %1254 = vmatpush1.msra.mxu0 0.0
        %1255 = vmatprep.subr.mxu0 0.0
        %1256 = vmatpush1.msra.mxu0 0.0
        %1257 = vmatprep.subr.mxu0 0.0
        %1258 = vmatpush1.msra.mxu0 0.0
        %1259 = vmatprep.subr.mxu0 0.0
        %1260 = vmatpush1.msra.mxu0 0.0
        %1261 = vmatprep.subr.mxu0 0.0
        %1262 = vmatpush1.msra.mxu0 0.0
        %1263 = vmatprep.subr.mxu0 0.0
        %1264 = vmatpush1.msra.mxu0 0.0
        %1265 = vmatprep.subr.mxu0 0.0
        %1266 = vmatpush1.msra.mxu0 0.0
        %1267 = vmatprep.subr.mxu0 0.0
        %1268 = vmatpush1.msra.mxu0 0.0
        %1269 = vmatprep.subr.mxu0 0.0
        %1270 = vmatpush1.msra.mxu0 0.0
        %1271 = vmatprep.subr.mxu0 0.0
        %1272 = vmatpush1.msra.mxu0 0.0
        %1273 = vmatprep.subr.mxu0 0.0
        %1274 = vmatpush1.msra.mxu0 0.0
        %1275 = vmatprep.subr.mxu0 0.0
        %1276 = vmatpush1.msra.mxu0 0.0
        %1277 = vmatprep.subr.mxu0 0.0
        %1278 = vmatpush1.msra.mxu0 0.0
        %1279 = vmatprep.subr.mxu0 0.0
        %1280 = vmatpush1.msra.mxu0 0.0
        %1281 = vmatprep.subr.mxu0 0.0
        %1282 = vmatpush1.msra.mxu0 0.0
        %1283 = vmatprep.subr.mxu0 0.0
        %1284 = vmatpush1.msra.mxu0 0.0
        %1285 = vmatprep.subr.mxu0 0.0
        %1286 = vmatpush1.msra.mxu0 0.0
        %1287 = vmatprep.subr.mxu0 0.0
        %1288 = vmatpush1.msra.mxu0 0.0
        %1289 = vmatprep.subr.mxu0 0.0
        %1290 = vmatpush1.msra.mxu0 0.0
        %1291 = vmatprep.subr.mxu0 0.0
        %1292 = vmatpush1.msra.mxu0 0.0
        %1293 = vmatprep.subr.mxu0 0.0
        %1294 = vmatpush1.msra.mxu0 0.0
        %1295 = vmatprep.subr.mxu0 0.0
        %1296 = vmatpush1.msra.mxu0 0.0
        %1297 = vmatprep.subr.mxu0 0.0
        %1298 = vmatpush1.msra.mxu0 0.0
        %1299 = vmatprep.subr.mxu0 0.0
        %1300 = vmatpush1.msra.mxu0 0.0
        %1301 = vmatprep.subr.mxu0 0.0
        %1302 = vmatpush1.msra.mxu0 0.0
        %1303 = vmatprep.mubr.f32.mxu0 0.0
        %1304 = vmatmul.mubr.f32.gmra.mrb[0].mxu0 %v1237
        %v1305 = vpop.f32.mrb[0].mxu0
        %v1306 = vadd.f32 0.0, %v1305
        %v1307 = vpop.f32.mrb[0].mxu0
        %1308 = vdwg.mxu0
        %v1309 = vadd.f32 %v1226, %v1306
        %v1310 = vld [vmem:[#allocation2 + $0x5] sm:$0xff]
        %s1311 = scalar_lea.vmem %s4, 280
        %v1312 = vld [vmem:[%s1311] sm:$0xff]
        %v1313 = vld [vmem:[%s1311 + $0x8] sm:$0xff]
        %v1314 = vld [vmem:[%s1311 + $0x10] sm:$0xff]
        %v1315 = vld [vmem:[%s1311 + $0x18] sm:$0xff]
        %v1316 = vld [vmem:[%s1311 + $0x20] sm:$0xff]
        %v1317 = vld [vmem:[%s1311 + $0x28] sm:$0xff]
        %v1318 = vld [vmem:[%s1311 + $0x30] sm:$0xff]
        %v1320 = vsel %vm914, %v1310, 0
        %1322 = vmatprep.subr.mxu0 0.0
        %1323 = vmatpush1.msra.mxu0 %v1312
        %1324 = vmatprep.subr.mxu0 0.0
        %1325 = vmatpush1.msra.mxu0 %v1313
        %1326 = vmatprep.subr.mxu0 0.0
        %1327 = vmatpush1.msra.mxu0 %v1314
        %1328 = vmatprep.subr.mxu0 0.0
        %1329 = vmatpush1.msra.mxu0 %v1315
        %1330 = vmatprep.subr.mxu0 0.0
        %1331 = vmatpush1.msra.mxu0 %v1316
        %1332 = vmatprep.subr.mxu0 0.0
        %1333 = vmatpush1.msra.mxu0 %v1317
        %1334 = vmatprep.subr.mxu0 0.0
        %1335 = vmatpush1.msra.mxu0 %v1318
        %1336 = vmatprep.subr.mxu0 0.0
        %1337 = vmatpush1.msra.mxu0 0.0
        %1338 = vmatprep.subr.mxu0 0.0
        %1339 = vmatpush1.msra.mxu0 0.0
        %1340 = vmatprep.subr.mxu0 0.0
        %1341 = vmatpush1.msra.mxu0 0.0
        %1342 = vmatprep.subr.mxu0 0.0
        %1343 = vmatpush1.msra.mxu0 0.0
        %1344 = vmatprep.subr.mxu0 0.0
        %1345 = vmatpush1.msra.mxu0 0.0
        %1346 = vmatprep.subr.mxu0 0.0
        %1347 = vmatpush1.msra.mxu0 0.0
        %1348 = vmatprep.subr.mxu0 0.0
        %1349 = vmatpush1.msra.mxu0 0.0
        %1350 = vmatprep.subr.mxu0 0.0
        %1351 = vmatpush1.msra.mxu0 0.0
        %1352 = vmatprep.subr.mxu0 0.0
        %1353 = vmatpush1.msra.mxu0 0.0
        %1354 = vmatprep.subr.mxu0 0.0
        %1355 = vmatpush1.msra.mxu0 0.0
        %1356 = vmatprep.subr.mxu0 0.0
        %1357 = vmatpush1.msra.mxu0 0.0
        %1358 = vmatprep.subr.mxu0 0.0
        %1359 = vmatpush1.msra.mxu0 0.0
        %1360 = vmatprep.subr.mxu0 0.0
        %1361 = vmatpush1.msra.mxu0 0.0
        %1362 = vmatprep.subr.mxu0 0.0
        %1363 = vmatpush1.msra.mxu0 0.0
        %1364 = vmatprep.subr.mxu0 0.0
        %1365 = vmatpush1.msra.mxu0 0.0
        %1366 = vmatprep.subr.mxu0 0.0
        %1367 = vmatpush1.msra.mxu0 0.0
        %1368 = vmatprep.subr.mxu0 0.0
        %1369 = vmatpush1.msra.mxu0 0.0
        %1370 = vmatprep.subr.mxu0 0.0
        %1371 = vmatpush1.msra.mxu0 0.0
        %1372 = vmatprep.subr.mxu0 0.0
        %1373 = vmatpush1.msra.mxu0 0.0
        %1374 = vmatprep.subr.mxu0 0.0
        %1375 = vmatpush1.msra.mxu0 0.0
        %1376 = vmatprep.subr.mxu0 0.0
        %1377 = vmatpush1.msra.mxu0 0.0
        %1378 = vmatprep.subr.mxu0 0.0
        %1379 = vmatpush1.msra.mxu0 0.0
        %1380 = vmatprep.subr.mxu0 0.0
        %1381 = vmatpush1.msra.mxu0 0.0
        %1382 = vmatprep.subr.mxu0 0.0
        %1383 = vmatpush1.msra.mxu0 0.0
        %1384 = vmatprep.subr.mxu0 0.0
        %1385 = vmatpush1.msra.mxu0 0.0
        %1386 = vmatprep.mubr.f32.mxu0 0.0
        %1387 = vmatmul.mubr.f32.gmra.mrb[0].mxu0 %v1320
        %v1388 = vpop.f32.mrb[0].mxu0
        %v1389 = vadd.f32 0.0, %v1388
        %v1390 = vpop.f32.mrb[0].mxu0
        %1391 = vdwg.mxu0
        %v1392 = vadd.f32 %v1309, %v1389
        %v1393 = vld [vmem:[#allocation2 + $0x6] sm:$0xff]
        %s1394 = scalar_lea.vmem %s4, 336
        %v1395 = vld [vmem:[%s1394] sm:$0xff]
        %v1396 = vld [vmem:[%s1394 + $0x8] sm:$0xff]
        %v1397 = vld [vmem:[%s1394 + $0x10] sm:$0xff]
        %v1398 = vld [vmem:[%s1394 + $0x18] sm:$0xff]
        %v1399 = vld [vmem:[%s1394 + $0x20] sm:$0xff]
        %v1400 = vld [vmem:[%s1394 + $0x28] sm:$0xff]
        %v1401 = vld [vmem:[%s1394 + $0x30] sm:$0xff]
        %v1403 = vsel %vm914, %v1393, 0
        %1405 = vmatprep.subr.mxu0 0.0
        %1406 = vmatpush1.msra.mxu0 %v1395
        %1407 = vmatprep.subr.mxu0 0.0
        %1408 = vmatpush1.msra.mxu0 %v1396
        %1409 = vmatprep.subr.mxu0 0.0
        %1410 = vmatpush1.msra.mxu0 %v1397
        %1411 = vmatprep.subr.mxu0 0.0
        %1412 = vmatpush1.msra.mxu0 %v1398
        %1413 = vmatprep.subr.mxu0 0.0
        %1414 = vmatpush1.msra.mxu0 %v1399
        %1415 = vmatprep.subr.mxu0 0.0
        %1416 = vmatpush1.msra.mxu0 %v1400
        %1417 = vmatprep.subr.mxu0 0.0
        %1418 = vmatpush1.msra.mxu0 %v1401
        %1419 = vmatprep.subr.mxu0 0.0
        %1420 = vmatpush1.msra.mxu0 0.0
        %1421 = vmatprep.subr.mxu0 0.0
        %1422 = vmatpush1.msra.mxu0 0.0
        %1423 = vmatprep.subr.mxu0 0.0
        %1424 = vmatpush1.msra.mxu0 0.0
        %1425 = vmatprep.subr.mxu0 0.0
        %1426 = vmatpush1.msra.mxu0 0.0
        %1427 = vmatprep.subr.mxu0 0.0
        %1428 = vmatpush1.msra.mxu0 0.0
        %1429 = vmatprep.subr.mxu0 0.0
        %1430 = vmatpush1.msra.mxu0 0.0
        %1431 = vmatprep.subr.mxu0 0.0
        %1432 = vmatpush1.msra.mxu0 0.0
        %1433 = vmatprep.subr.mxu0 0.0
        %1434 = vmatpush1.msra.mxu0 0.0
        %1435 = vmatprep.subr.mxu0 0.0
        %1436 = vmatpush1.msra.mxu0 0.0
        %1437 = vmatprep.subr.mxu0 0.0
        %1438 = vmatpush1.msra.mxu0 0.0
        %1439 = vmatprep.subr.mxu0 0.0
        %1440 = vmatpush1.msra.mxu0 0.0
        %1441 = vmatprep.subr.mxu0 0.0
        %1442 = vmatpush1.msra.mxu0 0.0
        %1443 = vmatprep.subr.mxu0 0.0
        %1444 = vmatpush1.msra.mxu0 0.0
        %1445 = vmatprep.subr.mxu0 0.0
        %1446 = vmatpush1.msra.mxu0 0.0
        %1447 = vmatprep.subr.mxu0 0.0
        %1448 = vmatpush1.msra.mxu0 0.0
        %1449 = vmatprep.subr.mxu0 0.0
        %1450 = vmatpush1.msra.mxu0 0.0
        %1451 = vmatprep.subr.mxu0 0.0
        %1452 = vmatpush1.msra.mxu0 0.0
        %1453 = vmatprep.subr.mxu0 0.0
        %1454 = vmatpush1.msra.mxu0 0.0
        %1455 = vmatprep.subr.mxu0 0.0
        %1456 = vmatpush1.msra.mxu0 0.0
        %1457 = vmatprep.subr.mxu0 0.0
        %1458 = vmatpush1.msra.mxu0 0.0
        %1459 = vmatprep.subr.mxu0 0.0
        %1460 = vmatpush1.msra.mxu0 0.0
        %1461 = vmatprep.subr.mxu0 0.0
        %1462 = vmatpush1.msra.mxu0 0.0
        %1463 = vmatprep.subr.mxu0 0.0
        %1464 = vmatpush1.msra.mxu0 0.0
        %1465 = vmatprep.subr.mxu0 0.0
        %1466 = vmatpush1.msra.mxu0 0.0
        %1467 = vmatprep.subr.mxu0 0.0
        %1468 = vmatpush1.msra.mxu0 0.0
        %1469 = vmatprep.mubr.f32.mxu0 0.0
        %1470 = vmatmul.mubr.f32.gmra.mrb[0].mxu0 %v1403
        %v1471 = vpop.f32.mrb[0].mxu0
        %v1472 = vadd.f32 0.0, %v1471
        %v1473 = vpop.f32.mrb[0].mxu0
        %1474 = vdwg.mxu0
        %v1475 = vadd.f32 %v1392, %v1472
        %v1477 = vlaneseq
        %v1478 = vshrl.u32 %v1477, 7
        %v1479 = vsub.s32 0, %v1478
        %v1480 = vrot.slane %v890, %v1479
        %v1482 = vadd.f32 %v1475, %v1480
        %v1483 = vmax.f32 %v1482, 0.0
        %v1484 = vld [vmem:[%s18] sm:$0xff]
        %v1485 = vld [vmem:[%s18 + $0x8] sm:$0xff]
        %vm1486 = vcmask 64512
        %v1488 = vsel %vm1486, %v1484, 0
        %v1491 = vsel %vm1486, %v1485, 0
        %1493 = vmatprep.subr.mxu0 0.0
        %1494 = vmatpush1.msra.mxu0 %v1483
        %1495 = vmatprep.subr.mxu0 0.0
        %1496 = vmatpush1.msra.mxu0 0.0
        %1497 = vmatprep.subr.mxu0 0.0
        %1498 = vmatpush1.msra.mxu0 0.0
        %1499 = vmatprep.subr.mxu0 0.0
        %1500 = vmatpush1.msra.mxu0 0.0
        %1501 = vmatprep.subr.mxu0 0.0
        %1502 = vmatpush1.msra.mxu0 0.0
        %1503 = vmatprep.subr.mxu0 0.0
        %1504 = vmatpush1.msra.mxu0 0.0
        %1505 = vmatprep.subr.mxu0 0.0
        %1506 = vmatpush1.msra.mxu0 0.0
        %1507 = vmatprep.subr.mxu0 0.0
        %1508 = vmatpush1.msra.mxu0 0.0
        %1509 = vmatprep.subr.mxu0 0.0
        %1510 = vmatpush1.msra.mxu0 0.0
        %1511 = vmatprep.subr.mxu0 0.0
        %1512 = vmatpush1.msra.mxu0 0.0
        %1513 = vmatprep.subr.mxu0 0.0
        %1514 = vmatpush1.msra.mxu0 0.0
        %1515 = vmatprep.subr.mxu0 0.0
        %1516 = vmatpush1.msra.mxu0 0.0
        %1517 = vmatprep.subr.mxu0 0.0
        %1518 = vmatpush1.msra.mxu0 0.0
        %1519 = vmatprep.subr.mxu0 0.0
        %1520 = vmatpush1.msra.mxu0 0.0
        %1521 = vmatprep.subr.mxu0 0.0
        %1522 = vmatpush1.msra.mxu0 0.0
        %1523 = vmatprep.subr.mxu0 0.0
        %1524 = vmatpush1.msra.mxu0 0.0
        %1525 = vmatprep.subr.mxu0 0.0
        %1526 = vmatpush1.msra.mxu0 0.0
        %1527 = vmatprep.subr.mxu0 0.0
        %1528 = vmatpush1.msra.mxu0 0.0
        %1529 = vmatprep.subr.mxu0 0.0
        %1530 = vmatpush1.msra.mxu0 0.0
        %1531 = vmatprep.subr.mxu0 0.0
        %1532 = vmatpush1.msra.mxu0 0.0
        %1533 = vmatprep.subr.mxu0 0.0
        %1534 = vmatpush1.msra.mxu0 0.0
        %1535 = vmatprep.subr.mxu0 0.0
        %1536 = vmatpush1.msra.mxu0 0.0
        %1537 = vmatprep.subr.mxu0 0.0
        %1538 = vmatpush1.msra.mxu0 0.0
        %1539 = vmatprep.subr.mxu0 0.0
        %1540 = vmatpush1.msra.mxu0 0.0
        %1541 = vmatprep.subr.mxu0 0.0
        %1542 = vmatpush1.msra.mxu0 0.0
        %1543 = vmatprep.subr.mxu0 0.0
        %1544 = vmatpush1.msra.mxu0 0.0
        %1545 = vmatprep.subr.mxu0 0.0
        %1546 = vmatpush1.msra.mxu0 0.0
        %1547 = vmatprep.subr.mxu0 0.0
        %1548 = vmatpush1.msra.mxu0 0.0
        %1549 = vmatprep.subr.mxu0 0.0
        %1550 = vmatpush1.msra.mxu0 0.0
        %1551 = vmatprep.subr.mxu0 0.0
        %1552 = vmatpush1.msra.mxu0 0.0
        %1553 = vmatprep.subr.mxu0 0.0
        %1554 = vmatpush1.msra.mxu0 0.0
        %1555 = vmatprep.subr.mxu0 0.0
        %1556 = vmatpush1.msra.mxu0 0.0
        %1557 = vmatprep.mubr.f32.mxu0 0.0
        %1558 = vmatmul.mubr.f32.gmra.mrb[0].mxu0 %v1488
        %v1559 = vpop.f32.mrb[0].mxu0
        %v1560 = vadd.f32 0.0, %v1559
        %v1561 = vpop.f32.mrb[0].mxu0
        %1562 = vmatprep.mubr.f32.mxu0 0.0
        %1563 = vmatmul.mubr.f32.gmra.mrb[0].mxu0 %v1491
        %v1564 = vpop.f32.mrb[0].mxu0
        %v1565 = vadd.f32 0.0, %v1564
        %v1566 = vpop.f32.mrb[0].mxu0
        %1567 = vdwg.mxu0
        %v1568 = vld [vmem:[#allocation19] sm:$0xff]
        %v1569 = vld [vmem:[#allocation19 + $0x8] sm:$0xff]
        %v1570 = vld [vmem:[#allocation19 + $0x10] sm:$0xff]
        %v1571 = vld [vmem:[#allocation19 + $0x18] sm:$0xff]
        %v1572 = vld [vmem:[#allocation19 + $0x20] sm:$0xff]
        %v1573 = vld [vmem:[#allocation19 + $0x28] sm:$0xff]
        %v1574 = vld [vmem:[#allocation19 + $0x30] sm:$0xff]
        %v1575 = vld [vmem:[#allocation19 + $0x38] sm:$0xff]
        %vm1576 = vcmask 523264
        %v1578 = vsel %vm1576, %v1560, 0
        %v1581 = vsel %vm1576, %v1565, 0
        %1583 = vmatprep.subr.mxu0 0.0
        %1584 = vmatpush1.msra.mxu0 %v1568
        %1585 = vmatprep.subr.mxu0 0.0
        %1586 = vmatpush1.msra.mxu0 %v1569
        %1587 = vmatprep.subr.mxu0 0.0
        %1588 = vmatpush1.msra.mxu0 %v1570
        %1589 = vmatprep.subr.mxu0 0.0
        %1590 = vmatpush1.msra.mxu0 %v1571
        %1591 = vmatprep.subr.mxu0 0.0
        %1592 = vmatpush1.msra.mxu0 %v1572
        %1593 = vmatprep.subr.mxu0 0.0
        %1594 = vmatpush1.msra.mxu0 %v1573
        %1595 = vmatprep.subr.mxu0 0.0
        %1596 = vmatpush1.msra.mxu0 %v1574
        %1597 = vmatprep.subr.mxu0 0.0
        %1598 = vmatpush1.msra.mxu0 %v1575
        %1599 = vmatprep.subr.mxu0 0.0
        %1600 = vmatpush1.msra.mxu0 0.0
        %1601 = vmatprep.subr.mxu0 0.0
        %1602 = vmatpush1.msra.mxu0 0.0
        %1603 = vmatprep.subr.mxu0 0.0
        %1604 = vmatpush1.msra.mxu0 0.0
        %1605 = vmatprep.subr.mxu0 0.0
        %1606 = vmatpush1.msra.mxu0 0.0
        %1607 = vmatprep.subr.mxu0 0.0
        %1608 = vmatpush1.msra.mxu0 0.0
        %1609 = vmatprep.subr.mxu0 0.0
        %1610 = vmatpush1.msra.mxu0 0.0
        %1611 = vmatprep.subr.mxu0 0.0
        %1612 = vmatpush1.msra.mxu0 0.0
        %1613 = vmatprep.subr.mxu0 0.0
        %1614 = vmatpush1.msra.mxu0 0.0
        %1615 = vmatprep.subr.mxu0 0.0
        %1616 = vmatpush1.msra.mxu0 0.0
        %1617 = vmatprep.subr.mxu0 0.0
        %1618 = vmatpush1.msra.mxu0 0.0
        %1619 = vmatprep.subr.mxu0 0.0
        %1620 = vmatpush1.msra.mxu0 0.0
        %1621 = vmatprep.subr.mxu0 0.0
        %1622 = vmatpush1.msra.mxu0 0.0
        %1623 = vmatprep.subr.mxu0 0.0
        %1624 = vmatpush1.msra.mxu0 0.0
        %1625 = vmatprep.subr.mxu0 0.0
        %1626 = vmatpush1.msra.mxu0 0.0
        %1627 = vmatprep.subr.mxu0 0.0
        %1628 = vmatpush1.msra.mxu0 0.0
        %1629 = vmatprep.subr.mxu0 0.0
        %1630 = vmatpush1.msra.mxu0 0.0
        %1631 = vmatprep.subr.mxu0 0.0
        %1632 = vmatpush1.msra.mxu0 0.0
        %1633 = vmatprep.subr.mxu0 0.0
        %1634 = vmatpush1.msra.mxu0 0.0
        %1635 = vmatprep.subr.mxu0 0.0
        %1636 = vmatpush1.msra.mxu0 0.0
        %1637 = vmatprep.subr.mxu0 0.0
        %1638 = vmatpush1.msra.mxu0 0.0
        %1639 = vmatprep.subr.mxu0 0.0
        %1640 = vmatpush1.msra.mxu0 0.0
        %1641 = vmatprep.subr.mxu0 0.0
        %1642 = vmatpush1.msra.mxu0 0.0
        %1643 = vmatprep.subr.mxu0 0.0
        %1644 = vmatpush1.msra.mxu0 0.0
        %1645 = vmatprep.subr.mxu0 0.0
        %1646 = vmatpush1.msra.mxu0 0.0
        %1647 = vmatprep.mubr.f32.mxu0 0.0
        %1648 = vmatmul.mubr.f32.gmra.mrb[0].mxu0 %v1578
        %v1649 = vpop.f32.mrb[0].mxu0
        %v1650 = vadd.f32 0.0, %v1649
        %v1651 = vpop.f32.mrb[0].mxu0
        %1652 = vmatprep.mubr.f32.mxu0 0.0
        %1653 = vmatmul.mubr.f32.gmra.mrb[0].mxu0 %v1581
        %v1654 = vpop.f32.mrb[0].mxu0
        %v1655 = vadd.f32 0.0, %v1654
        %v1656 = vpop.f32.mrb[0].mxu0
        %1657 = vdwg.mxu0
        %v1658 = vld [vmem:[%s854] sm:$0xff]
        %1659 = vmatprep.subr.mxu0 0.0
        %1660 = vmatpush1.msra.mxu0 %v1658
        %1661 = vmatprep.subr.mxu0 0.0
        %1662 = vmatpush1.msra.mxu0 0.0
        %1663 = vmatprep.subr.mxu0 0.0
        %1664 = vmatpush1.msra.mxu0 0.0
        %1665 = vmatprep.subr.mxu0 0.0
        %1666 = vmatpush1.msra.mxu0 0.0
        %1667 = vmatprep.subr.mxu0 0.0
        %1668 = vmatpush1.msra.mxu0 0.0
        %1669 = vmatprep.subr.mxu0 0.0
        %1670 = vmatpush1.msra.mxu0 0.0
        %1671 = vmatprep.subr.mxu0 0.0
        %1672 = vmatpush1.msra.mxu0 0.0
        %1673 = vmatprep.subr.mxu0 0.0
        %1674 = vmatpush1.msra.mxu0 0.0
        %1675 = vmatprep.subr.mxu0 0.0
        %1676 = vmatpush1.msra.mxu0 0.0
        %1677 = vmatprep.subr.mxu0 0.0
        %1678 = vmatpush1.msra.mxu0 0.0
        %1679 = vmatprep.subr.mxu0 0.0
        %1680 = vmatpush1.msra.mxu0 0.0
        %1681 = vmatprep.subr.mxu0 0.0
        %1682 = vmatpush1.msra.mxu0 0.0
        %1683 = vmatprep.subr.mxu0 0.0
        %1684 = vmatpush1.msra.mxu0 0.0
        %1685 = vmatprep.subr.mxu0 0.0
        %1686 = vmatpush1.msra.mxu0 0.0
        %1687 = vmatprep.subr.mxu0 0.0
        %1688 = vmatpush1.msra.mxu0 0.0
        %1689 = vmatprep.subr.mxu0 0.0
        %1690 = vmatpush1.msra.mxu0 0.0
        %1691 = vmatprep.subr.mxu0 0.0
        %1692 = vmatpush1.msra.mxu0 0.0
        %1693 = vmatprep.subr.mxu0 0.0
        %1694 = vmatpush1.msra.mxu0 0.0
        %1695 = vmatprep.subr.mxu0 0.0
        %1696 = vmatpush1.msra.mxu0 0.0
        %1697 = vmatprep.subr.mxu0 0.0
        %1698 = vmatpush1.msra.mxu0 0.0
        %1699 = vmatprep.subr.mxu0 0.0
        %1700 = vmatpush1.msra.mxu0 0.0
        %1701 = vmatprep.subr.mxu0 0.0
        %1702 = vmatpush1.msra.mxu0 0.0
        %1703 = vmatprep.subr.mxu0 0.0
        %1704 = vmatpush1.msra.mxu0 0.0
        %1705 = vmatprep.subr.mxu0 0.0
        %1706 = vmatpush1.msra.mxu0 0.0
        %1707 = vmatprep.subr.mxu0 0.0
        %1708 = vmatpush1.msra.mxu0 0.0
        %1709 = vmatprep.subr.mxu0 0.0
        %1710 = vmatpush1.msra.mxu0 0.0
        %1711 = vmatprep.subr.mxu0 0.0
        %1712 = vmatpush1.msra.mxu0 0.0
        %1713 = vmatprep.subr.mxu0 0.0
        %1714 = vmatpush1.msra.mxu0 0.0
        %1715 = vmatprep.subr.mxu0 0.0
        %1716 = vmatpush1.msra.mxu0 0.0
        %1717 = vmatprep.subr.mxu0 0.0
        %1718 = vmatpush1.msra.mxu0 0.0
        %1719 = vmatprep.subr.mxu0 0.0
        %1720 = vmatpush1.msra.mxu0 0.0
        %1721 = vmatprep.subr.mxu0 0.0
        %1722 = vmatpush1.msra.mxu0 0.0
        %1723 = vmatprep.mubr.f32.mxu0 0.0
        %1724 = vmatmul.mubr.f32.gmra.mrb[0].mxu0 %v1488
        %v1725 = vpop.f32.mrb[0].mxu0
        %v1726 = vadd.f32 0.0, %v1725
        %v1727 = vpop.f32.mrb[0].mxu0
        %1728 = vmatprep.mubr.f32.mxu0 0.0
        %1729 = vmatmul.mubr.f32.gmra.mrb[0].mxu0 %v1491
        %v1730 = vpop.f32.mrb[0].mxu0
        %v1731 = vadd.f32 0.0, %v1730
        %v1732 = vpop.f32.mrb[0].mxu0
        %1733 = vdwg.mxu0
        %v1734 = vld [vmem:[#allocation21] sm:$0xff]
        %v1736 = vsel %vm1486, %v1726, 0
        %v1739 = vsel %vm1486, %v1731, 0
        %1741 = vmatprep.subr.mxu0 0.0
        %1742 = vmatpush1.msra.mxu0 %v1734
        %1743 = vmatprep.subr.mxu0 0.0
        %1744 = vmatpush1.msra.mxu0 0.0
        %1745 = vmatprep.subr.mxu0 0.0
        %1746 = vmatpush1.msra.mxu0 0.0
        %1747 = vmatprep.subr.mxu0 0.0
        %1748 = vmatpush1.msra.mxu0 0.0
        %1749 = vmatprep.subr.mxu0 0.0
        %1750 = vmatpush1.msra.mxu0 0.0
        %1751 = vmatprep.subr.mxu0 0.0
        %1752 = vmatpush1.msra.mxu0 0.0
        %1753 = vmatprep.subr.mxu0 0.0
        %1754 = vmatpush1.msra.mxu0 0.0
        %1755 = vmatprep.subr.mxu0 0.0
        %1756 = vmatpush1.msra.mxu0 0.0
        %1757 = vmatprep.subr.mxu0 0.0
        %1758 = vmatpush1.msra.mxu0 0.0
        %1759 = vmatprep.subr.mxu0 0.0
        %1760 = vmatpush1.msra.mxu0 0.0
        %1761 = vmatprep.subr.mxu0 0.0
        %1762 = vmatpush1.msra.mxu0 0.0
        %1763 = vmatprep.subr.mxu0 0.0
        %1764 = vmatpush1.msra.mxu0 0.0
        %1765 = vmatprep.subr.mxu0 0.0
        %1766 = vmatpush1.msra.mxu0 0.0
        %1767 = vmatprep.subr.mxu0 0.0
        %1768 = vmatpush1.msra.mxu0 0.0
        %1769 = vmatprep.subr.mxu0 0.0
        %1770 = vmatpush1.msra.mxu0 0.0
        %1771 = vmatprep.subr.mxu0 0.0
        %1772 = vmatpush1.msra.mxu0 0.0
        %1773 = vmatprep.subr.mxu0 0.0
        %1774 = vmatpush1.msra.mxu0 0.0
        %1775 = vmatprep.subr.mxu0 0.0
        %1776 = vmatpush1.msra.mxu0 0.0
        %1777 = vmatprep.subr.mxu0 0.0
        %1778 = vmatpush1.msra.mxu0 0.0
        %1779 = vmatprep.subr.mxu0 0.0
        %1780 = vmatpush1.msra.mxu0 0.0
        %1781 = vmatprep.subr.mxu0 0.0
        %1782 = vmatpush1.msra.mxu0 0.0
        %1783 = vmatprep.subr.mxu0 0.0
        %1784 = vmatpush1.msra.mxu0 0.0
        %1785 = vmatprep.subr.mxu0 0.0
        %1786 = vmatpush1.msra.mxu0 0.0
        %1787 = vmatprep.subr.mxu0 0.0
        %1788 = vmatpush1.msra.mxu0 0.0
        %1789 = vmatprep.subr.mxu0 0.0
        %1790 = vmatpush1.msra.mxu0 0.0
        %1791 = vmatprep.subr.mxu0 0.0
        %1792 = vmatpush1.msra.mxu0 0.0
        %1793 = vmatprep.subr.mxu0 0.0
        %1794 = vmatpush1.msra.mxu0 0.0
        %1795 = vmatprep.subr.mxu0 0.0
        %1796 = vmatpush1.msra.mxu0 0.0
        %1797 = vmatprep.subr.mxu0 0.0
        %1798 = vmatpush1.msra.mxu0 0.0
        %1799 = vmatprep.subr.mxu0 0.0
        %1800 = vmatpush1.msra.mxu0 0.0
        %1801 = vmatprep.subr.mxu0 0.0
        %1802 = vmatpush1.msra.mxu0 0.0
        %1803 = vmatprep.subr.mxu0 0.0
        %1804 = vmatpush1.msra.mxu0 0.0
        %1805 = vmatprep.mubr.f32.mxu0 0.0
        %1806 = vmatmul.mubr.f32.gmra.mrb[0].mxu0 %v1736
        %v1807 = vpop.f32.mrb[0].mxu0
        %v1808 = vadd.f32 0.0, %v1807
        %v1809 = vpop.f32.mrb[0].mxu0
        %1810 = vmatprep.mubr.f32.mxu0 0.0
        %1811 = vmatmul.mubr.f32.gmra.mrb[0].mxu0 %v1739
        %v1812 = vpop.f32.mrb[0].mxu0
        %v1813 = vadd.f32 0.0, %v1812
        %v1814 = vpop.f32.mrb[0].mxu0
        %1815 = vdwg.mxu0
        %v1816 = vmul.f32 %v1650, %v887
        %v1817 = vmul.f32 %v1655, %v888
        %v1818 = vld [vmem:[#allocation10] sm:$0x1]
        %vm1821 = vcmask 1040384
        %v1822 = vrot.slane %v1816, 7
        %v1823 = vrot.slane %v1817, 7
        %v1824 = vsel %vm1821, %v1822, %v1823
        %1825 = vrot.lane.b32.xlu0 %v1822, 8
        %v1826 = vpop.permute.xlu0 %1825
        %1827 = vrot.lane.b32.xlu0 %v1824, 8
        %v1828 = vpop.permute.xlu0 %1827
        %1829 = vrot.lane.b32.xlu0 %v1823, 8
        %v1830 = vpop.permute.xlu0 %1829
        %vm1834 = vcmask 1047617
        %1835 = vst.msk [vmem:[#allocation3] sm:$0xfe] %vm1834, %v1826
        %vm1836 = vcmask 64513
        %1837 = vst.msk [vmem:[#allocation3 + $0x8] sm:$0xfe] %vm1836, %v1826
        %vm1838 = vcmask 1047616
        %1839 = vst.msk [vmem:[#allocation3 + $0x10] sm:$0xff] %vm1838, %v1828
        %1840 = vst.msk [vmem:[#allocation3 + $0x18] sm:$0xff] %vm1486, %v1828
        %vm1841 = vcmask 1040448
        %1842 = vst.msk [vmem:[#allocation3 + $0x20] sm:$0x1] %vm1841, %v1830
        %vm1843 = vcmask 57344
        %1844 = vst.msk [vmem:[#allocation3 + $0x28] sm:$0x1] %vm1843, %v1830
        %v1845 = vld [vmem:[#allocation3] sm:$0xff]
        %v1846 = vld [vmem:[#allocation3 + $0x8] sm:$0xff]
        %v1847 = vld [vmem:[#allocation3 + $0x10] sm:$0xff]
        %v1848 = vld [vmem:[#allocation3 + $0x18] sm:$0xff]
        %v1849 = vld [vmem:[%s6] sm:$0xff]
        %v1850 = vld [vmem:[%s6 + $0x8] sm:$0xff]
        %v1851 = vld [vmem:[%s6 + $0x10] sm:$0xff]
        %v1852 = vld [vmem:[%s6 + $0x18] sm:$0xff]
        %v1853 = vld [vmem:[%s6 + $0x20] sm:$0xff]
        %v1854 = vld [vmem:[%s6 + $0x28] sm:$0xff]
        %v1855 = vld [vmem:[%s6 + $0x30] sm:$0xff]
        %v1856 = vld [vmem:[%s6 + $0x38] sm:$0xff]
        %v1857 = vld [vmem:[%s6 + $0x40] sm:$0xff]
        %v1858 = vld [vmem:[%s6 + $0x48] sm:$0xff]
        %v1859 = vld [vmem:[%s6 + $0x50] sm:$0xff]
        %v1860 = vld [vmem:[%s6 + $0x58] sm:$0xff]
        %v1861 = vld [vmem:[%s6 + $0x60] sm:$0xff]
        %v1862 = vld [vmem:[%s6 + $0x68] sm:$0xff]
        %v1863 = vld [vmem:[%s6 + $0x70] sm:$0xff]
        %v1864 = vld [vmem:[%s6 + $0x78] sm:$0xff]
        %v1865 = vld [vmem:[%s6 + $0x80] sm:$0xff]
        %v1866 = vld [vmem:[%s6 + $0x88] sm:$0xff]
        %v1867 = vld [vmem:[#allocation3] sm:$0xfe]
        %v1868 = vld [vmem:[#allocation3 + $0x8] sm:$0xfe]
        %v1869 = vld [vmem:[#allocation3 + $0x20] sm:$0x1]
        %v1870 = vld [vmem:[#allocation3 + $0x28] sm:$0x1]
        %s1871 = scalar_lea.vmem %s6, 144
        %v1872 = vld [vmem:[%s1871] sm:$0xff]
        %v1873 = vld [vmem:[%s1871 + $0x8] sm:$0xff]
        %v1874 = vld [vmem:[%s1871 + $0x10] sm:$0xff]
        %v1875 = vld [vmem:[%s1871 + $0x18] sm:$0xff]
        %v1876 = vld [vmem:[%s1871 + $0x20] sm:$0xff]
        %v1877 = vld [vmem:[%s1871 + $0x28] sm:$0xff]
        %v1878 = vld [vmem:[%s1871 + $0x30] sm:$0xff]
        %v1879 = vld [vmem:[%s1871 + $0x38] sm:$0xff]
        %v1880 = vld [vmem:[%s1871 + $0x40] sm:$0xff]
        %v1881 = vld [vmem:[%s1871 + $0x48] sm:$0xff]
        %v1882 = vld [vmem:[%s1871 + $0x50] sm:$0xff]
        %v1883 = vld [vmem:[%s1871 + $0x58] sm:$0xff]
        %v1884 = vld [vmem:[%s1871 + $0x60] sm:$0xff]
        %v1885 = vld [vmem:[%s1871 + $0x68] sm:$0xff]
        %v1886 = vld [vmem:[%s1871 + $0x70] sm:$0xff]
        %v1887 = vld [vmem:[%s1871 + $0x78] sm:$0xff]
        %v1888 = vld [vmem:[%s1871 + $0x80] sm:$0xff]
        %v1889 = vld [vmem:[%s1871 + $0x88] sm:$0xff]
        %vm1896 = vcmask 1046528
        %v1897 = vrot.slane %v1867, 1
        %v1898 = vrot.slane %v1847, 1
        %v1899 = vsel %vm1896, %v1897, %v1898
        %v1900 = vrot.slane %v1868, 1
        %v1901 = vrot.slane %v1848, 1
        %v1902 = vsel %vm1896, %v1900, %v1901
        %v1903 = vrot.slane %v1869, 1
        %v1904 = vsel %vm1896, %v1898, %v1903
        %v1905 = vrot.slane %v1870, 1
        %v1906 = vsel %vm1896, %v1901, %v1905
        %vm1909 = vcmask 130048
        %v1910 = vsel %vm1909, %v1902, 0
        %v1912 = vsel %vm1909, %v1906, 0
        %1914 = vmatprep.subr.mxu0 0.0
        %1915 = vmatpush1.msra.mxu0 %v1872
        %1916 = vmatprep.subr.mxu0 0.0
        %1917 = vmatpush1.msra.mxu0 %v1873
        %1918 = vmatprep.subr.mxu0 0.0
        %1919 = vmatpush1.msra.mxu0 %v1874
        %1920 = vmatprep.subr.mxu0 0.0
        %1921 = vmatpush1.msra.mxu0 %v1875
        %1922 = vmatprep.subr.mxu0 0.0
        %1923 = vmatpush1.msra.mxu0 %v1876
        %1924 = vmatprep.subr.mxu0 0.0
        %1925 = vmatpush1.msra.mxu0 %v1877
        %1926 = vmatprep.subr.mxu0 0.0
        %1927 = vmatpush1.msra.mxu0 %v1878
        %1928 = vmatprep.subr.mxu0 0.0
        %1929 = vmatpush1.msra.mxu0 %v1879
        %1930 = vmatprep.subr.mxu0 0.0
        %1931 = vmatpush1.msra.mxu0 %v1880
        %1932 = vmatprep.subr.mxu0 0.0
        %1933 = vmatpush1.msra.mxu0 %v1881
        %1934 = vmatprep.subr.mxu0 0.0
        %1935 = vmatpush1.msra.mxu0 %v1882
        %1936 = vmatprep.subr.mxu0 0.0
        %1937 = vmatpush1.msra.mxu0 %v1883
        %1938 = vmatprep.subr.mxu0 0.0
        %1939 = vmatpush1.msra.mxu0 %v1884
        %1940 = vmatprep.subr.mxu0 0.0
        %1941 = vmatpush1.msra.mxu0 %v1885
        %1942 = vmatprep.subr.mxu0 0.0
        %1943 = vmatpush1.msra.mxu0 %v1886
        %1944 = vmatprep.subr.mxu0 0.0
        %1945 = vmatpush1.msra.mxu0 %v1887
        %1946 = vmatprep.subr.mxu0 0.0
        %1947 = vmatpush1.msra.mxu0 %v1888
        %1948 = vmatprep.subr.mxu0 0.0
        %1949 = vmatpush1.msra.mxu0 %v1889
        %1950 = vmatprep.subr.mxu0 0.0
        %1951 = vmatpush1.msra.mxu0 0.0
        %1952 = vmatprep.subr.mxu0 0.0
        %1953 = vmatpush1.msra.mxu0 0.0
        %1954 = vmatprep.subr.mxu0 0.0
        %1955 = vmatpush1.msra.mxu0 0.0
        %1956 = vmatprep.subr.mxu0 0.0
        %1957 = vmatpush1.msra.mxu0 0.0
        %1958 = vmatprep.subr.mxu0 0.0
        %1959 = vmatpush1.msra.mxu0 0.0
        %1960 = vmatprep.subr.mxu0 0.0
        %1961 = vmatpush1.msra.mxu0 0.0
        %1962 = vmatprep.subr.mxu0 0.0
        %1963 = vmatpush1.msra.mxu0 0.0
        %1964 = vmatprep.subr.mxu0 0.0
        %1965 = vmatpush1.msra.mxu0 0.0
        %1966 = vmatprep.subr.mxu0 0.0
        %1967 = vmatpush1.msra.mxu0 0.0
        %1968 = vmatprep.subr.mxu0 0.0
        %1969 = vmatpush1.msra.mxu0 0.0
        %1970 = vmatprep.subr.mxu0 0.0
        %1971 = vmatpush1.msra.mxu0 0.0
        %1972 = vmatprep.subr.mxu0 0.0
        %1973 = vmatpush1.msra.mxu0 0.0
        %1974 = vmatprep.subr.mxu0 0.0
        %1975 = vmatpush1.msra.mxu0 0.0
        %1976 = vmatprep.subr.mxu0 0.0
        %1977 = vmatpush1.msra.mxu0 0.0
        %1978 = vmatprep.mubr.f32.mxu0 %v1910
        %1979 = vmatmul.mubr.f32.gmra.mrb[0].mxu0 %v1899
        %v1980 = vpop.f32.mrb[0].mxu0
        %v1981 = vadd.f32 0.0, %v1980
        %v1982 = vpop.f32.mrb[0].mxu0
        %1983 = vmatprep.mubr.f32.mxu0 %v1912
        %1984 = vmatmul.mubr.f32.gmra.mrb[0].mxu0 %v1904
        %v1985 = vpop.f32.mrb[0].mxu0
        %v1986 = vadd.f32 0.0, %v1985
        %v1987 = vpop.f32.mrb[0].mxu0
        %1988 = vdwg.mxu0
        %v1990 = vsel %vm1909, %v1846, 0
        %v1992 = vsel %vm1909, %v1848, 0
        %1994 = vmatprep.subr.mxu0 0.0
        %1995 = vmatpush1.msra.mxu0 %v1849
        %1996 = vmatprep.subr.mxu0 0.0
        %1997 = vmatpush1.msra.mxu0 %v1850
        %1998 = vmatprep.subr.mxu0 0.0
        %1999 = vmatpush1.msra.mxu0 %v1851
        %2000 = vmatprep.subr.mxu0 0.0
        %2001 = vmatpush1.msra.mxu0 %v1852
        %2002 = vmatprep.subr.mxu0 0.0
        %2003 = vmatpush1.msra.mxu0 %v1853
        %2004 = vmatprep.subr.mxu0 0.0
        %2005 = vmatpush1.msra.mxu0 %v1854
        %2006 = vmatprep.subr.mxu0 0.0
        %2007 = vmatpush1.msra.mxu0 %v1855
        %2008 = vmatprep.subr.mxu0 0.0
        %2009 = vmatpush1.msra.mxu0 %v1856
        %2010 = vmatprep.subr.mxu0 0.0
        %2011 = vmatpush1.msra.mxu0 %v1857
        %2012 = vmatprep.subr.mxu0 0.0
        %2013 = vmatpush1.msra.mxu0 %v1858
        %2014 = vmatprep.subr.mxu0 0.0
        %2015 = vmatpush1.msra.mxu0 %v1859
        %2016 = vmatprep.subr.mxu0 0.0
        %2017 = vmatpush1.msra.mxu0 %v1860
        %2018 = vmatprep.subr.mxu0 0.0
        %2019 = vmatpush1.msra.mxu0 %v1861
        %2020 = vmatprep.subr.mxu0 0.0
        %2021 = vmatpush1.msra.mxu0 %v1862
        %2022 = vmatprep.subr.mxu0 0.0
        %2023 = vmatpush1.msra.mxu0 %v1863
        %2024 = vmatprep.subr.mxu0 0.0
        %2025 = vmatpush1.msra.mxu0 %v1864
        %2026 = vmatprep.subr.mxu0 0.0
        %2027 = vmatpush1.msra.mxu0 %v1865
        %2028 = vmatprep.subr.mxu0 0.0
        %2029 = vmatpush1.msra.mxu0 %v1866
        %2030 = vmatprep.subr.mxu0 0.0
        %2031 = vmatpush1.msra.mxu0 0.0
        %2032 = vmatprep.subr.mxu0 0.0
        %2033 = vmatpush1.msra.mxu0 0.0
        %2034 = vmatprep.subr.mxu0 0.0
        %2035 = vmatpush1.msra.mxu0 0.0
        %2036 = vmatprep.subr.mxu0 0.0
        %2037 = vmatpush1.msra.mxu0 0.0
        %2038 = vmatprep.subr.mxu0 0.0
        %2039 = vmatpush1.msra.mxu0 0.0
        %2040 = vmatprep.subr.mxu0 0.0
        %2041 = vmatpush1.msra.mxu0 0.0
        %2042 = vmatprep.subr.mxu0 0.0
        %2043 = vmatpush1.msra.mxu0 0.0
        %2044 = vmatprep.subr.mxu0 0.0
        %2045 = vmatpush1.msra.mxu0 0.0
        %2046 = vmatprep.subr.mxu0 0.0
        %2047 = vmatpush1.msra.mxu0 0.0
        %2048 = vmatprep.subr.mxu0 0.0
        %2049 = vmatpush1.msra.mxu0 0.0
        %2050 = vmatprep.subr.mxu0 0.0
        %2051 = vmatpush1.msra.mxu0 0.0
        %2052 = vmatprep.subr.mxu0 0.0
        %2053 = vmatpush1.msra.mxu0 0.0
        %2054 = vmatprep.subr.mxu0 0.0
        %2055 = vmatpush1.msra.mxu0 0.0
        %2056 = vmatprep.subr.mxu0 0.0
        %2057 = vmatpush1.msra.mxu0 0.0
        %2058 = vmatprep.mubr.f32.mxu0 %v1990
        %2059 = vmatmul.mubr.f32.gmra.mrb[0].mxu0 %v1845
        %v2060 = vpop.f32.mrb[0].mxu0
        %v2061 = vadd.f32 %v1981, %v2060
        %v2062 = vpop.f32.mrb[0].mxu0
        %2063 = vmatprep.mubr.f32.mxu0 %v1992
        %2064 = vmatmul.mubr.f32.gmra.mrb[0].mxu0 %v1847
        %v2065 = vpop.f32.mrb[0].mxu0
        %v2066 = vadd.f32 %v1986, %v2065
        %v2067 = vpop.f32.mrb[0].mxu0
        %2068 = vdwg.mxu0
        %v2069 = vld [vmem:[#allocation3] sm:$0xfc]
        %v2070 = vld [vmem:[#allocation3 + $0x8] sm:$0xfc]
        %v2071 = vld [vmem:[#allocation3 + $0x20] sm:$0x3]
        %v2072 = vld [vmem:[#allocation3 + $0x28] sm:$0x3]
        %s2073 = scalar_lea.vmem %s6, 288
        %v2074 = vld [vmem:[%s2073] sm:$0xff]
        %v2075 = vld [vmem:[%s2073 + $0x8] sm:$0xff]
        %v2076 = vld [vmem:[%s2073 + $0x10] sm:$0xff]
        %v2077 = vld [vmem:[%s2073 + $0x18] sm:$0xff]
        %v2078 = vld [vmem:[%s2073 + $0x20] sm:$0xff]
        %v2079 = vld [vmem:[%s2073 + $0x28] sm:$0xff]
        %v2080 = vld [vmem:[%s2073 + $0x30] sm:$0xff]
        %v2081 = vld [vmem:[%s2073 + $0x38] sm:$0xff]
        %v2082 = vld [vmem:[%s2073 + $0x40] sm:$0xff]
        %v2083 = vld [vmem:[%s2073 + $0x48] sm:$0xff]
        %v2084 = vld [vmem:[%s2073 + $0x50] sm:$0xff]
        %v2085 = vld [vmem:[%s2073 + $0x58] sm:$0xff]
        %v2086 = vld [vmem:[%s2073 + $0x60] sm:$0xff]
        %v2087 = vld [vmem:[%s2073 + $0x68] sm:$0xff]
        %v2088 = vld [vmem:[%s2073 + $0x70] sm:$0xff]
        %v2089 = vld [vmem:[%s2073 + $0x78] sm:$0xff]
        %v2090 = vld [vmem:[%s2073 + $0x80] sm:$0xff]
        %v2091 = vld [vmem:[%s2073 + $0x88] sm:$0xff]
        %vm2096 = vcmask 1045504
        %v2097 = vrot.slane %v2069, 2
        %v2098 = vrot.slane %v1847, 2
        %v2099 = vsel %vm2096, %v2097, %v2098
        %v2100 = vrot.slane %v2070, 2
        %v2101 = vrot.slane %v1848, 2
        %v2102 = vsel %vm2096, %v2100, %v2101
        %v2103 = vrot.slane %v2071, 2
        %v2104 = vsel %vm2096, %v2098, %v2103
        %v2105 = vrot.slane %v2072, 2
        %v2106 = vsel %vm2096, %v2101, %v2105
        %v2109 = vsel %vm1909, %v2102, 0
        %v2111 = vsel %vm1909, %v2106, 0
        %2113 = vmatprep.subr.mxu0 0.0
        %2114 = vmatpush1.msra.mxu0 %v2074
        %2115 = vmatprep.subr.mxu0 0.0
        %2116 = vmatpush1.msra.mxu0 %v2075
        %2117 = vmatprep.subr.mxu0 0.0
        %2118 = vmatpush1.msra.mxu0 %v2076
        %2119 = vmatprep.subr.mxu0 0.0
        %2120 = vmatpush1.msra.mxu0 %v2077
        %2121 = vmatprep.subr.mxu0 0.0
        %2122 = vmatpush1.msra.mxu0 %v2078
        %2123 = vmatprep.subr.mxu0 0.0
        %2124 = vmatpush1.msra.mxu0 %v2079
        %2125 = vmatprep.subr.mxu0 0.0
        %2126 = vmatpush1.msra.mxu0 %v2080
        %2127 = vmatprep.subr.mxu0 0.0
        %2128 = vmatpush1.msra.mxu0 %v2081
        %2129 = vmatprep.subr.mxu0 0.0
        %2130 = vmatpush1.msra.mxu0 %v2082
        %2131 = vmatprep.subr.mxu0 0.0
        %2132 = vmatpush1.msra.mxu0 %v2083
        %2133 = vmatprep.subr.mxu0 0.0
        %2134 = vmatpush1.msra.mxu0 %v2084
        %2135 = vmatprep.subr.mxu0 0.0
        %2136 = vmatpush1.msra.mxu0 %v2085
        %2137 = vmatprep.subr.mxu0 0.0
        %2138 = vmatpush1.msra.mxu0 %v2086
        %2139 = vmatprep.subr.mxu0 0.0
        %2140 = vmatpush1.msra.mxu0 %v2087
        %2141 = vmatprep.subr.mxu0 0.0
        %2142 = vmatpush1.msra.mxu0 %v2088
        %2143 = vmatprep.subr.mxu0 0.0
        %2144 = vmatpush1.msra.mxu0 %v2089
        %2145 = vmatprep.subr.mxu0 0.0
        %2146 = vmatpush1.msra.mxu0 %v2090
        %2147 = vmatprep.subr.mxu0 0.0
        %2148 = vmatpush1.msra.mxu0 %v2091
        %2149 = vmatprep.subr.mxu0 0.0
        %2150 = vmatpush1.msra.mxu0 0.0
        %2151 = vmatprep.subr.mxu0 0.0
        %2152 = vmatpush1.msra.mxu0 0.0
        %2153 = vmatprep.subr.mxu0 0.0
        %2154 = vmatpush1.msra.mxu0 0.0
        %2155 = vmatprep.subr.mxu0 0.0
        %2156 = vmatpush1.msra.mxu0 0.0
        %2157 = vmatprep.subr.mxu0 0.0
        %2158 = vmatpush1.msra.mxu0 0.0
        %2159 = vmatprep.subr.mxu0 0.0
        %2160 = vmatpush1.msra.mxu0 0.0
        %2161 = vmatprep.subr.mxu0 0.0
        %2162 = vmatpush1.msra.mxu0 0.0
        %2163 = vmatprep.subr.mxu0 0.0
        %2164 = vmatpush1.msra.mxu0 0.0
        %2165 = vmatprep.subr.mxu0 0.0
        %2166 = vmatpush1.msra.mxu0 0.0
        %2167 = vmatprep.subr.mxu0 0.0
        %2168 = vmatpush1.msra.mxu0 0.0
        %2169 = vmatprep.subr.mxu0 0.0
        %2170 = vmatpush1.msra.mxu0 0.0
        %2171 = vmatprep.subr.mxu0 0.0
        %2172 = vmatpush1.msra.mxu0 0.0
        %2173 = vmatprep.subr.mxu0 0.0
        %2174 = vmatpush1.msra.mxu0 0.0
        %2175 = vmatprep.subr.mxu0 0.0
        %2176 = vmatpush1.msra.mxu0 0.0
        %2177 = vmatprep.mubr.f32.mxu0 %v2109
        %2178 = vmatmul.mubr.f32.gmra.mrb[0].mxu0 %v2099
        %v2179 = vpop.f32.mrb[0].mxu0
        %v2180 = vadd.f32 0.0, %v2179
        %v2181 = vpop.f32.mrb[0].mxu0
        %2182 = vmatprep.mubr.f32.mxu0 %v2111
        %2183 = vmatmul.mubr.f32.gmra.mrb[0].mxu0 %v2104
        %v2184 = vpop.f32.mrb[0].mxu0
        %v2185 = vadd.f32 0.0, %v2184
        %v2186 = vpop.f32.mrb[0].mxu0
        %2187 = vdwg.mxu0
        %v2188 = vadd.f32 %v2061, %v2180
        %v2189 = vadd.f32 %v2066, %v2185
        %v2191 = vlaneseq
        %v2192 = vshrl.u32 %v2191, 7
        %v2193 = vsub.s32 0, %v2192
        %v2194 = vrot.slane %v1818, %v2193
        %v2196 = vadd.f32 %v2188, %v2194
        %v2197 = vadd.f32 %v2189, %v2194
        %v2198 = vmax.f32 %v2196, 0.0
        %v2199 = vmax.f32 %v2197, 0.0
        %v2200 = vstv %s860
        %v2201 = vmul.f32 %v2200, %v2198
        %v2202 = vmul.f32 %v2200, %v2199
        %v2203 = vadd.f32 %v2201, %v887
        %v2204 = vadd.f32 %v2202, %v888
        %v2205 = vld [vmem:[#allocation12] sm:$0x1]
        %v2208 = vrot.slane %v2203, 7
        %v2209 = vrot.slane %v2204, 7
        %v2210 = vsel %vm1821, %v2208, %v2209
        %2211 = vrot.lane.b32.xlu0 %v2208, 8
        %v2212 = vpop.permute.xlu0 %2211
        %2213 = vrot.lane.b32.xlu0 %v2210, 8
        %v2214 = vpop.permute.xlu0 %2213
        %2215 = vrot.lane.b32.xlu0 %v2209, 8
        %v2216 = vpop.permute.xlu0 %2215
        %2220 = vst.msk [vmem:[#allocation3] sm:$0xfe] %vm1834, %v2212
        %2221 = vst.msk [vmem:[#allocation3 + $0x8] sm:$0xfe] %vm1836, %v2212
        %2222 = vst.msk [vmem:[#allocation3 + $0x10] sm:$0xff] %vm1838, %v2214
        %2223 = vst.msk [vmem:[#allocation3 + $0x18] sm:$0xff] %vm1486, %v2214
        %2224 = vst.msk [vmem:[#allocation3 + $0x20] sm:$0x1] %vm1841, %v2216
        %2225 = vst.msk [vmem:[#allocation3 + $0x28] sm:$0x1] %vm1843, %v2216
        %v2226 = vld [vmem:[#allocation3] sm:$0xff]
        %v2227 = vld [vmem:[#allocation3 + $0x8] sm:$0xff]
        %v2228 = vld [vmem:[#allocation3 + $0x10] sm:$0xff]
        %v2229 = vld [vmem:[#allocation3 + $0x18] sm:$0xff]
        %v2230 = vld [vmem:[%s8] sm:$0xff]
        %v2231 = vld [vmem:[%s8 + $0x8] sm:$0xff]
        %v2232 = vld [vmem:[%s8 + $0x10] sm:$0xff]
        %v2233 = vld [vmem:[%s8 + $0x18] sm:$0xff]
        %v2234 = vld [vmem:[%s8 + $0x20] sm:$0xff]
        %v2235 = vld [vmem:[%s8 + $0x28] sm:$0xff]
        %v2236 = vld [vmem:[%s8 + $0x30] sm:$0xff]
        %v2237 = vld [vmem:[%s8 + $0x38] sm:$0xff]
        %v2238 = vld [vmem:[%s8 + $0x40] sm:$0xff]
        %v2239 = vld [vmem:[%s8 + $0x48] sm:$0xff]
        %v2240 = vld [vmem:[%s8 + $0x50] sm:$0xff]
        %v2241 = vld [vmem:[%s8 + $0x58] sm:$0xff]
        %v2242 = vld [vmem:[%s8 + $0x60] sm:$0xff]
        %v2243 = vld [vmem:[%s8 + $0x68] sm:$0xff]
        %v2244 = vld [vmem:[%s8 + $0x70] sm:$0xff]
        %v2245 = vld [vmem:[%s8 + $0x78] sm:$0xff]
        %v2246 = vld [vmem:[%s8 + $0x80] sm:$0xff]
        %v2247 = vld [vmem:[%s8 + $0x88] sm:$0xff]
        %v2248 = vld [vmem:[#allocation3] sm:$0xfe]
        %v2249 = vld [vmem:[#allocation3 + $0x8] sm:$0xfe]
        %v2250 = vld [vmem:[#allocation3 + $0x20] sm:$0x1]
        %v2251 = vld [vmem:[#allocation3 + $0x28] sm:$0x1]
        %s2252 = scalar_lea.vmem %s8, 144
        %v2253 = vld [vmem:[%s2252] sm:$0xff]
        %v2254 = vld [vmem:[%s2252 + $0x8] sm:$0xff]
        %v2255 = vld [vmem:[%s2252 + $0x10] sm:$0xff]
        %v2256 = vld [vmem:[%s2252 + $0x18] sm:$0xff]
        %v2257 = vld [vmem:[%s2252 + $0x20] sm:$0xff]
        %v2258 = vld [vmem:[%s2252 + $0x28] sm:$0xff]
        %v2259 = vld [vmem:[%s2252 + $0x30] sm:$0xff]
        %v2260 = vld [vmem:[%s2252 + $0x38] sm:$0xff]
        %v2261 = vld [vmem:[%s2252 + $0x40] sm:$0xff]
        %v2262 = vld [vmem:[%s2252 + $0x48] sm:$0xff]
        %v2263 = vld [vmem:[%s2252 + $0x50] sm:$0xff]
        %v2264 = vld [vmem:[%s2252 + $0x58] sm:$0xff]
        %v2265 = vld [vmem:[%s2252 + $0x60] sm:$0xff]
        %v2266 = vld [vmem:[%s2252 + $0x68] sm:$0xff]
        %v2267 = vld [vmem:[%s2252 + $0x70] sm:$0xff]
        %v2268 = vld [vmem:[%s2252 + $0x78] sm:$0xff]
        %v2269 = vld [vmem:[%s2252 + $0x80] sm:$0xff]
        %v2270 = vld [vmem:[%s2252 + $0x88] sm:$0xff]
        %v2277 = vrot.slane %v2248, 1
        %v2278 = vrot.slane %v2228, 1
        %v2279 = vsel %vm1896, %v2277, %v2278
        %v2280 = vrot.slane %v2249, 1
        %v2281 = vrot.slane %v2229, 1
        %v2282 = vsel %vm1896, %v2280, %v2281
        %v2283 = vrot.slane %v2250, 1
        %v2284 = vsel %vm1896, %v2278, %v2283
        %v2285 = vrot.slane %v2251, 1
        %v2286 = vsel %vm1896, %v2281, %v2285
        %v2289 = vsel %vm1909, %v2282, 0
        %v2291 = vsel %vm1909, %v2286, 0
        %2293 = vmatprep.subr.mxu0 0.0
        %2294 = vmatpush1.msra.mxu0 %v2253
        %2295 = vmatprep.subr.mxu0 0.0
        %2296 = vmatpush1.msra.mxu0 %v2254
        %2297 = vmatprep.subr.mxu0 0.0
        %2298 = vmatpush1.msra.mxu0 %v2255
        %2299 = vmatprep.subr.mxu0 0.0
        %2300 = vmatpush1.msra.mxu0 %v2256
        %2301 = vmatprep.subr.mxu0 0.0
        %2302 = vmatpush1.msra.mxu0 %v2257
        %2303 = vmatprep.subr.mxu0 0.0
        %2304 = vmatpush1.msra.mxu0 %v2258
        %2305 = vmatprep.subr.mxu0 0.0
        %2306 = vmatpush1.msra.mxu0 %v2259
        %2307 = vmatprep.subr.mxu0 0.0
        %2308 = vmatpush1.msra.mxu0 %v2260
        %2309 = vmatprep.subr.mxu0 0.0
        %2310 = vmatpush1.msra.mxu0 %v2261
        %2311 = vmatprep.subr.mxu0 0.0
        %2312 = vmatpush1.msra.mxu0 %v2262
        %2313 = vmatprep.subr.mxu0 0.0
        %2314 = vmatpush1.msra.mxu0 %v2263
        %2315 = vmatprep.subr.mxu0 0.0
        %2316 = vmatpush1.msra.mxu0 %v2264
        %2317 = vmatprep.subr.mxu0 0.0
        %2318 = vmatpush1.msra.mxu0 %v2265
        %2319 = vmatprep.subr.mxu0 0.0
        %2320 = vmatpush1.msra.mxu0 %v2266
        %2321 = vmatprep.subr.mxu0 0.0
        %2322 = vmatpush1.msra.mxu0 %v2267
        %2323 = vmatprep.subr.mxu0 0.0
        %2324 = vmatpush1.msra.mxu0 %v2268
        %2325 = vmatprep.subr.mxu0 0.0
        %2326 = vmatpush1.msra.mxu0 %v2269
        %2327 = vmatprep.subr.mxu0 0.0
        %2328 = vmatpush1.msra.mxu0 %v2270
        %2329 = vmatprep.subr.mxu0 0.0
        %2330 = vmatpush1.msra.mxu0 0.0
        %2331 = vmatprep.subr.mxu0 0.0
        %2332 = vmatpush1.msra.mxu0 0.0
        %2333 = vmatprep.subr.mxu0 0.0
        %2334 = vmatpush1.msra.mxu0 0.0
        %2335 = vmatprep.subr.mxu0 0.0
        %2336 = vmatpush1.msra.mxu0 0.0
        %2337 = vmatprep.subr.mxu0 0.0
        %2338 = vmatpush1.msra.mxu0 0.0
        %2339 = vmatprep.subr.mxu0 0.0
        %2340 = vmatpush1.msra.mxu0 0.0
        %2341 = vmatprep.subr.mxu0 0.0
        %2342 = vmatpush1.msra.mxu0 0.0
        %2343 = vmatprep.subr.mxu0 0.0
        %2344 = vmatpush1.msra.mxu0 0.0
        %2345 = vmatprep.subr.mxu0 0.0
        %2346 = vmatpush1.msra.mxu0 0.0
        %2347 = vmatprep.subr.mxu0 0.0
        %2348 = vmatpush1.msra.mxu0 0.0
        %2349 = vmatprep.subr.mxu0 0.0
        %2350 = vmatpush1.msra.mxu0 0.0
        %2351 = vmatprep.subr.mxu0 0.0
        %2352 = vmatpush1.msra.mxu0 0.0
        %2353 = vmatprep.subr.mxu0 0.0
        %2354 = vmatpush1.msra.mxu0 0.0
        %2355 = vmatprep.subr.mxu0 0.0
        %2356 = vmatpush1.msra.mxu0 0.0
        %2357 = vmatprep.mubr.f32.mxu0 %v2289
        %2358 = vmatmul.mubr.f32.gmra.mrb[0].mxu0 %v2279
        %v2359 = vpop.f32.mrb[0].mxu0
        %v2360 = vadd.f32 0.0, %v2359
        %v2361 = vpop.f32.mrb[0].mxu0
        %2362 = vmatprep.mubr.f32.mxu0 %v2291
        %2363 = vmatmul.mubr.f32.gmra.mrb[0].mxu0 %v2284
        %v2364 = vpop.f32.mrb[0].mxu0
        %v2365 = vadd.f32 0.0, %v2364
        %v2366 = vpop.f32.mrb[0].mxu0
        %2367 = vdwg.mxu0
        %v2369 = vsel %vm1909, %v2227, 0
        %v2371 = vsel %vm1909, %v2229, 0
        %2373 = vmatprep.subr.mxu0 0.0
        %2374 = vmatpush1.msra.mxu0 %v2230
        %2375 = vmatprep.subr.mxu0 0.0
        %2376 = vmatpush1.msra.mxu0 %v2231
        %2377 = vmatprep.subr.mxu0 0.0
        %2378 = vmatpush1.msra.mxu0 %v2232
        %2379 = vmatprep.subr.mxu0 0.0
        %2380 = vmatpush1.msra.mxu0 %v2233
        %2381 = vmatprep.subr.mxu0 0.0
        %2382 = vmatpush1.msra.mxu0 %v2234
        %2383 = vmatprep.subr.mxu0 0.0
        %2384 = vmatpush1.msra.mxu0 %v2235
        %2385 = vmatprep.subr.mxu0 0.0
        %2386 = vmatpush1.msra.mxu0 %v2236
        %2387 = vmatprep.subr.mxu0 0.0
        %2388 = vmatpush1.msra.mxu0 %v2237
        %2389 = vmatprep.subr.mxu0 0.0
        %2390 = vmatpush1.msra.mxu0 %v2238
        %2391 = vmatprep.subr.mxu0 0.0
        %2392 = vmatpush1.msra.mxu0 %v2239
        %2393 = vmatprep.subr.mxu0 0.0
        %2394 = vmatpush1.msra.mxu0 %v2240
        %2395 = vmatprep.subr.mxu0 0.0
        %2396 = vmatpush1.msra.mxu0 %v2241
        %2397 = vmatprep.subr.mxu0 0.0
        %2398 = vmatpush1.msra.mxu0 %v2242
        %2399 = vmatprep.subr.mxu0 0.0
        %2400 = vmatpush1.msra.mxu0 %v2243
        %2401 = vmatprep.subr.mxu0 0.0
        %2402 = vmatpush1.msra.mxu0 %v2244
        %2403 = vmatprep.subr.mxu0 0.0
        %2404 = vmatpush1.msra.mxu0 %v2245
        %2405 = vmatprep.subr.mxu0 0.0
        %2406 = vmatpush1.msra.mxu0 %v2246
        %2407 = vmatprep.subr.mxu0 0.0
        %2408 = vmatpush1.msra.mxu0 %v2247
        %2409 = vmatprep.subr.mxu0 0.0
        %2410 = vmatpush1.msra.mxu0 0.0
        %2411 = vmatprep.subr.mxu0 0.0
        %2412 = vmatpush1.msra.mxu0 0.0
        %2413 = vmatprep.subr.mxu0 0.0
        %2414 = vmatpush1.msra.mxu0 0.0
        %2415 = vmatprep.subr.mxu0 0.0
        %2416 = vmatpush1.msra.mxu0 0.0
        %2417 = vmatprep.subr.mxu0 0.0
        %2418 = vmatpush1.msra.mxu0 0.0
        %2419 = vmatprep.subr.mxu0 0.0
        %2420 = vmatpush1.msra.mxu0 0.0
        %2421 = vmatprep.subr.mxu0 0.0
        %2422 = vmatpush1.msra.mxu0 0.0
        %2423 = vmatprep.subr.mxu0 0.0
        %2424 = vmatpush1.msra.mxu0 0.0
        %2425 = vmatprep.subr.mxu0 0.0
        %2426 = vmatpush1.msra.mxu0 0.0
        %2427 = vmatprep.subr.mxu0 0.0
        %2428 = vmatpush1.msra.mxu0 0.0
        %2429 = vmatprep.subr.mxu0 0.0
        %2430 = vmatpush1.msra.mxu0 0.0
        %2431 = vmatprep.subr.mxu0 0.0
        %2432 = vmatpush1.msra.mxu0 0.0
        %2433 = vmatprep.subr.mxu0 0.0
        %2434 = vmatpush1.msra.mxu0 0.0
        %2435 = vmatprep.subr.mxu0 0.0
        %2436 = vmatpush1.msra.mxu0 0.0
        %2437 = vmatprep.mubr.f32.mxu0 %v2369
        %2438 = vmatmul.mubr.f32.gmra.mrb[0].mxu0 %v2226
        %v2439 = vpop.f32.mrb[0].mxu0
        %v2440 = vadd.f32 %v2360, %v2439
        %v2441 = vpop.f32.mrb[0].mxu0
        %2442 = vmatprep.mubr.f32.mxu0 %v2371
        %2443 = vmatmul.mubr.f32.gmra.mrb[0].mxu0 %v2228
        %v2444 = vpop.f32.mrb[0].mxu0
        %v2445 = vadd.f32 %v2365, %v2444
        %v2446 = vpop.f32.mrb[0].mxu0
        %2447 = vdwg.mxu0
        %v2448 = vld [vmem:[#allocation3] sm:$0xfc]
        %v2449 = vld [vmem:[#allocation3 + $0x8] sm:$0xfc]
        %v2450 = vld [vmem:[#allocation3 + $0x20] sm:$0x3]
        %v2451 = vld [vmem:[#allocation3 + $0x28] sm:$0x3]
        %s2452 = scalar_lea.vmem %s8, 288
        %v2453 = vld [vmem:[%s2452] sm:$0xff]
        %v2454 = vld [vmem:[%s2452 + $0x8] sm:$0xff]
        %v2455 = vld [vmem:[%s2452 + $0x10] sm:$0xff]
        %v2456 = vld [vmem:[%s2452 + $0x18] sm:$0xff]
        %v2457 = vld [vmem:[%s2452 + $0x20] sm:$0xff]
        %v2458 = vld [vmem:[%s2452 + $0x28] sm:$0xff]
        %v2459 = vld [vmem:[%s2452 + $0x30] sm:$0xff]
        %v2460 = vld [vmem:[%s2452 + $0x38] sm:$0xff]
        %v2461 = vld [vmem:[%s2452 + $0x40] sm:$0xff]
        %v2462 = vld [vmem:[%s2452 + $0x48] sm:$0xff]
        %v2463 = vld [vmem:[%s2452 + $0x50] sm:$0xff]
        %v2464 = vld [vmem:[%s2452 + $0x58] sm:$0xff]
        %v2465 = vld [vmem:[%s2452 + $0x60] sm:$0xff]
        %v2466 = vld [vmem:[%s2452 + $0x68] sm:$0xff]
        %v2467 = vld [vmem:[%s2452 + $0x70] sm:$0xff]
        %v2468 = vld [vmem:[%s2452 + $0x78] sm:$0xff]
        %v2469 = vld [vmem:[%s2452 + $0x80] sm:$0xff]
        %v2470 = vld [vmem:[%s2452 + $0x88] sm:$0xff]
        %v2475 = vrot.slane %v2448, 2
        %v2476 = vrot.slane %v2228, 2
        %v2477 = vsel %vm2096, %v2475, %v2476
        %v2478 = vrot.slane %v2449, 2
        %v2479 = vrot.slane %v2229, 2
        %v2480 = vsel %vm2096, %v2478, %v2479
        %v2481 = vrot.slane %v2450, 2
        %v2482 = vsel %vm2096, %v2476, %v2481
        %v2483 = vrot.slane %v2451, 2
        %v2484 = vsel %vm2096, %v2479, %v2483
        %v2487 = vsel %vm1909, %v2480, 0
        %v2489 = vsel %vm1909, %v2484, 0
        %2491 = vmatprep.subr.mxu0 0.0
        %2492 = vmatpush1.msra.mxu0 %v2453
        %2493 = vmatprep.subr.mxu0 0.0
        %2494 = vmatpush1.msra.mxu0 %v2454
        %2495 = vmatprep.subr.mxu0 0.0
        %2496 = vmatpush1.msra.mxu0 %v2455
        %2497 = vmatprep.subr.mxu0 0.0
        %2498 = vmatpush1.msra.mxu0 %v2456
        %2499 = vmatprep.subr.mxu0 0.0
        %2500 = vmatpush1.msra.mxu0 %v2457
        %2501 = vmatprep.subr.mxu0 0.0
        %2502 = vmatpush1.msra.mxu0 %v2458
        %2503 = vmatprep.subr.mxu0 0.0
        %2504 = vmatpush1.msra.mxu0 %v2459
        %2505 = vmatprep.subr.mxu0 0.0
        %2506 = vmatpush1.msra.mxu0 %v2460
        %2507 = vmatprep.subr.mxu0 0.0
        %2508 = vmatpush1.msra.mxu0 %v2461
        %2509 = vmatprep.subr.mxu0 0.0
        %2510 = vmatpush1.msra.mxu0 %v2462
        %2511 = vmatprep.subr.mxu0 0.0
        %2512 = vmatpush1.msra.mxu0 %v2463
        %2513 = vmatprep.subr.mxu0 0.0
        %2514 = vmatpush1.msra.mxu0 %v2464
        %2515 = vmatprep.subr.mxu0 0.0
        %2516 = vmatpush1.msra.mxu0 %v2465
        %2517 = vmatprep.subr.mxu0 0.0
        %2518 = vmatpush1.msra.mxu0 %v2466
        %2519 = vmatprep.subr.mxu0 0.0
        %2520 = vmatpush1.msra.mxu0 %v2467
        %2521 = vmatprep.subr.mxu0 0.0
        %2522 = vmatpush1.msra.mxu0 %v2468
        %2523 = vmatprep.subr.mxu0 0.0
        %2524 = vmatpush1.msra.mxu0 %v2469
        %2525 = vmatprep.subr.mxu0 0.0
        %2526 = vmatpush1.msra.mxu0 %v2470
        %2527 = vmatprep.subr.mxu0 0.0
        %2528 = vmatpush1.msra.mxu0 0.0
        %2529 = vmatprep.subr.mxu0 0.0
        %2530 = vmatpush1.msra.mxu0 0.0
        %2531 = vmatprep.subr.mxu0 0.0
        %2532 = vmatpush1.msra.mxu0 0.0
        %2533 = vmatprep.subr.mxu0 0.0
        %2534 = vmatpush1.msra.mxu0 0.0
        %2535 = vmatprep.subr.mxu0 0.0
        %2536 = vmatpush1.msra.mxu0 0.0
        %2537 = vmatprep.subr.mxu0 0.0
        %2538 = vmatpush1.msra.mxu0 0.0
        %2539 = vmatprep.subr.mxu0 0.0
        %2540 = vmatpush1.msra.mxu0 0.0
        %2541 = vmatprep.subr.mxu0 0.0
        %2542 = vmatpush1.msra.mxu0 0.0
        %2543 = vmatprep.subr.mxu0 0.0
        %2544 = vmatpush1.msra.mxu0 0.0
        %2545 = vmatprep.subr.mxu0 0.0
        %2546 = vmatpush1.msra.mxu0 0.0
        %2547 = vmatprep.subr.mxu0 0.0
        %2548 = vmatpush1.msra.mxu0 0.0
        %2549 = vmatprep.subr.mxu0 0.0
        %2550 = vmatpush1.msra.mxu0 0.0
        %2551 = vmatprep.subr.mxu0 0.0
        %2552 = vmatpush1.msra.mxu0 0.0
        %2553 = vmatprep.subr.mxu0 0.0
        %2554 = vmatpush1.msra.mxu0 0.0
        %2555 = vmatprep.mubr.f32.mxu0 %v2487
        %2556 = vmatmul.mubr.f32.gmra.mrb[0].mxu0 %v2477
        %v2557 = vpop.f32.mrb[0].mxu0
        %v2558 = vadd.f32 0.0, %v2557
        %v2559 = vpop.f32.mrb[0].mxu0
        %2560 = vmatprep.mubr.f32.mxu0 %v2489
        %2561 = vmatmul.mubr.f32.gmra.mrb[0].mxu0 %v2482
        %v2562 = vpop.f32.mrb[0].mxu0
        %v2563 = vadd.f32 0.0, %v2562
        %v2564 = vpop.f32.mrb[0].mxu0
        %2565 = vdwg.mxu0
        %v2566 = vadd.f32 %v2440, %v2558
        %v2567 = vadd.f32 %v2445, %v2563
        %v2569 = vlaneseq
        %v2570 = vshrl.u32 %v2569, 7
        %v2571 = vsub.s32 0, %v2570
        %v2572 = vrot.slane %v2205, %v2571
        %v2574 = vadd.f32 %v2566, %v2572
        %v2575 = vadd.f32 %v2567, %v2572
        %v2576 = vmax.f32 %v2574, 0.0
        %v2577 = vmax.f32 %v2575, 0.0
        %v2578 = vmul.f32 %v1808, %v887
        %v2579 = vmul.f32 %v1813, %v888
        %v2580 = vld [vmem:[#allocation13] sm:$0x1]
        %v2583 = vrot.slane %v2578, 7
        %v2584 = vrot.slane %v2579, 7
        %v2585 = vsel %vm1821, %v2583, %v2584
        %2586 = vrot.lane.b32.xlu0 %v2583, 8
        %v2587 = vpop.permute.xlu0 %2586
        %2588 = vrot.lane.b32.xlu0 %v2585, 8
        %v2589 = vpop.permute.xlu0 %2588
        %2590 = vrot.lane.b32.xlu0 %v2584, 8
        %v2591 = vpop.permute.xlu0 %2590
        %2595 = vst.msk [vmem:[#allocation3] sm:$0xfe] %vm1834, %v2587
        %2596 = vst.msk [vmem:[#allocation3 + $0x8] sm:$0xfe] %vm1836, %v2587
        %2597 = vst.msk [vmem:[#allocation3 + $0x10] sm:$0xff] %vm1838, %v2589
        %2598 = vst.msk [vmem:[#allocation3 + $0x18] sm:$0xff] %vm1486, %v2589
        %2599 = vst.msk [vmem:[#allocation3 + $0x20] sm:$0x1] %vm1841, %v2591
        %2600 = vst.msk [vmem:[#allocation3 + $0x28] sm:$0x1] %vm1843, %v2591
        %v2601 = vld [vmem:[#allocation3] sm:$0xff]
        %v2602 = vld [vmem:[#allocation3 + $0x8] sm:$0xff]
        %v2603 = vld [vmem:[#allocation3 + $0x10] sm:$0xff]
        %v2604 = vld [vmem:[#allocation3 + $0x18] sm:$0xff]
        %v2605 = vld [vmem:[%s10] sm:$0xff]
        %v2606 = vld [vmem:[%s10 + $0x8] sm:$0xff]
        %v2607 = vld [vmem:[%s10 + $0x10] sm:$0xff]
        %v2608 = vld [vmem:[%s10 + $0x18] sm:$0xff]
        %v2609 = vld [vmem:[%s10 + $0x20] sm:$0xff]
        %v2610 = vld [vmem:[%s10 + $0x28] sm:$0xff]
        %v2611 = vld [vmem:[%s10 + $0x30] sm:$0xff]
        %v2612 = vld [vmem:[%s10 + $0x38] sm:$0xff]
        %v2613 = vld [vmem:[%s10 + $0x40] sm:$0xff]
        %v2614 = vld [vmem:[%s10 + $0x48] sm:$0xff]
        %v2615 = vld [vmem:[%s10 + $0x50] sm:$0xff]
        %v2616 = vld [vmem:[%s10 + $0x58] sm:$0xff]
        %v2617 = vld [vmem:[%s10 + $0x60] sm:$0xff]
        %v2618 = vld [vmem:[%s10 + $0x68] sm:$0xff]
        %v2619 = vld [vmem:[%s10 + $0x70] sm:$0xff]
        %v2620 = vld [vmem:[%s10 + $0x78] sm:$0xff]
        %v2621 = vld [vmem:[%s10 + $0x80] sm:$0xff]
        %v2622 = vld [vmem:[%s10 + $0x88] sm:$0xff]
        %v2623 = vld [vmem:[#allocation3] sm:$0xfe]
        %v2624 = vld [vmem:[#allocation3 + $0x8] sm:$0xfe]
        %v2625 = vld [vmem:[#allocation3 + $0x20] sm:$0x1]
        %v2626 = vld [vmem:[#allocation3 + $0x28] sm:$0x1]
        %s2627 = scalar_lea.vmem %s10, 144
        %v2628 = vld [vmem:[%s2627] sm:$0xff]
        %v2629 = vld [vmem:[%s2627 + $0x8] sm:$0xff]
        %v2630 = vld [vmem:[%s2627 + $0x10] sm:$0xff]
        %v2631 = vld [vmem:[%s2627 + $0x18] sm:$0xff]
        %v2632 = vld [vmem:[%s2627 + $0x20] sm:$0xff]
        %v2633 = vld [vmem:[%s2627 + $0x28] sm:$0xff]
        %v2634 = vld [vmem:[%s2627 + $0x30] sm:$0xff]
        %v2635 = vld [vmem:[%s2627 + $0x38] sm:$0xff]
        %v2636 = vld [vmem:[%s2627 + $0x40] sm:$0xff]
        %v2637 = vld [vmem:[%s2627 + $0x48] sm:$0xff]
        %v2638 = vld [vmem:[%s2627 + $0x50] sm:$0xff]
        %v2639 = vld [vmem:[%s2627 + $0x58] sm:$0xff]
        %v2640 = vld [vmem:[%s2627 + $0x60] sm:$0xff]
        %v2641 = vld [vmem:[%s2627 + $0x68] sm:$0xff]
        %v2642 = vld [vmem:[%s2627 + $0x70] sm:$0xff]
        %v2643 = vld [vmem:[%s2627 + $0x78] sm:$0xff]
        %v2644 = vld [vmem:[%s2627 + $0x80] sm:$0xff]
        %v2645 = vld [vmem:[%s2627 + $0x88] sm:$0xff]
        %v2652 = vrot.slane %v2623, 1
        %v2653 = vrot.slane %v2603, 1
        %v2654 = vsel %vm1896, %v2652, %v2653
        %v2655 = vrot.slane %v2624, 1
        %v2656 = vrot.slane %v2604, 1
        %v2657 = vsel %vm1896, %v2655, %v2656
        %v2658 = vrot.slane %v2625, 1
        %v2659 = vsel %vm1896, %v2653, %v2658
        %v2660 = vrot.slane %v2626, 1
        %v2661 = vsel %vm1896, %v2656, %v2660
        %v2664 = vsel %vm1909, %v2657, 0
        %v2666 = vsel %vm1909, %v2661, 0
        %2668 = vmatprep.subr.mxu0 0.0
        %2669 = vmatpush1.msra.mxu0 %v2628
        %2670 = vmatprep.subr.mxu0 0.0
        %2671 = vmatpush1.msra.mxu0 %v2629
        %2672 = vmatprep.subr.mxu0 0.0
        %2673 = vmatpush1.msra.mxu0 %v2630
        %2674 = vmatprep.subr.mxu0 0.0
        %2675 = vmatpush1.msra.mxu0 %v2631
        %2676 = vmatprep.subr.mxu0 0.0
        %2677 = vmatpush1.msra.mxu0 %v2632
        %2678 = vmatprep.subr.mxu0 0.0
        %2679 = vmatpush1.msra.mxu0 %v2633
        %2680 = vmatprep.subr.mxu0 0.0
        %2681 = vmatpush1.msra.mxu0 %v2634
        %2682 = vmatprep.subr.mxu0 0.0
        %2683 = vmatpush1.msra.mxu0 %v2635
        %2684 = vmatprep.subr.mxu0 0.0
        %2685 = vmatpush1.msra.mxu0 %v2636
        %2686 = vmatprep.subr.mxu0 0.0
        %2687 = vmatpush1.msra.mxu0 %v2637
        %2688 = vmatprep.subr.mxu0 0.0
        %2689 = vmatpush1.msra.mxu0 %v2638
        %2690 = vmatprep.subr.mxu0 0.0
        %2691 = vmatpush1.msra.mxu0 %v2639
        %2692 = vmatprep.subr.mxu0 0.0
        %2693 = vmatpush1.msra.mxu0 %v2640
        %2694 = vmatprep.subr.mxu0 0.0
        %2695 = vmatpush1.msra.mxu0 %v2641
        %2696 = vmatprep.subr.mxu0 0.0
        %2697 = vmatpush1.msra.mxu0 %v2642
        %2698 = vmatprep.subr.mxu0 0.0
        %2699 = vmatpush1.msra.mxu0 %v2643
        %2700 = vmatprep.subr.mxu0 0.0
        %2701 = vmatpush1.msra.mxu0 %v2644
        %2702 = vmatprep.subr.mxu0 0.0
        %2703 = vmatpush1.msra.mxu0 %v2645
        %2704 = vmatprep.subr.mxu0 0.0
        %2705 = vmatpush1.msra.mxu0 0.0
        %2706 = vmatprep.subr.mxu0 0.0
        %2707 = vmatpush1.msra.mxu0 0.0
        %2708 = vmatprep.subr.mxu0 0.0
        %2709 = vmatpush1.msra.mxu0 0.0
        %2710 = vmatprep.subr.mxu0 0.0
        %2711 = vmatpush1.msra.mxu0 0.0
        %2712 = vmatprep.subr.mxu0 0.0
        %2713 = vmatpush1.msra.mxu0 0.0
        %2714 = vmatprep.subr.mxu0 0.0
        %2715 = vmatpush1.msra.mxu0 0.0
        %2716 = vmatprep.subr.mxu0 0.0
        %2717 = vmatpush1.msra.mxu0 0.0
        %2718 = vmatprep.subr.mxu0 0.0
        %2719 = vmatpush1.msra.mxu0 0.0
        %2720 = vmatprep.subr.mxu0 0.0
        %2721 = vmatpush1.msra.mxu0 0.0
        %2722 = vmatprep.subr.mxu0 0.0
        %2723 = vmatpush1.msra.mxu0 0.0
        %2724 = vmatprep.subr.mxu0 0.0
        %2725 = vmatpush1.msra.mxu0 0.0
        %2726 = vmatprep.subr.mxu0 0.0
        %2727 = vmatpush1.msra.mxu0 0.0
        %2728 = vmatprep.subr.mxu0 0.0
        %2729 = vmatpush1.msra.mxu0 0.0
        %2730 = vmatprep.subr.mxu0 0.0
        %2731 = vmatpush1.msra.mxu0 0.0
        %2732 = vmatprep.mubr.f32.mxu0 %v2664
        %2733 = vmatmul.mubr.f32.gmra.mrb[0].mxu0 %v2654
        %v2734 = vpop.f32.mrb[0].mxu0
        %v2735 = vadd.f32 0.0, %v2734
        %v2736 = vpop.f32.mrb[0].mxu0
        %2737 = vmatprep.mubr.f32.mxu0 %v2666
        %2738 = vmatmul.mubr.f32.gmra.mrb[0].mxu0 %v2659
        %v2739 = vpop.f32.mrb[0].mxu0
        %v2740 = vadd.f32 0.0, %v2739
        %v2741 = vpop.f32.mrb[0].mxu0
        %2742 = vdwg.mxu0
        %v2744 = vsel %vm1909, %v2602, 0
        %v2746 = vsel %vm1909, %v2604, 0
        %2748 = vmatprep.subr.mxu0 0.0
        %2749 = vmatpush1.msra.mxu0 %v2605
        %2750 = vmatprep.subr.mxu0 0.0
        %2751 = vmatpush1.msra.mxu0 %v2606
        %2752 = vmatprep.subr.mxu0 0.0
        %2753 = vmatpush1.msra.mxu0 %v2607
        %2754 = vmatprep.subr.mxu0 0.0
        %2755 = vmatpush1.msra.mxu0 %v2608
        %2756 = vmatprep.subr.mxu0 0.0
        %2757 = vmatpush1.msra.mxu0 %v2609
        %2758 = vmatprep.subr.mxu0 0.0
        %2759 = vmatpush1.msra.mxu0 %v2610
        %2760 = vmatprep.subr.mxu0 0.0
        %2761 = vmatpush1.msra.mxu0 %v2611
        %2762 = vmatprep.subr.mxu0 0.0
        %2763 = vmatpush1.msra.mxu0 %v2612
        %2764 = vmatprep.subr.mxu0 0.0
        %2765 = vmatpush1.msra.mxu0 %v2613
        %2766 = vmatprep.subr.mxu0 0.0
        %2767 = vmatpush1.msra.mxu0 %v2614
        %2768 = vmatprep.subr.mxu0 0.0
        %2769 = vmatpush1.msra.mxu0 %v2615
        %2770 = vmatprep.subr.mxu0 0.0
        %2771 = vmatpush1.msra.mxu0 %v2616
        %2772 = vmatprep.subr.mxu0 0.0
        %2773 = vmatpush1.msra.mxu0 %v2617
        %2774 = vmatprep.subr.mxu0 0.0
        %2775 = vmatpush1.msra.mxu0 %v2618
        %2776 = vmatprep.subr.mxu0 0.0
        %2777 = vmatpush1.msra.mxu0 %v2619
        %2778 = vmatprep.subr.mxu0 0.0
        %2779 = vmatpush1.msra.mxu0 %v2620
        %2780 = vmatprep.subr.mxu0 0.0
        %2781 = vmatpush1.msra.mxu0 %v2621
        %2782 = vmatprep.subr.mxu0 0.0
        %2783 = vmatpush1.msra.mxu0 %v2622
        %2784 = vmatprep.subr.mxu0 0.0
        %2785 = vmatpush1.msra.mxu0 0.0
        %2786 = vmatprep.subr.mxu0 0.0
        %2787 = vmatpush1.msra.mxu0 0.0
        %2788 = vmatprep.subr.mxu0 0.0
        %2789 = vmatpush1.msra.mxu0 0.0
        %2790 = vmatprep.subr.mxu0 0.0
        %2791 = vmatpush1.msra.mxu0 0.0
        %2792 = vmatprep.subr.mxu0 0.0
        %2793 = vmatpush1.msra.mxu0 0.0
        %2794 = vmatprep.subr.mxu0 0.0
        %2795 = vmatpush1.msra.mxu0 0.0
        %2796 = vmatprep.subr.mxu0 0.0
        %2797 = vmatpush1.msra.mxu0 0.0
        %2798 = vmatprep.subr.mxu0 0.0
        %2799 = vmatpush1.msra.mxu0 0.0
        %2800 = vmatprep.subr.mxu0 0.0
        %2801 = vmatpush1.msra.mxu0 0.0
        %2802 = vmatprep.subr.mxu0 0.0
        %2803 = vmatpush1.msra.mxu0 0.0
        %2804 = vmatprep.subr.mxu0 0.0
        %2805 = vmatpush1.msra.mxu0 0.0
        %2806 = vmatprep.subr.mxu0 0.0
        %2807 = vmatpush1.msra.mxu0 0.0
        %2808 = vmatprep.subr.mxu0 0.0
        %2809 = vmatpush1.msra.mxu0 0.0
        %2810 = vmatprep.subr.mxu0 0.0
        %2811 = vmatpush1.msra.mxu0 0.0
        %2812 = vmatprep.mubr.f32.mxu0 %v2744
        %2813 = vmatmul.mubr.f32.gmra.mrb[0].mxu0 %v2601
        %v2814 = vpop.f32.mrb[0].mxu0
        %v2815 = vadd.f32 %v2735, %v2814
        %v2816 = vpop.f32.mrb[0].mxu0
        %2817 = vmatprep.mubr.f32.mxu0 %v2746
        %2818 = vmatmul.mubr.f32.gmra.mrb[0].mxu0 %v2603
        %v2819 = vpop.f32.mrb[0].mxu0
        %v2820 = vadd.f32 %v2740, %v2819
        %v2821 = vpop.f32.mrb[0].mxu0
        %2822 = vdwg.mxu0
        %v2823 = vld [vmem:[#allocation3] sm:$0xfc]
        %v2824 = vld [vmem:[#allocation3 + $0x8] sm:$0xfc]
        %v2825 = vld [vmem:[#allocation3 + $0x20] sm:$0x3]
        %v2826 = vld [vmem:[#allocation3 + $0x28] sm:$0x3]
        %s2827 = scalar_lea.vmem %s10, 288
        %v2828 = vld [vmem:[%s2827] sm:$0xff]
        %v2829 = vld [vmem:[%s2827 + $0x8] sm:$0xff]
        %v2830 = vld [vmem:[%s2827 + $0x10] sm:$0xff]
        %v2831 = vld [vmem:[%s2827 + $0x18] sm:$0xff]
        %v2832 = vld [vmem:[%s2827 + $0x20] sm:$0xff]
        %v2833 = vld [vmem:[%s2827 + $0x28] sm:$0xff]
        %v2834 = vld [vmem:[%s2827 + $0x30] sm:$0xff]
        %v2835 = vld [vmem:[%s2827 + $0x38] sm:$0xff]
        %v2836 = vld [vmem:[%s2827 + $0x40] sm:$0xff]
        %v2837 = vld [vmem:[%s2827 + $0x48] sm:$0xff]
        %v2838 = vld [vmem:[%s2827 + $0x50] sm:$0xff]
        %v2839 = vld [vmem:[%s2827 + $0x58] sm:$0xff]
        %v2840 = vld [vmem:[%s2827 + $0x60] sm:$0xff]
        %v2841 = vld [vmem:[%s2827 + $0x68] sm:$0xff]
        %v2842 = vld [vmem:[%s2827 + $0x70] sm:$0xff]
        %v2843 = vld [vmem:[%s2827 + $0x78] sm:$0xff]
        %v2844 = vld [vmem:[%s2827 + $0x80] sm:$0xff]
        %v2845 = vld [vmem:[%s2827 + $0x88] sm:$0xff]
        %v2850 = vrot.slane %v2823, 2
        %v2851 = vrot.slane %v2603, 2
        %v2852 = vsel %vm2096, %v2850, %v2851
        %v2853 = vrot.slane %v2824, 2
        %v2854 = vrot.slane %v2604, 2
        %v2855 = vsel %vm2096, %v2853, %v2854
        %v2856 = vrot.slane %v2825, 2
        %v2857 = vsel %vm2096, %v2851, %v2856
        %v2858 = vrot.slane %v2826, 2
        %v2859 = vsel %vm2096, %v2854, %v2858
        %v2862 = vsel %vm1909, %v2855, 0
        %v2864 = vsel %vm1909, %v2859, 0
        %2866 = vmatprep.subr.mxu0 0.0
        %2867 = vmatpush1.msra.mxu0 %v2828
        %2868 = vmatprep.subr.mxu0 0.0
        %2869 = vmatpush1.msra.mxu0 %v2829
        %2870 = vmatprep.subr.mxu0 0.0
        %2871 = vmatpush1.msra.mxu0 %v2830
        %2872 = vmatprep.subr.mxu0 0.0
        %2873 = vmatpush1.msra.mxu0 %v2831
        %2874 = vmatprep.subr.mxu0 0.0
        %2875 = vmatpush1.msra.mxu0 %v2832
        %2876 = vmatprep.subr.mxu0 0.0
        %2877 = vmatpush1.msra.mxu0 %v2833
        %2878 = vmatprep.subr.mxu0 0.0
        %2879 = vmatpush1.msra.mxu0 %v2834
        %2880 = vmatprep.subr.mxu0 0.0
        %2881 = vmatpush1.msra.mxu0 %v2835
        %2882 = vmatprep.subr.mxu0 0.0
        %2883 = vmatpush1.msra.mxu0 %v2836
        %2884 = vmatprep.subr.mxu0 0.0
        %2885 = vmatpush1.msra.mxu0 %v2837
        %2886 = vmatprep.subr.mxu0 0.0
        %2887 = vmatpush1.msra.mxu0 %v2838
        %2888 = vmatprep.subr.mxu0 0.0
        %2889 = vmatpush1.msra.mxu0 %v2839
        %2890 = vmatprep.subr.mxu0 0.0
        %2891 = vmatpush1.msra.mxu0 %v2840
        %2892 = vmatprep.subr.mxu0 0.0
        %2893 = vmatpush1.msra.mxu0 %v2841
        %2894 = vmatprep.subr.mxu0 0.0
        %2895 = vmatpush1.msra.mxu0 %v2842
        %2896 = vmatprep.subr.mxu0 0.0
        %2897 = vmatpush1.msra.mxu0 %v2843
        %2898 = vmatprep.subr.mxu0 0.0
        %2899 = vmatpush1.msra.mxu0 %v2844
        %2900 = vmatprep.subr.mxu0 0.0
        %2901 = vmatpush1.msra.mxu0 %v2845
        %2902 = vmatprep.subr.mxu0 0.0
        %2903 = vmatpush1.msra.mxu0 0.0
        %2904 = vmatprep.subr.mxu0 0.0
        %2905 = vmatpush1.msra.mxu0 0.0
        %2906 = vmatprep.subr.mxu0 0.0
        %2907 = vmatpush1.msra.mxu0 0.0
        %2908 = vmatprep.subr.mxu0 0.0
        %2909 = vmatpush1.msra.mxu0 0.0
        %2910 = vmatprep.subr.mxu0 0.0
        %2911 = vmatpush1.msra.mxu0 0.0
        %2912 = vmatprep.subr.mxu0 0.0
        %2913 = vmatpush1.msra.mxu0 0.0
        %2914 = vmatprep.subr.mxu0 0.0
        %2915 = vmatpush1.msra.mxu0 0.0
        %2916 = vmatprep.subr.mxu0 0.0
        %2917 = vmatpush1.msra.mxu0 0.0
        %2918 = vmatprep.subr.mxu0 0.0
        %2919 = vmatpush1.msra.mxu0 0.0
        %2920 = vmatprep.subr.mxu0 0.0
        %2921 = vmatpush1.msra.mxu0 0.0
        %2922 = vmatprep.subr.mxu0 0.0
        %2923 = vmatpush1.msra.mxu0 0.0
        %2924 = vmatprep.subr.mxu0 0.0
        %2925 = vmatpush1.msra.mxu0 0.0
        %2926 = vmatprep.subr.mxu0 0.0
        %2927 = vmatpush1.msra.mxu0 0.0
        %2928 = vmatprep.subr.mxu0 0.0
        %2929 = vmatpush1.msra.mxu0 0.0
        %2930 = vmatprep.mubr.f32.mxu0 %v2862
        %2931 = vmatmul.mubr.f32.gmra.mrb[0].mxu0 %v2852
        %v2932 = vpop.f32.mrb[0].mxu0
        %v2933 = vadd.f32 0.0, %v2932
        %v2934 = vpop.f32.mrb[0].mxu0
        %2935 = vmatprep.mubr.f32.mxu0 %v2864
        %2936 = vmatmul.mubr.f32.gmra.mrb[0].mxu0 %v2857
        %v2937 = vpop.f32.mrb[0].mxu0
        %v2938 = vadd.f32 0.0, %v2937
        %v2939 = vpop.f32.mrb[0].mxu0
        %2940 = vdwg.mxu0
        %v2941 = vadd.f32 %v2815, %v2933
        %v2942 = vadd.f32 %v2820, %v2938
        %v2944 = vlaneseq
        %v2945 = vshrl.u32 %v2944, 7
        %v2946 = vsub.s32 0, %v2945
        %v2947 = vrot.slane %v2580, %v2946
        %v2949 = vadd.f32 %v2941, %v2947
        %v2950 = vadd.f32 %v2942, %v2947
        %v2951 = vmax.f32 %v2949, 0.0
        %v2952 = vmax.f32 %v2950, 0.0
        %v2953 = vstv %s861
        %v2954 = vmul.f32 %v2953, %v2951
        %v2955 = vmul.f32 %v2953, %v2952
        %v2956 = vadd.f32 %v2954, %v887
        %v2957 = vadd.f32 %v2955, %v888
        %v2958 = vld [vmem:[#allocation15] sm:$0x1]
        %v2961 = vrot.slane %v2956, 7
        %v2962 = vrot.slane %v2957, 7
        %v2963 = vsel %vm1821, %v2961, %v2962
        %2964 = vrot.lane.b32.xlu0 %v2961, 8
        %v2965 = vpop.permute.xlu0 %2964
        %2966 = vrot.lane.b32.xlu0 %v2963, 8
        %v2967 = vpop.permute.xlu0 %2966
        %2968 = vrot.lane.b32.xlu0 %v2962, 8
        %v2969 = vpop.permute.xlu0 %2968
        %2973 = vst.msk [vmem:[#allocation3] sm:$0xfe] %vm1834, %v2965
        %2974 = vst.msk [vmem:[#allocation3 + $0x8] sm:$0xfe] %vm1836, %v2965
        %2975 = vst.msk [vmem:[#allocation3 + $0x10] sm:$0xff] %vm1838, %v2967
        %2976 = vst.msk [vmem:[#allocation3 + $0x18] sm:$0xff] %vm1486, %v2967
        %2977 = vst.msk [vmem:[#allocation3 + $0x20] sm:$0x1] %vm1841, %v2969
        %2978 = vst.msk [vmem:[#allocation3 + $0x28] sm:$0x1] %vm1843, %v2969
        %v2979 = vld [vmem:[#allocation3] sm:$0xff]
        %v2980 = vld [vmem:[#allocation3 + $0x8] sm:$0xff]
        %v2981 = vld [vmem:[#allocation3 + $0x10] sm:$0xff]
        %v2982 = vld [vmem:[#allocation3 + $0x18] sm:$0xff]
        %v2983 = vld [vmem:[%s12] sm:$0xff]
        %v2984 = vld [vmem:[%s12 + $0x8] sm:$0xff]
        %v2985 = vld [vmem:[%s12 + $0x10] sm:$0xff]
        %v2986 = vld [vmem:[%s12 + $0x18] sm:$0xff]
        %v2987 = vld [vmem:[%s12 + $0x20] sm:$0xff]
        %v2988 = vld [vmem:[%s12 + $0x28] sm:$0xff]
        %v2989 = vld [vmem:[%s12 + $0x30] sm:$0xff]
        %v2990 = vld [vmem:[%s12 + $0x38] sm:$0xff]
        %v2991 = vld [vmem:[%s12 + $0x40] sm:$0xff]
        %v2992 = vld [vmem:[%s12 + $0x48] sm:$0xff]
        %v2993 = vld [vmem:[%s12 + $0x50] sm:$0xff]
        %v2994 = vld [vmem:[%s12 + $0x58] sm:$0xff]
        %v2995 = vld [vmem:[%s12 + $0x60] sm:$0xff]
        %v2996 = vld [vmem:[%s12 + $0x68] sm:$0xff]
        %v2997 = vld [vmem:[%s12 + $0x70] sm:$0xff]
        %v2998 = vld [vmem:[%s12 + $0x78] sm:$0xff]
        %v2999 = vld [vmem:[%s12 + $0x80] sm:$0xff]
        %v3000 = vld [vmem:[%s12 + $0x88] sm:$0xff]
        %v3001 = vld [vmem:[#allocation3] sm:$0xfe]
        %v3002 = vld [vmem:[#allocation3 + $0x8] sm:$0xfe]
        %v3003 = vld [vmem:[#allocation3 + $0x20] sm:$0x1]
        %v3004 = vld [vmem:[#allocation3 + $0x28] sm:$0x1]
        %s3005 = scalar_lea.vmem %s12, 144
        %v3006 = vld [vmem:[%s3005] sm:$0xff]
        %v3007 = vld [vmem:[%s3005 + $0x8] sm:$0xff]
        %v3008 = vld [vmem:[%s3005 + $0x10] sm:$0xff]
        %v3009 = vld [vmem:[%s3005 + $0x18] sm:$0xff]
        %v3010 = vld [vmem:[%s3005 + $0x20] sm:$0xff]
        %v3011 = vld [vmem:[%s3005 + $0x28] sm:$0xff]
        %v3012 = vld [vmem:[%s3005 + $0x30] sm:$0xff]
        %v3013 = vld [vmem:[%s3005 + $0x38] sm:$0xff]
        %v3014 = vld [vmem:[%s3005 + $0x40] sm:$0xff]
        %v3015 = vld [vmem:[%s3005 + $0x48] sm:$0xff]
        %v3016 = vld [vmem:[%s3005 + $0x50] sm:$0xff]
        %v3017 = vld [vmem:[%s3005 + $0x58] sm:$0xff]
        %v3018 = vld [vmem:[%s3005 + $0x60] sm:$0xff]
        %v3019 = vld [vmem:[%s3005 + $0x68] sm:$0xff]
        %v3020 = vld [vmem:[%s3005 + $0x70] sm:$0xff]
        %v3021 = vld [vmem:[%s3005 + $0x78] sm:$0xff]
        %v3022 = vld [vmem:[%s3005 + $0x80] sm:$0xff]
        %v3023 = vld [vmem:[%s3005 + $0x88] sm:$0xff]
        %v3030 = vrot.slane %v3001, 1
        %v3031 = vrot.slane %v2981, 1
        %v3032 = vsel %vm1896, %v3030, %v3031
        %v3033 = vrot.slane %v3002, 1
        %v3034 = vrot.slane %v2982, 1
        %v3035 = vsel %vm1896, %v3033, %v3034
        %v3036 = vrot.slane %v3003, 1
        %v3037 = vsel %vm1896, %v3031, %v3036
        %v3038 = vrot.slane %v3004, 1
        %v3039 = vsel %vm1896, %v3034, %v3038
        %v3042 = vsel %vm1909, %v3035, 0
        %v3044 = vsel %vm1909, %v3039, 0
        %3046 = vmatprep.subr.mxu0 0.0
        %3047 = vmatpush1.msra.mxu0 %v3006
        %3048 = vmatprep.subr.mxu0 0.0
        %3049 = vmatpush1.msra.mxu0 %v3007
        %3050 = vmatprep.subr.mxu0 0.0
        %3051 = vmatpush1.msra.mxu0 %v3008
        %3052 = vmatprep.subr.mxu0 0.0
        %3053 = vmatpush1.msra.mxu0 %v3009
        %3054 = vmatprep.subr.mxu0 0.0
        %3055 = vmatpush1.msra.mxu0 %v3010
        %3056 = vmatprep.subr.mxu0 0.0
        %3057 = vmatpush1.msra.mxu0 %v3011
        %3058 = vmatprep.subr.mxu0 0.0
        %3059 = vmatpush1.msra.mxu0 %v3012
        %3060 = vmatprep.subr.mxu0 0.0
        %3061 = vmatpush1.msra.mxu0 %v3013
        %3062 = vmatprep.subr.mxu0 0.0
        %3063 = vmatpush1.msra.mxu0 %v3014
        %3064 = vmatprep.subr.mxu0 0.0
        %3065 = vmatpush1.msra.mxu0 %v3015
        %3066 = vmatprep.subr.mxu0 0.0
        %3067 = vmatpush1.msra.mxu0 %v3016
        %3068 = vmatprep.subr.mxu0 0.0
        %3069 = vmatpush1.msra.mxu0 %v3017
        %3070 = vmatprep.subr.mxu0 0.0
        %3071 = vmatpush1.msra.mxu0 %v3018
        %3072 = vmatprep.subr.mxu0 0.0
        %3073 = vmatpush1.msra.mxu0 %v3019
        %3074 = vmatprep.subr.mxu0 0.0
        %3075 = vmatpush1.msra.mxu0 %v3020
        %3076 = vmatprep.subr.mxu0 0.0
        %3077 = vmatpush1.msra.mxu0 %v3021
        %3078 = vmatprep.subr.mxu0 0.0
        %3079 = vmatpush1.msra.mxu0 %v3022
        %3080 = vmatprep.subr.mxu0 0.0
        %3081 = vmatpush1.msra.mxu0 %v3023
        %3082 = vmatprep.subr.mxu0 0.0
        %3083 = vmatpush1.msra.mxu0 0.0
        %3084 = vmatprep.subr.mxu0 0.0
        %3085 = vmatpush1.msra.mxu0 0.0
        %3086 = vmatprep.subr.mxu0 0.0
        %3087 = vmatpush1.msra.mxu0 0.0
        %3088 = vmatprep.subr.mxu0 0.0
        %3089 = vmatpush1.msra.mxu0 0.0
        %3090 = vmatprep.subr.mxu0 0.0
        %3091 = vmatpush1.msra.mxu0 0.0
        %3092 = vmatprep.subr.mxu0 0.0
        %3093 = vmatpush1.msra.mxu0 0.0
        %3094 = vmatprep.subr.mxu0 0.0
        %3095 = vmatpush1.msra.mxu0 0.0
        %3096 = vmatprep.subr.mxu0 0.0
        %3097 = vmatpush1.msra.mxu0 0.0
        %3098 = vmatprep.subr.mxu0 0.0
        %3099 = vmatpush1.msra.mxu0 0.0
        %3100 = vmatprep.subr.mxu0 0.0
        %3101 = vmatpush1.msra.mxu0 0.0
        %3102 = vmatprep.subr.mxu0 0.0
        %3103 = vmatpush1.msra.mxu0 0.0
        %3104 = vmatprep.subr.mxu0 0.0
        %3105 = vmatpush1.msra.mxu0 0.0
        %3106 = vmatprep.subr.mxu0 0.0
        %3107 = vmatpush1.msra.mxu0 0.0
        %3108 = vmatprep.subr.mxu0 0.0
        %3109 = vmatpush1.msra.mxu0 0.0
        %3110 = vmatprep.mubr.f32.mxu0 %v3042
        %3111 = vmatmul.mubr.f32.gmra.mrb[0].mxu0 %v3032
        %v3112 = vpop.f32.mrb[0].mxu0
        %v3113 = vadd.f32 0.0, %v3112
        %v3114 = vpop.f32.mrb[0].mxu0
        %3115 = vmatprep.mubr.f32.mxu0 %v3044
        %3116 = vmatmul.mubr.f32.gmra.mrb[0].mxu0 %v3037
        %v3117 = vpop.f32.mrb[0].mxu0
        %v3118 = vadd.f32 0.0, %v3117
        %v3119 = vpop.f32.mrb[0].mxu0
        %3120 = vdwg.mxu0
        %v3122 = vsel %vm1909, %v2980, 0
        %v3124 = vsel %vm1909, %v2982, 0
        %3126 = vmatprep.subr.mxu0 0.0
        %3127 = vmatpush1.msra.mxu0 %v2983
        %3128 = vmatprep.subr.mxu0 0.0
        %3129 = vmatpush1.msra.mxu0 %v2984
        %3130 = vmatprep.subr.mxu0 0.0
        %3131 = vmatpush1.msra.mxu0 %v2985
        %3132 = vmatprep.subr.mxu0 0.0
        %3133 = vmatpush1.msra.mxu0 %v2986
        %3134 = vmatprep.subr.mxu0 0.0
        %3135 = vmatpush1.msra.mxu0 %v2987
        %3136 = vmatprep.subr.mxu0 0.0
        %3137 = vmatpush1.msra.mxu0 %v2988
        %3138 = vmatprep.subr.mxu0 0.0
        %3139 = vmatpush1.msra.mxu0 %v2989
        %3140 = vmatprep.subr.mxu0 0.0
        %3141 = vmatpush1.msra.mxu0 %v2990
        %3142 = vmatprep.subr.mxu0 0.0
        %3143 = vmatpush1.msra.mxu0 %v2991
        %3144 = vmatprep.subr.mxu0 0.0
        %3145 = vmatpush1.msra.mxu0 %v2992
        %3146 = vmatprep.subr.mxu0 0.0
        %3147 = vmatpush1.msra.mxu0 %v2993
        %3148 = vmatprep.subr.mxu0 0.0
        %3149 = vmatpush1.msra.mxu0 %v2994
        %3150 = vmatprep.subr.mxu0 0.0
        %3151 = vmatpush1.msra.mxu0 %v2995
        %3152 = vmatprep.subr.mxu0 0.0
        %3153 = vmatpush1.msra.mxu0 %v2996
        %3154 = vmatprep.subr.mxu0 0.0
        %3155 = vmatpush1.msra.mxu0 %v2997
        %3156 = vmatprep.subr.mxu0 0.0
        %3157 = vmatpush1.msra.mxu0 %v2998
        %3158 = vmatprep.subr.mxu0 0.0
        %3159 = vmatpush1.msra.mxu0 %v2999
        %3160 = vmatprep.subr.mxu0 0.0
        %3161 = vmatpush1.msra.mxu0 %v3000
        %3162 = vmatprep.subr.mxu0 0.0
        %3163 = vmatpush1.msra.mxu0 0.0
        %3164 = vmatprep.subr.mxu0 0.0
        %3165 = vmatpush1.msra.mxu0 0.0
        %3166 = vmatprep.subr.mxu0 0.0
        %3167 = vmatpush1.msra.mxu0 0.0
        %3168 = vmatprep.subr.mxu0 0.0
        %3169 = vmatpush1.msra.mxu0 0.0
        %3170 = vmatprep.subr.mxu0 0.0
        %3171 = vmatpush1.msra.mxu0 0.0
        %3172 = vmatprep.subr.mxu0 0.0
        %3173 = vmatpush1.msra.mxu0 0.0
        %3174 = vmatprep.subr.mxu0 0.0
        %3175 = vmatpush1.msra.mxu0 0.0
        %3176 = vmatprep.subr.mxu0 0.0
        %3177 = vmatpush1.msra.mxu0 0.0
        %3178 = vmatprep.subr.mxu0 0.0
        %3179 = vmatpush1.msra.mxu0 0.0
        %3180 = vmatprep.subr.mxu0 0.0
        %3181 = vmatpush1.msra.mxu0 0.0
        %3182 = vmatprep.subr.mxu0 0.0
        %3183 = vmatpush1.msra.mxu0 0.0
        %3184 = vmatprep.subr.mxu0 0.0
        %3185 = vmatpush1.msra.mxu0 0.0
        %3186 = vmatprep.subr.mxu0 0.0
        %3187 = vmatpush1.msra.mxu0 0.0
        %3188 = vmatprep.subr.mxu0 0.0
        %3189 = vmatpush1.msra.mxu0 0.0
        %3190 = vmatprep.mubr.f32.mxu0 %v3122
        %3191 = vmatmul.mubr.f32.gmra.mrb[0].mxu0 %v2979
        %v3192 = vpop.f32.mrb[0].mxu0
        %v3193 = vadd.f32 %v3113, %v3192
        %v3194 = vpop.f32.mrb[0].mxu0
        %3195 = vmatprep.mubr.f32.mxu0 %v3124
        %3196 = vmatmul.mubr.f32.gmra.mrb[0].mxu0 %v2981
        %v3197 = vpop.f32.mrb[0].mxu0
        %v3198 = vadd.f32 %v3118, %v3197
        %v3199 = vpop.f32.mrb[0].mxu0
        %3200 = vdwg.mxu0
        %v3201 = vld [vmem:[#allocation3] sm:$0xfc]
        %v3202 = vld [vmem:[#allocation3 + $0x8] sm:$0xfc]
        %v3203 = vld [vmem:[#allocation3 + $0x20] sm:$0x3]
        %v3204 = vld [vmem:[#allocation3 + $0x28] sm:$0x3]
        %s3205 = scalar_lea.vmem %s12, 288
        %v3206 = vld [vmem:[%s3205] sm:$0xff]
        %v3207 = vld [vmem:[%s3205 + $0x8] sm:$0xff]
        %v3208 = vld [vmem:[%s3205 + $0x10] sm:$0xff]
        %v3209 = vld [vmem:[%s3205 + $0x18] sm:$0xff]
        %v3210 = vld [vmem:[%s3205 + $0x20] sm:$0xff]
        %v3211 = vld [vmem:[%s3205 + $0x28] sm:$0xff]
        %v3212 = vld [vmem:[%s3205 + $0x30] sm:$0xff]
        %v3213 = vld [vmem:[%s3205 + $0x38] sm:$0xff]
        %v3214 = vld [vmem:[%s3205 + $0x40] sm:$0xff]
        %v3215 = vld [vmem:[%s3205 + $0x48] sm:$0xff]
        %v3216 = vld [vmem:[%s3205 + $0x50] sm:$0xff]
        %v3217 = vld [vmem:[%s3205 + $0x58] sm:$0xff]
        %v3218 = vld [vmem:[%s3205 + $0x60] sm:$0xff]
        %v3219 = vld [vmem:[%s3205 + $0x68] sm:$0xff]
        %v3220 = vld [vmem:[%s3205 + $0x70] sm:$0xff]
        %v3221 = vld [vmem:[%s3205 + $0x78] sm:$0xff]
        %v3222 = vld [vmem:[%s3205 + $0x80] sm:$0xff]
        %v3223 = vld [vmem:[%s3205 + $0x88] sm:$0xff]
        %v3228 = vrot.slane %v3201, 2
        %v3229 = vrot.slane %v2981, 2
        %v3230 = vsel %vm2096, %v3228, %v3229
        %v3231 = vrot.slane %v3202, 2
        %v3232 = vrot.slane %v2982, 2
        %v3233 = vsel %vm2096, %v3231, %v3232
        %v3234 = vrot.slane %v3203, 2
        %v3235 = vsel %vm2096, %v3229, %v3234
        %v3236 = vrot.slane %v3204, 2
        %v3237 = vsel %vm2096, %v3232, %v3236
        %v3240 = vsel %vm1909, %v3233, 0
        %v3242 = vsel %vm1909, %v3237, 0
        %3244 = vmatprep.subr.mxu0 0.0
        %3245 = vmatpush1.msra.mxu0 %v3206
        %3246 = vmatprep.subr.mxu0 0.0
        %3247 = vmatpush1.msra.mxu0 %v3207
        %3248 = vmatprep.subr.mxu0 0.0
        %3249 = vmatpush1.msra.mxu0 %v3208
        %3250 = vmatprep.subr.mxu0 0.0
        %3251 = vmatpush1.msra.mxu0 %v3209
        %3252 = vmatprep.subr.mxu0 0.0
        %3253 = vmatpush1.msra.mxu0 %v3210
        %3254 = vmatprep.subr.mxu0 0.0
        %3255 = vmatpush1.msra.mxu0 %v3211
        %3256 = vmatprep.subr.mxu0 0.0
        %3257 = vmatpush1.msra.mxu0 %v3212
        %3258 = vmatprep.subr.mxu0 0.0
        %3259 = vmatpush1.msra.mxu0 %v3213
        %3260 = vmatprep.subr.mxu0 0.0
        %3261 = vmatpush1.msra.mxu0 %v3214
        %3262 = vmatprep.subr.mxu0 0.0
        %3263 = vmatpush1.msra.mxu0 %v3215
        %3264 = vmatprep.subr.mxu0 0.0
        %3265 = vmatpush1.msra.mxu0 %v3216
        %3266 = vmatprep.subr.mxu0 0.0
        %3267 = vmatpush1.msra.mxu0 %v3217
        %3268 = vmatprep.subr.mxu0 0.0
        %3269 = vmatpush1.msra.mxu0 %v3218
        %3270 = vmatprep.subr.mxu0 0.0
        %3271 = vmatpush1.msra.mxu0 %v3219
        %3272 = vmatprep.subr.mxu0 0.0
        %3273 = vmatpush1.msra.mxu0 %v3220
        %3274 = vmatprep.subr.mxu0 0.0
        %3275 = vmatpush1.msra.mxu0 %v3221
        %3276 = vmatprep.subr.mxu0 0.0
        %3277 = vmatpush1.msra.mxu0 %v3222
        %3278 = vmatprep.subr.mxu0 0.0
        %3279 = vmatpush1.msra.mxu0 %v3223
        %3280 = vmatprep.subr.mxu0 0.0
        %3281 = vmatpush1.msra.mxu0 0.0
        %3282 = vmatprep.subr.mxu0 0.0
        %3283 = vmatpush1.msra.mxu0 0.0
        %3284 = vmatprep.subr.mxu0 0.0
        %3285 = vmatpush1.msra.mxu0 0.0
        %3286 = vmatprep.subr.mxu0 0.0
        %3287 = vmatpush1.msra.mxu0 0.0
        %3288 = vmatprep.subr.mxu0 0.0
        %3289 = vmatpush1.msra.mxu0 0.0
        %3290 = vmatprep.subr.mxu0 0.0
        %3291 = vmatpush1.msra.mxu0 0.0
        %3292 = vmatprep.subr.mxu0 0.0
        %3293 = vmatpush1.msra.mxu0 0.0
        %3294 = vmatprep.subr.mxu0 0.0
        %3295 = vmatpush1.msra.mxu0 0.0
        %3296 = vmatprep.subr.mxu0 0.0
        %3297 = vmatpush1.msra.mxu0 0.0
        %3298 = vmatprep.subr.mxu0 0.0
        %3299 = vmatpush1.msra.mxu0 0.0
        %3300 = vmatprep.subr.mxu0 0.0
        %3301 = vmatpush1.msra.mxu0 0.0
        %3302 = vmatprep.subr.mxu0 0.0
        %3303 = vmatpush1.msra.mxu0 0.0
        %3304 = vmatprep.subr.mxu0 0.0
        %3305 = vmatpush1.msra.mxu0 0.0
        %3306 = vmatprep.subr.mxu0 0.0
        %3307 = vmatpush1.msra.mxu0 0.0
        %3308 = vmatprep.mubr.f32.mxu0 %v3240
        %3309 = vmatmul.mubr.f32.gmra.mrb[0].mxu0 %v3230
        %v3310 = vpop.f32.mrb[0].mxu0
        %v3311 = vadd.f32 0.0, %v3310
        %v3312 = vpop.f32.mrb[0].mxu0
        %3313 = vmatprep.mubr.f32.mxu0 %v3242
        %3314 = vmatmul.mubr.f32.gmra.mrb[0].mxu0 %v3235
        %v3315 = vpop.f32.mrb[0].mxu0
        %v3316 = vadd.f32 0.0, %v3315
        %v3317 = vpop.f32.mrb[0].mxu0
        %3318 = vdwg.mxu0
        %v3319 = vadd.f32 %v3193, %v3311
        %v3320 = vadd.f32 %v3198, %v3316
        %v3322 = vlaneseq
        %v3323 = vshrl.u32 %v3322, 7
        %v3324 = vsub.s32 0, %v3323
        %v3325 = vrot.slane %v2958, %v3324
        %v3327 = vadd.f32 %v3319, %v3325
        %v3328 = vadd.f32 %v3320, %v3325
        %v3329 = vmax.f32 %v3327, 0.0
        %v3330 = vmax.f32 %v3328, 0.0
        %v3333 = vrot.slane %v3329, 7
        %v3334 = vrot.slane %v3330, 7
        %v3335 = vsel %vm1821, %v3333, %v3334
        %3336 = vrot.lane.b32.xlu0 %v3333, 8
        %v3337 = vpop.permute.xlu0 %3336
        %3338 = vrot.lane.b32.xlu0 %v3335, 8
        %v3339 = vpop.permute.xlu0 %3338
        %3340 = vrot.lane.b32.xlu0 %v3334, 8
        %v3341 = vpop.permute.xlu0 %3340
        %3345 = vst.msk [vmem:[#allocation3] sm:$0xfe] %vm1834, %v3337
        %3346 = vst.msk [vmem:[#allocation3 + $0x8] sm:$0xfe] %vm1836, %v3337
        %3347 = vst.msk [vmem:[#allocation3 + $0x10] sm:$0xff] %vm1838, %v3339
        %3348 = vst.msk [vmem:[#allocation3 + $0x18] sm:$0xff] %vm1486, %v3339
        %3349 = vst.msk [vmem:[#allocation3 + $0x20] sm:$0x1] %vm1841, %v3341
        %3350 = vst.msk [vmem:[#allocation3 + $0x28] sm:$0x1] %vm1843, %v3341
        %v3351 = vld [vmem:[#allocation3] sm:$0xff]
        %v3352 = vld [vmem:[#allocation3 + $0x8] sm:$0xff]
        %v3353 = vld [vmem:[#allocation3 + $0x10] sm:$0xff]
        %v3354 = vld [vmem:[#allocation3 + $0x18] sm:$0xff]
        %v3355 = vld [vmem:[%s14] sm:$0xff]
        %v3356 = vld [vmem:[%s14 + $0x8] sm:$0xff]
        %v3357 = vld [vmem:[%s14 + $0x10] sm:$0xff]
        %v3358 = vld [vmem:[%s14 + $0x18] sm:$0xff]
        %v3359 = vld [vmem:[%s14 + $0x20] sm:$0xff]
        %v3360 = vld [vmem:[%s14 + $0x28] sm:$0xff]
        %v3361 = vld [vmem:[%s14 + $0x30] sm:$0xff]
        %v3362 = vld [vmem:[%s14 + $0x38] sm:$0xff]
        %v3363 = vld [vmem:[%s14 + $0x40] sm:$0xff]
        %v3364 = vld [vmem:[%s14 + $0x48] sm:$0xff]
        %v3365 = vld [vmem:[%s14 + $0x50] sm:$0xff]
        %v3366 = vld [vmem:[%s14 + $0x58] sm:$0xff]
        %v3367 = vld [vmem:[%s14 + $0x60] sm:$0xff]
        %v3368 = vld [vmem:[%s14 + $0x68] sm:$0xff]
        %v3369 = vld [vmem:[%s14 + $0x70] sm:$0xff]
        %v3370 = vld [vmem:[%s14 + $0x78] sm:$0xff]
        %v3371 = vld [vmem:[%s14 + $0x80] sm:$0xff]
        %v3372 = vld [vmem:[%s14 + $0x88] sm:$0xff]
        %v3373 = vld [vmem:[#allocation3] sm:$0xfe]
        %v3374 = vld [vmem:[#allocation3 + $0x8] sm:$0xfe]
        %v3375 = vld [vmem:[#allocation3 + $0x20] sm:$0x1]
        %v3376 = vld [vmem:[#allocation3 + $0x28] sm:$0x1]
        %s3377 = scalar_lea.vmem %s14, 144
        %v3378 = vld [vmem:[%s3377] sm:$0xff]
        %v3379 = vld [vmem:[%s3377 + $0x8] sm:$0xff]
        %v3380 = vld [vmem:[%s3377 + $0x10] sm:$0xff]
        %v3381 = vld [vmem:[%s3377 + $0x18] sm:$0xff]
        %v3382 = vld [vmem:[%s3377 + $0x20] sm:$0xff]
        %v3383 = vld [vmem:[%s3377 + $0x28] sm:$0xff]
        %v3384 = vld [vmem:[%s3377 + $0x30] sm:$0xff]
        %v3385 = vld [vmem:[%s3377 + $0x38] sm:$0xff]
        %v3386 = vld [vmem:[%s3377 + $0x40] sm:$0xff]
        %v3387 = vld [vmem:[%s3377 + $0x48] sm:$0xff]
        %v3388 = vld [vmem:[%s3377 + $0x50] sm:$0xff]
        %v3389 = vld [vmem:[%s3377 + $0x58] sm:$0xff]
        %v3390 = vld [vmem:[%s3377 + $0x60] sm:$0xff]
        %v3391 = vld [vmem:[%s3377 + $0x68] sm:$0xff]
        %v3392 = vld [vmem:[%s3377 + $0x70] sm:$0xff]
        %v3393 = vld [vmem:[%s3377 + $0x78] sm:$0xff]
        %v3394 = vld [vmem:[%s3377 + $0x80] sm:$0xff]
        %v3395 = vld [vmem:[%s3377 + $0x88] sm:$0xff]
        %v3402 = vrot.slane %v3373, 1
        %v3403 = vrot.slane %v3353, 1
        %v3404 = vsel %vm1896, %v3402, %v3403
        %v3405 = vrot.slane %v3374, 1
        %v3406 = vrot.slane %v3354, 1
        %v3407 = vsel %vm1896, %v3405, %v3406
        %v3408 = vrot.slane %v3375, 1
        %v3409 = vsel %vm1896, %v3403, %v3408
        %v3410 = vrot.slane %v3376, 1
        %v3411 = vsel %vm1896, %v3406, %v3410
        %v3414 = vsel %vm1909, %v3407, 0
        %v3416 = vsel %vm1909, %v3411, 0
        %3418 = vmatprep.subr.mxu0 0.0
        %3419 = vmatpush1.msra.mxu0 %v3378
        %3420 = vmatprep.subr.mxu0 0.0
        %3421 = vmatpush1.msra.mxu0 %v3379
        %3422 = vmatprep.subr.mxu0 0.0
        %3423 = vmatpush1.msra.mxu0 %v3380
        %3424 = vmatprep.subr.mxu0 0.0
        %3425 = vmatpush1.msra.mxu0 %v3381
        %3426 = vmatprep.subr.mxu0 0.0
        %3427 = vmatpush1.msra.mxu0 %v3382
        %3428 = vmatprep.subr.mxu0 0.0
        %3429 = vmatpush1.msra.mxu0 %v3383
        %3430 = vmatprep.subr.mxu0 0.0
        %3431 = vmatpush1.msra.mxu0 %v3384
        %3432 = vmatprep.subr.mxu0 0.0
        %3433 = vmatpush1.msra.mxu0 %v3385
        %3434 = vmatprep.subr.mxu0 0.0
        %3435 = vmatpush1.msra.mxu0 %v3386
        %3436 = vmatprep.subr.mxu0 0.0
        %3437 = vmatpush1.msra.mxu0 %v3387
        %3438 = vmatprep.subr.mxu0 0.0
        %3439 = vmatpush1.msra.mxu0 %v3388
        %3440 = vmatprep.subr.mxu0 0.0
        %3441 = vmatpush1.msra.mxu0 %v3389
        %3442 = vmatprep.subr.mxu0 0.0
        %3443 = vmatpush1.msra.mxu0 %v3390
        %3444 = vmatprep.subr.mxu0 0.0
        %3445 = vmatpush1.msra.mxu0 %v3391
        %3446 = vmatprep.subr.mxu0 0.0
        %3447 = vmatpush1.msra.mxu0 %v3392
        %3448 = vmatprep.subr.mxu0 0.0
        %3449 = vmatpush1.msra.mxu0 %v3393
        %3450 = vmatprep.subr.mxu0 0.0
        %3451 = vmatpush1.msra.mxu0 %v3394
        %3452 = vmatprep.subr.mxu0 0.0
        %3453 = vmatpush1.msra.mxu0 %v3395
        %3454 = vmatprep.subr.mxu0 0.0
        %3455 = vmatpush1.msra.mxu0 0.0
        %3456 = vmatprep.subr.mxu0 0.0
        %3457 = vmatpush1.msra.mxu0 0.0
        %3458 = vmatprep.subr.mxu0 0.0
        %3459 = vmatpush1.msra.mxu0 0.0
        %3460 = vmatprep.subr.mxu0 0.0
        %3461 = vmatpush1.msra.mxu0 0.0
        %3462 = vmatprep.subr.mxu0 0.0
        %3463 = vmatpush1.msra.mxu0 0.0
        %3464 = vmatprep.subr.mxu0 0.0
        %3465 = vmatpush1.msra.mxu0 0.0
        %3466 = vmatprep.subr.mxu0 0.0
        %3467 = vmatpush1.msra.mxu0 0.0
        %3468 = vmatprep.subr.mxu0 0.0
        %3469 = vmatpush1.msra.mxu0 0.0
        %3470 = vmatprep.subr.mxu0 0.0
        %3471 = vmatpush1.msra.mxu0 0.0
        %3472 = vmatprep.subr.mxu0 0.0
        %3473 = vmatpush1.msra.mxu0 0.0
        %3474 = vmatprep.subr.mxu0 0.0
        %3475 = vmatpush1.msra.mxu0 0.0
        %3476 = vmatprep.subr.mxu0 0.0
        %3477 = vmatpush1.msra.mxu0 0.0
        %3478 = vmatprep.subr.mxu0 0.0
        %3479 = vmatpush1.msra.mxu0 0.0
        %3480 = vmatprep.subr.mxu0 0.0
        %3481 = vmatpush1.msra.mxu0 0.0
        %3482 = vmatprep.mubr.f32.mxu0 %v3414
        %3483 = vmatmul.mubr.f32.gmra.mrb[0].mxu0 %v3404
        %v3484 = vpop.f32.mrb[0].mxu0
        %v3485 = vadd.f32 0.0, %v3484
        %v3486 = vpop.f32.mrb[0].mxu0
        %3487 = vmatprep.mubr.f32.mxu0 %v3416
        %3488 = vmatmul.mubr.f32.gmra.mrb[0].mxu0 %v3409
        %v3489 = vpop.f32.mrb[0].mxu0
        %v3490 = vadd.f32 0.0, %v3489
        %v3491 = vpop.f32.mrb[0].mxu0
        %3492 = vdwg.mxu0
        %v3494 = vsel %vm1909, %v3352, 0
        %v3496 = vsel %vm1909, %v3354, 0
        %3498 = vmatprep.subr.mxu0 0.0
        %3499 = vmatpush1.msra.mxu0 %v3355
        %3500 = vmatprep.subr.mxu0 0.0
        %3501 = vmatpush1.msra.mxu0 %v3356
        %3502 = vmatprep.subr.mxu0 0.0
        %3503 = vmatpush1.msra.mxu0 %v3357
        %3504 = vmatprep.subr.mxu0 0.0
        %3505 = vmatpush1.msra.mxu0 %v3358
        %3506 = vmatprep.subr.mxu0 0.0
        %3507 = vmatpush1.msra.mxu0 %v3359
        %3508 = vmatprep.subr.mxu0 0.0
        %3509 = vmatpush1.msra.mxu0 %v3360
        %3510 = vmatprep.subr.mxu0 0.0
        %3511 = vmatpush1.msra.mxu0 %v3361
        %3512 = vmatprep.subr.mxu0 0.0
        %3513 = vmatpush1.msra.mxu0 %v3362
        %3514 = vmatprep.subr.mxu0 0.0
        %3515 = vmatpush1.msra.mxu0 %v3363
        %3516 = vmatprep.subr.mxu0 0.0
        %3517 = vmatpush1.msra.mxu0 %v3364
        %3518 = vmatprep.subr.mxu0 0.0
        %3519 = vmatpush1.msra.mxu0 %v3365
        %3520 = vmatprep.subr.mxu0 0.0
        %3521 = vmatpush1.msra.mxu0 %v3366
        %3522 = vmatprep.subr.mxu0 0.0
        %3523 = vmatpush1.msra.mxu0 %v3367
        %3524 = vmatprep.subr.mxu0 0.0
        %3525 = vmatpush1.msra.mxu0 %v3368
        %3526 = vmatprep.subr.mxu0 0.0
        %3527 = vmatpush1.msra.mxu0 %v3369
        %3528 = vmatprep.subr.mxu0 0.0
        %3529 = vmatpush1.msra.mxu0 %v3370
        %3530 = vmatprep.subr.mxu0 0.0
        %3531 = vmatpush1.msra.mxu0 %v3371
        %3532 = vmatprep.subr.mxu0 0.0
        %3533 = vmatpush1.msra.mxu0 %v3372
        %3534 = vmatprep.subr.mxu0 0.0
        %3535 = vmatpush1.msra.mxu0 0.0
        %3536 = vmatprep.subr.mxu0 0.0
        %3537 = vmatpush1.msra.mxu0 0.0
        %3538 = vmatprep.subr.mxu0 0.0
        %3539 = vmatpush1.msra.mxu0 0.0
        %3540 = vmatprep.subr.mxu0 0.0
        %3541 = vmatpush1.msra.mxu0 0.0
        %3542 = vmatprep.subr.mxu0 0.0
        %3543 = vmatpush1.msra.mxu0 0.0
        %3544 = vmatprep.subr.mxu0 0.0
        %3545 = vmatpush1.msra.mxu0 0.0
        %3546 = vmatprep.subr.mxu0 0.0
        %3547 = vmatpush1.msra.mxu0 0.0
        %3548 = vmatprep.subr.mxu0 0.0
        %3549 = vmatpush1.msra.mxu0 0.0
        %3550 = vmatprep.subr.mxu0 0.0
        %3551 = vmatpush1.msra.mxu0 0.0
        %3552 = vmatprep.subr.mxu0 0.0
        %3553 = vmatpush1.msra.mxu0 0.0
        %3554 = vmatprep.subr.mxu0 0.0
        %3555 = vmatpush1.msra.mxu0 0.0
        %3556 = vmatprep.subr.mxu0 0.0
        %3557 = vmatpush1.msra.mxu0 0.0
        %3558 = vmatprep.subr.mxu0 0.0
        %3559 = vmatpush1.msra.mxu0 0.0
        %3560 = vmatprep.subr.mxu0 0.0
        %3561 = vmatpush1.msra.mxu0 0.0
        %3562 = vmatprep.mubr.f32.mxu0 %v3494
        %3563 = vmatmul.mubr.f32.gmra.mrb[0].mxu0 %v3351
        %v3564 = vpop.f32.mrb[0].mxu0
        %v3565 = vadd.f32 %v3485, %v3564
        %v3566 = vpop.f32.mrb[0].mxu0
        %3567 = vmatprep.mubr.f32.mxu0 %v3496
        %3568 = vmatmul.mubr.f32.gmra.mrb[0].mxu0 %v3353
        %v3569 = vpop.f32.mrb[0].mxu0
        %v3570 = vadd.f32 %v3490, %v3569
        %v3571 = vpop.f32.mrb[0].mxu0
        %3572 = vdwg.mxu0
        %v3573 = vld [vmem:[#allocation3] sm:$0xfc]
        %v3574 = vld [vmem:[#allocation3 + $0x8] sm:$0xfc]
        %v3575 = vld [vmem:[#allocation3 + $0x20] sm:$0x3]
        %v3576 = vld [vmem:[#allocation3 + $0x28] sm:$0x3]
        %s3577 = scalar_lea.vmem %s14, 288
        %v3578 = vld [vmem:[%s3577] sm:$0xff]
        %v3579 = vld [vmem:[%s3577 + $0x8] sm:$0xff]
        %v3580 = vld [vmem:[%s3577 + $0x10] sm:$0xff]
        %v3581 = vld [vmem:[%s3577 + $0x18] sm:$0xff]
        %v3582 = vld [vmem:[%s3577 + $0x20] sm:$0xff]
        %v3583 = vld [vmem:[%s3577 + $0x28] sm:$0xff]
        %v3584 = vld [vmem:[%s3577 + $0x30] sm:$0xff]
        %v3585 = vld [vmem:[%s3577 + $0x38] sm:$0xff]
        %v3586 = vld [vmem:[%s3577 + $0x40] sm:$0xff]
        %v3587 = vld [vmem:[%s3577 + $0x48] sm:$0xff]
        %v3588 = vld [vmem:[%s3577 + $0x50] sm:$0xff]
        %v3589 = vld [vmem:[%s3577 + $0x58] sm:$0xff]
        %v3590 = vld [vmem:[%s3577 + $0x60] sm:$0xff]
        %v3591 = vld [vmem:[%s3577 + $0x68] sm:$0xff]
        %v3592 = vld [vmem:[%s3577 + $0x70] sm:$0xff]
        %v3593 = vld [vmem:[%s3577 + $0x78] sm:$0xff]
        %v3594 = vld [vmem:[%s3577 + $0x80] sm:$0xff]
        %v3595 = vld [vmem:[%s3577 + $0x88] sm:$0xff]
        %v3600 = vrot.slane %v3573, 2
        %v3601 = vrot.slane %v3353, 2
        %v3602 = vsel %vm2096, %v3600, %v3601
        %v3603 = vrot.slane %v3574, 2
        %v3604 = vrot.slane %v3354, 2
        %v3605 = vsel %vm2096, %v3603, %v3604
        %v3606 = vrot.slane %v3575, 2
        %v3607 = vsel %vm2096, %v3601, %v3606
        %v3608 = vrot.slane %v3576, 2
        %v3609 = vsel %vm2096, %v3604, %v3608
        %v3612 = vsel %vm1909, %v3605, 0
        %v3614 = vsel %vm1909, %v3609, 0
        %3616 = vmatprep.subr.mxu0 0.0
        %3617 = vmatpush1.msra.mxu0 %v3578
        %3618 = vmatprep.subr.mxu0 0.0
        %3619 = vmatpush1.msra.mxu0 %v3579
        %3620 = vmatprep.subr.mxu0 0.0
        %3621 = vmatpush1.msra.mxu0 %v3580
        %3622 = vmatprep.subr.mxu0 0.0
        %3623 = vmatpush1.msra.mxu0 %v3581
        %3624 = vmatprep.subr.mxu0 0.0
        %3625 = vmatpush1.msra.mxu0 %v3582
        %3626 = vmatprep.subr.mxu0 0.0
        %3627 = vmatpush1.msra.mxu0 %v3583
        %3628 = vmatprep.subr.mxu0 0.0
        %3629 = vmatpush1.msra.mxu0 %v3584
        %3630 = vmatprep.subr.mxu0 0.0
        %3631 = vmatpush1.msra.mxu0 %v3585
        %3632 = vmatprep.subr.mxu0 0.0
        %3633 = vmatpush1.msra.mxu0 %v3586
        %3634 = vmatprep.subr.mxu0 0.0
        %3635 = vmatpush1.msra.mxu0 %v3587
        %3636 = vmatprep.subr.mxu0 0.0
        %3637 = vmatpush1.msra.mxu0 %v3588
        %3638 = vmatprep.subr.mxu0 0.0
        %3639 = vmatpush1.msra.mxu0 %v3589
        %3640 = vmatprep.subr.mxu0 0.0
        %3641 = vmatpush1.msra.mxu0 %v3590
        %3642 = vmatprep.subr.mxu0 0.0
        %3643 = vmatpush1.msra.mxu0 %v3591
        %3644 = vmatprep.subr.mxu0 0.0
        %3645 = vmatpush1.msra.mxu0 %v3592
        %3646 = vmatprep.subr.mxu0 0.0
        %3647 = vmatpush1.msra.mxu0 %v3593
        %3648 = vmatprep.subr.mxu0 0.0
        %3649 = vmatpush1.msra.mxu0 %v3594
        %3650 = vmatprep.subr.mxu0 0.0
        %3651 = vmatpush1.msra.mxu0 %v3595
        %3652 = vmatprep.subr.mxu0 0.0
        %3653 = vmatpush1.msra.mxu0 0.0
        %3654 = vmatprep.subr.mxu0 0.0
        %3655 = vmatpush1.msra.mxu0 0.0
        %3656 = vmatprep.subr.mxu0 0.0
        %3657 = vmatpush1.msra.mxu0 0.0
        %3658 = vmatprep.subr.mxu0 0.0
        %3659 = vmatpush1.msra.mxu0 0.0
        %3660 = vmatprep.subr.mxu0 0.0
        %3661 = vmatpush1.msra.mxu0 0.0
        %3662 = vmatprep.subr.mxu0 0.0
        %3663 = vmatpush1.msra.mxu0 0.0
        %3664 = vmatprep.subr.mxu0 0.0
        %3665 = vmatpush1.msra.mxu0 0.0
        %3666 = vmatprep.subr.mxu0 0.0
        %3667 = vmatpush1.msra.mxu0 0.0
        %3668 = vmatprep.subr.mxu0 0.0
        %3669 = vmatpush1.msra.mxu0 0.0
        %3670 = vmatprep.subr.mxu0 0.0
        %3671 = vmatpush1.msra.mxu0 0.0
        %3672 = vmatprep.subr.mxu0 0.0
        %3673 = vmatpush1.msra.mxu0 0.0
        %3674 = vmatprep.subr.mxu0 0.0
        %3675 = vmatpush1.msra.mxu0 0.0
        %3676 = vmatprep.subr.mxu0 0.0
        %3677 = vmatpush1.msra.mxu0 0.0
        %3678 = vmatprep.subr.mxu0 0.0
        %3679 = vmatpush1.msra.mxu0 0.0
        %3680 = vmatprep.mubr.f32.mxu0 %v3612
        %3681 = vmatmul.mubr.f32.gmra.mrb[0].mxu0 %v3602
        %v3682 = vpop.f32.mrb[0].mxu0
        %v3683 = vadd.f32 0.0, %v3682
        %v3684 = vpop.f32.mrb[0].mxu0
        %3685 = vmatprep.mubr.f32.mxu0 %v3614
        %3686 = vmatmul.mubr.f32.gmra.mrb[0].mxu0 %v3607
        %v3687 = vpop.f32.mrb[0].mxu0
        %v3688 = vadd.f32 0.0, %v3687
        %v3689 = vpop.f32.mrb[0].mxu0
        %3690 = vdwg.mxu0
        %v3691 = vadd.f32 %v3565, %v3683
        %v3692 = vadd.f32 %v3570, %v3688
        %v3695 = vrot.slane %v2576, 7
        %v3696 = vrot.slane %v2577, 7
        %v3697 = vsel %vm1821, %v3695, %v3696
        %3698 = vrot.lane.b32.xlu0 %v3695, 8
        %v3699 = vpop.permute.xlu0 %3698
        %3700 = vrot.lane.b32.xlu0 %v3697, 8
        %v3701 = vpop.permute.xlu0 %3700
        %3702 = vrot.lane.b32.xlu0 %v3696, 8
        %v3703 = vpop.permute.xlu0 %3702
        %3707 = vst.msk [vmem:[#allocation3] sm:$0xfe] %vm1834, %v3699
        %3708 = vst.msk [vmem:[#allocation3 + $0x8] sm:$0xfe] %vm1836, %v3699
        %3709 = vst.msk [vmem:[#allocation3 + $0x10] sm:$0xff] %vm1838, %v3701
        %3710 = vst.msk [vmem:[#allocation3 + $0x18] sm:$0xff] %vm1486, %v3701
        %3711 = vst.msk [vmem:[#allocation3 + $0x20] sm:$0x1] %vm1841, %v3703
        %3712 = vst.msk [vmem:[#allocation3 + $0x28] sm:$0x1] %vm1843, %v3703
        %v3713 = vld [vmem:[#allocation3] sm:$0xff]
        %v3714 = vld [vmem:[#allocation3 + $0x8] sm:$0xff]
        %v3715 = vld [vmem:[#allocation3 + $0x10] sm:$0xff]
        %v3716 = vld [vmem:[#allocation3 + $0x18] sm:$0xff]
        %v3717 = vld [vmem:[#allocation16] sm:$0xff]
        %v3718 = vld [vmem:[#allocation16 + $0x8] sm:$0xff]
        %v3719 = vld [vmem:[#allocation16 + $0x10] sm:$0xff]
        %v3720 = vld [vmem:[#allocation16 + $0x18] sm:$0xff]
        %v3721 = vld [vmem:[#allocation16 + $0x20] sm:$0xff]
        %v3722 = vld [vmem:[#allocation16 + $0x28] sm:$0xff]
        %v3723 = vld [vmem:[#allocation16 + $0x30] sm:$0xff]
        %v3724 = vld [vmem:[#allocation16 + $0x38] sm:$0xff]
        %v3725 = vld [vmem:[#allocation16 + $0x40] sm:$0xff]
        %v3726 = vld [vmem:[#allocation16 + $0x48] sm:$0xff]
        %v3727 = vld [vmem:[#allocation16 + $0x50] sm:$0xff]
        %v3728 = vld [vmem:[#allocation16 + $0x58] sm:$0xff]
        %v3729 = vld [vmem:[#allocation16 + $0x60] sm:$0xff]
        %v3730 = vld [vmem:[#allocation16 + $0x68] sm:$0xff]
        %v3731 = vld [vmem:[#allocation16 + $0x70] sm:$0xff]
        %v3732 = vld [vmem:[#allocation16 + $0x78] sm:$0xff]
        %v3733 = vld [vmem:[#allocation16 + $0x80] sm:$0xff]
        %v3734 = vld [vmem:[#allocation16 + $0x88] sm:$0xff]
        %v3735 = vld [vmem:[#allocation3] sm:$0xfe]
        %v3736 = vld [vmem:[#allocation3 + $0x8] sm:$0xfe]
        %v3737 = vld [vmem:[#allocation3 + $0x20] sm:$0x1]
        %v3738 = vld [vmem:[#allocation3 + $0x28] sm:$0x1]
        %s3739 = scalar_lea.vmem [#allocation16], 144
        %v3740 = vld [vmem:[%s3739] sm:$0xff]
        %v3741 = vld [vmem:[%s3739 + $0x8] sm:$0xff]
        %v3742 = vld [vmem:[%s3739 + $0x10] sm:$0xff]
        %v3743 = vld [vmem:[%s3739 + $0x18] sm:$0xff]
        %v3744 = vld [vmem:[%s3739 + $0x20] sm:$0xff]
        %v3745 = vld [vmem:[%s3739 + $0x28] sm:$0xff]
        %v3746 = vld [vmem:[%s3739 + $0x30] sm:$0xff]
        %v3747 = vld [vmem:[%s3739 + $0x38] sm:$0xff]
        %v3748 = vld [vmem:[%s3739 + $0x40] sm:$0xff]
        %v3749 = vld [vmem:[%s3739 + $0x48] sm:$0xff]
        %v3750 = vld [vmem:[%s3739 + $0x50] sm:$0xff]
        %v3751 = vld [vmem:[%s3739 + $0x58] sm:$0xff]
        %v3752 = vld [vmem:[%s3739 + $0x60] sm:$0xff]
        %v3753 = vld [vmem:[%s3739 + $0x68] sm:$0xff]
        %v3754 = vld [vmem:[%s3739 + $0x70] sm:$0xff]
        %v3755 = vld [vmem:[%s3739 + $0x78] sm:$0xff]
        %v3756 = vld [vmem:[%s3739 + $0x80] sm:$0xff]
        %v3757 = vld [vmem:[%s3739 + $0x88] sm:$0xff]
        %v3764 = vrot.slane %v3735, 1
        %v3765 = vrot.slane %v3715, 1
        %v3766 = vsel %vm1896, %v3764, %v3765
        %v3767 = vrot.slane %v3736, 1
        %v3768 = vrot.slane %v3716, 1
        %v3769 = vsel %vm1896, %v3767, %v3768
        %v3770 = vrot.slane %v3737, 1
        %v3771 = vsel %vm1896, %v3765, %v3770
        %v3772 = vrot.slane %v3738, 1
        %v3773 = vsel %vm1896, %v3768, %v3772
        %v3776 = vsel %vm1909, %v3769, 0
        %v3778 = vsel %vm1909, %v3773, 0
        %3780 = vmatprep.subr.mxu0 0.0
        %3781 = vmatpush1.msra.mxu0 %v3740
        %3782 = vmatprep.subr.mxu0 0.0
        %3783 = vmatpush1.msra.mxu0 %v3741
        %3784 = vmatprep.subr.mxu0 0.0
        %3785 = vmatpush1.msra.mxu0 %v3742
        %3786 = vmatprep.subr.mxu0 0.0
        %3787 = vmatpush1.msra.mxu0 %v3743
        %3788 = vmatprep.subr.mxu0 0.0
        %3789 = vmatpush1.msra.mxu0 %v3744
        %3790 = vmatprep.subr.mxu0 0.0
        %3791 = vmatpush1.msra.mxu0 %v3745
        %3792 = vmatprep.subr.mxu0 0.0
        %3793 = vmatpush1.msra.mxu0 %v3746
        %3794 = vmatprep.subr.mxu0 0.0
        %3795 = vmatpush1.msra.mxu0 %v3747
        %3796 = vmatprep.subr.mxu0 0.0
        %3797 = vmatpush1.msra.mxu0 %v3748
        %3798 = vmatprep.subr.mxu0 0.0
        %3799 = vmatpush1.msra.mxu0 %v3749
        %3800 = vmatprep.subr.mxu0 0.0
        %3801 = vmatpush1.msra.mxu0 %v3750
        %3802 = vmatprep.subr.mxu0 0.0
        %3803 = vmatpush1.msra.mxu0 %v3751
        %3804 = vmatprep.subr.mxu0 0.0
        %3805 = vmatpush1.msra.mxu0 %v3752
        %3806 = vmatprep.subr.mxu0 0.0
        %3807 = vmatpush1.msra.mxu0 %v3753
        %3808 = vmatprep.subr.mxu0 0.0
        %3809 = vmatpush1.msra.mxu0 %v3754
        %3810 = vmatprep.subr.mxu0 0.0
        %3811 = vmatpush1.msra.mxu0 %v3755
        %3812 = vmatprep.subr.mxu0 0.0
        %3813 = vmatpush1.msra.mxu0 %v3756
        %3814 = vmatprep.subr.mxu0 0.0
        %3815 = vmatpush1.msra.mxu0 %v3757
        %3816 = vmatprep.subr.mxu0 0.0
        %3817 = vmatpush1.msra.mxu0 0.0
        %3818 = vmatprep.subr.mxu0 0.0
        %3819 = vmatpush1.msra.mxu0 0.0
        %3820 = vmatprep.subr.mxu0 0.0
        %3821 = vmatpush1.msra.mxu0 0.0
        %3822 = vmatprep.subr.mxu0 0.0
        %3823 = vmatpush1.msra.mxu0 0.0
        %3824 = vmatprep.subr.mxu0 0.0
        %3825 = vmatpush1.msra.mxu0 0.0
        %3826 = vmatprep.subr.mxu0 0.0
        %3827 = vmatpush1.msra.mxu0 0.0
        %3828 = vmatprep.subr.mxu0 0.0
        %3829 = vmatpush1.msra.mxu0 0.0
        %3830 = vmatprep.subr.mxu0 0.0
        %3831 = vmatpush1.msra.mxu0 0.0
        %3832 = vmatprep.subr.mxu0 0.0
        %3833 = vmatpush1.msra.mxu0 0.0
        %3834 = vmatprep.subr.mxu0 0.0
        %3835 = vmatpush1.msra.mxu0 0.0
        %3836 = vmatprep.subr.mxu0 0.0
        %3837 = vmatpush1.msra.mxu0 0.0
        %3838 = vmatprep.subr.mxu0 0.0
        %3839 = vmatpush1.msra.mxu0 0.0
        %3840 = vmatprep.subr.mxu0 0.0
        %3841 = vmatpush1.msra.mxu0 0.0
        %3842 = vmatprep.subr.mxu0 0.0
        %3843 = vmatpush1.msra.mxu0 0.0
        %3844 = vmatprep.mubr.f32.mxu0 %v3776
        %3845 = vmatmul.mubr.f32.gmra.mrb[0].mxu0 %v3766
        %v3846 = vpop.f32.mrb[0].mxu0
        %v3847 = vadd.f32 0.0, %v3846
        %v3848 = vpop.f32.mrb[0].mxu0
        %3849 = vmatprep.mubr.f32.mxu0 %v3778
        %3850 = vmatmul.mubr.f32.gmra.mrb[0].mxu0 %v3771
        %v3851 = vpop.f32.mrb[0].mxu0
        %v3852 = vadd.f32 0.0, %v3851
        %v3853 = vpop.f32.mrb[0].mxu0
        %3854 = vdwg.mxu0
        %v3856 = vsel %vm1909, %v3714, 0
        %v3858 = vsel %vm1909, %v3716, 0
        %3860 = vmatprep.subr.mxu0 0.0
        %3861 = vmatpush1.msra.mxu0 %v3717
        %3862 = vmatprep.subr.mxu0 0.0
        %3863 = vmatpush1.msra.mxu0 %v3718
        %3864 = vmatprep.subr.mxu0 0.0
        %3865 = vmatpush1.msra.mxu0 %v3719
        %3866 = vmatprep.subr.mxu0 0.0
        %3867 = vmatpush1.msra.mxu0 %v3720
        %3868 = vmatprep.subr.mxu0 0.0
        %3869 = vmatpush1.msra.mxu0 %v3721
        %3870 = vmatprep.subr.mxu0 0.0
        %3871 = vmatpush1.msra.mxu0 %v3722
        %3872 = vmatprep.subr.mxu0 0.0
        %3873 = vmatpush1.msra.mxu0 %v3723
        %3874 = vmatprep.subr.mxu0 0.0
        %3875 = vmatpush1.msra.mxu0 %v3724
        %3876 = vmatprep.subr.mxu0 0.0
        %3877 = vmatpush1.msra.mxu0 %v3725
        %3878 = vmatprep.subr.mxu0 0.0
        %3879 = vmatpush1.msra.mxu0 %v3726
        %3880 = vmatprep.subr.mxu0 0.0
        %3881 = vmatpush1.msra.mxu0 %v3727
        %3882 = vmatprep.subr.mxu0 0.0
        %3883 = vmatpush1.msra.mxu0 %v3728
        %3884 = vmatprep.subr.mxu0 0.0
        %3885 = vmatpush1.msra.mxu0 %v3729
        %3886 = vmatprep.subr.mxu0 0.0
        %3887 = vmatpush1.msra.mxu0 %v3730
        %3888 = vmatprep.subr.mxu0 0.0
        %3889 = vmatpush1.msra.mxu0 %v3731
        %3890 = vmatprep.subr.mxu0 0.0
        %3891 = vmatpush1.msra.mxu0 %v3732
        %3892 = vmatprep.subr.mxu0 0.0
        %3893 = vmatpush1.msra.mxu0 %v3733
        %3894 = vmatprep.subr.mxu0 0.0
        %3895 = vmatpush1.msra.mxu0 %v3734
        %3896 = vmatprep.subr.mxu0 0.0
        %3897 = vmatpush1.msra.mxu0 0.0
        %3898 = vmatprep.subr.mxu0 0.0
        %3899 = vmatpush1.msra.mxu0 0.0
        %3900 = vmatprep.subr.mxu0 0.0
        %3901 = vmatpush1.msra.mxu0 0.0
        %3902 = vmatprep.subr.mxu0 0.0
        %3903 = vmatpush1.msra.mxu0 0.0
        %3904 = vmatprep.subr.mxu0 0.0
        %3905 = vmatpush1.msra.mxu0 0.0
        %3906 = vmatprep.subr.mxu0 0.0
        %3907 = vmatpush1.msra.mxu0 0.0
        %3908 = vmatprep.subr.mxu0 0.0
        %3909 = vmatpush1.msra.mxu0 0.0
        %3910 = vmatprep.subr.mxu0 0.0
        %3911 = vmatpush1.msra.mxu0 0.0
        %3912 = vmatprep.subr.mxu0 0.0
        %3913 = vmatpush1.msra.mxu0 0.0
        %3914 = vmatprep.subr.mxu0 0.0
        %3915 = vmatpush1.msra.mxu0 0.0
        %3916 = vmatprep.subr.mxu0 0.0
        %3917 = vmatpush1.msra.mxu0 0.0
        %3918 = vmatprep.subr.mxu0 0.0
        %3919 = vmatpush1.msra.mxu0 0.0
        %3920 = vmatprep.subr.mxu0 0.0
        %3921 = vmatpush1.msra.mxu0 0.0
        %3922 = vmatprep.subr.mxu0 0.0
        %3923 = vmatpush1.msra.mxu0 0.0
        %3924 = vmatprep.mubr.f32.mxu0 %v3856
        %3925 = vmatmul.mubr.f32.gmra.mrb[0].mxu0 %v3713
        %v3926 = vpop.f32.mrb[0].mxu0
        %v3927 = vadd.f32 %v3847, %v3926
        %v3928 = vpop.f32.mrb[0].mxu0
        %3929 = vmatprep.mubr.f32.mxu0 %v3858
        %3930 = vmatmul.mubr.f32.gmra.mrb[0].mxu0 %v3715
        %v3931 = vpop.f32.mrb[0].mxu0
        %v3932 = vadd.f32 %v3852, %v3931
        %v3933 = vpop.f32.mrb[0].mxu0
        %3934 = vdwg.mxu0
        %v3935 = vld [vmem:[#allocation3] sm:$0xfc]
        %v3936 = vld [vmem:[#allocation3 + $0x8] sm:$0xfc]
        %v3937 = vld [vmem:[#allocation3 + $0x20] sm:$0x3]
        %v3938 = vld [vmem:[#allocation3 + $0x28] sm:$0x3]
        %s3939 = scalar_lea.vmem [#allocation16], 288
        %v3940 = vld [vmem:[%s3939] sm:$0xff]
        %v3941 = vld [vmem:[%s3939 + $0x8] sm:$0xff]
        %v3942 = vld [vmem:[%s3939 + $0x10] sm:$0xff]
        %v3943 = vld [vmem:[%s3939 + $0x18] sm:$0xff]
        %v3944 = vld [vmem:[%s3939 + $0x20] sm:$0xff]
        %v3945 = vld [vmem:[%s3939 + $0x28] sm:$0xff]
        %v3946 = vld [vmem:[%s3939 + $0x30] sm:$0xff]
        %v3947 = vld [vmem:[%s3939 + $0x38] sm:$0xff]
        %v3948 = vld [vmem:[%s3939 + $0x40] sm:$0xff]
        %v3949 = vld [vmem:[%s3939 + $0x48] sm:$0xff]
        %v3950 = vld [vmem:[%s3939 + $0x50] sm:$0xff]
        %v3951 = vld [vmem:[%s3939 + $0x58] sm:$0xff]
        %v3952 = vld [vmem:[%s3939 + $0x60] sm:$0xff]
        %v3953 = vld [vmem:[%s3939 + $0x68] sm:$0xff]
        %v3954 = vld [vmem:[%s3939 + $0x70] sm:$0xff]
        %v3955 = vld [vmem:[%s3939 + $0x78] sm:$0xff]
        %v3956 = vld [vmem:[%s3939 + $0x80] sm:$0xff]
        %v3957 = vld [vmem:[%s3939 + $0x88] sm:$0xff]
        %v3962 = vrot.slane %v3935, 2
        %v3963 = vrot.slane %v3715, 2
        %v3964 = vsel %vm2096, %v3962, %v3963
        %v3965 = vrot.slane %v3936, 2
        %v3966 = vrot.slane %v3716, 2
        %v3967 = vsel %vm2096, %v3965, %v3966
        %v3968 = vrot.slane %v3937, 2
        %v3969 = vsel %vm2096, %v3963, %v3968
        %v3970 = vrot.slane %v3938, 2
        %v3971 = vsel %vm2096, %v3966, %v3970
        %v3974 = vsel %vm1909, %v3967, 0
        %v3976 = vsel %vm1909, %v3971, 0
        %3978 = vmatprep.subr.mxu0 0.0
        %3979 = vmatpush1.msra.mxu0 %v3940
        %3980 = vmatprep.subr.mxu0 0.0
        %3981 = vmatpush1.msra.mxu0 %v3941
        %3982 = vmatprep.subr.mxu0 0.0
        %3983 = vmatpush1.msra.mxu0 %v3942
        %3984 = vmatprep.subr.mxu0 0.0
        %3985 = vmatpush1.msra.mxu0 %v3943
        %3986 = vmatprep.subr.mxu0 0.0
        %3987 = vmatpush1.msra.mxu0 %v3944
        %3988 = vmatprep.subr.mxu0 0.0
        %3989 = vmatpush1.msra.mxu0 %v3945
        %3990 = vmatprep.subr.mxu0 0.0
        %3991 = vmatpush1.msra.mxu0 %v3946
        %3992 = vmatprep.subr.mxu0 0.0
        %3993 = vmatpush1.msra.mxu0 %v3947
        %3994 = vmatprep.subr.mxu0 0.0
        %3995 = vmatpush1.msra.mxu0 %v3948
        %3996 = vmatprep.subr.mxu0 0.0
        %3997 = vmatpush1.msra.mxu0 %v3949
        %3998 = vmatprep.subr.mxu0 0.0
        %3999 = vmatpush1.msra.mxu0 %v3950
        %4000 = vmatprep.subr.mxu0 0.0
        %4001 = vmatpush1.msra.mxu0 %v3951
        %4002 = vmatprep.subr.mxu0 0.0
        %4003 = vmatpush1.msra.mxu0 %v3952
        %4004 = vmatprep.subr.mxu0 0.0
        %4005 = vmatpush1.msra.mxu0 %v3953
        %4006 = vmatprep.subr.mxu0 0.0
        %4007 = vmatpush1.msra.mxu0 %v3954
        %4008 = vmatprep.subr.mxu0 0.0
        %4009 = vmatpush1.msra.mxu0 %v3955
        %4010 = vmatprep.subr.mxu0 0.0
        %4011 = vmatpush1.msra.mxu0 %v3956
        %4012 = vmatprep.subr.mxu0 0.0
        %4013 = vmatpush1.msra.mxu0 %v3957
        %4014 = vmatprep.subr.mxu0 0.0
        %4015 = vmatpush1.msra.mxu0 0.0
        %4016 = vmatprep.subr.mxu0 0.0
        %4017 = vmatpush1.msra.mxu0 0.0
        %4018 = vmatprep.subr.mxu0 0.0
        %4019 = vmatpush1.msra.mxu0 0.0
        %4020 = vmatprep.subr.mxu0 0.0
        %4021 = vmatpush1.msra.mxu0 0.0
        %4022 = vmatprep.subr.mxu0 0.0
        %4023 = vmatpush1.msra.mxu0 0.0
        %4024 = vmatprep.subr.mxu0 0.0
        %4025 = vmatpush1.msra.mxu0 0.0
        %4026 = vmatprep.subr.mxu0 0.0
        %4027 = vmatpush1.msra.mxu0 0.0
        %4028 = vmatprep.subr.mxu0 0.0
        %4029 = vmatpush1.msra.mxu0 0.0
        %4030 = vmatprep.subr.mxu0 0.0
        %4031 = vmatpush1.msra.mxu0 0.0
        %4032 = vmatprep.subr.mxu0 0.0
        %4033 = vmatpush1.msra.mxu0 0.0
        %4034 = vmatprep.subr.mxu0 0.0
        %4035 = vmatpush1.msra.mxu0 0.0
        %4036 = vmatprep.subr.mxu0 0.0
        %4037 = vmatpush1.msra.mxu0 0.0
        %4038 = vmatprep.subr.mxu0 0.0
        %4039 = vmatpush1.msra.mxu0 0.0
        %4040 = vmatprep.subr.mxu0 0.0
        %4041 = vmatpush1.msra.mxu0 0.0
        %4042 = vmatprep.mubr.f32.mxu0 %v3974
        %4043 = vmatmul.mubr.f32.gmra.mrb[0].mxu0 %v3964
        %v4044 = vpop.f32.mrb[0].mxu0
        %v4045 = vadd.f32 0.0, %v4044
        %v4046 = vpop.f32.mrb[0].mxu0
        %4047 = vmatprep.mubr.f32.mxu0 %v3976
        %4048 = vmatmul.mubr.f32.gmra.mrb[0].mxu0 %v3969
        %v4049 = vpop.f32.mrb[0].mxu0
        %v4050 = vadd.f32 0.0, %v4049
        %v4051 = vpop.f32.mrb[0].mxu0
        %4052 = vdwg.mxu0
        %v4053 = vadd.f32 %v3927, %v4045
        %v4054 = vadd.f32 %v3932, %v4050
        %v4055 = vadd.f32 %v3691, %v4053
        %v4056 = vadd.f32 %v3692, %v4054
        %v4057 = vld [vmem:[#allocation18] sm:$0x1]
        %v4059 = vlaneseq
        %v4060 = vshrl.u32 %v4059, 7
        %v4061 = vsub.s32 0, %v4060
        %v4062 = vrot.slane %v4057, %v4061
        %v4064 = vadd.f32 %v4055, %v4062
        %v4065 = vadd.f32 %v4056, %v4062
        %v4066 = vmax.f32 %v4064, 0.0
        %v4067 = vmax.f32 %v4065, 0.0
        %4068 = vst [vmem:[%s859] sm:$0xff] %v4066
        %4069 = vst [vmem:[%s859 + $0x8] sm:$0xff] %v4067
        %vm4072 = vcmask 1042432
        %v4073 = vrot.slane %v4066, 5
        %v4074 = vrot.slane %v4067, 5
        %v4075 = vsel %vm4072, %v4073, %v4074
        %4076 = vrot.lane.b32.xlu0 %v4073, 24
        %v4077 = vpop.permute.xlu0 %4076
        %4078 = vrot.lane.b32.xlu0 %v4075, 24
        %v4079 = vpop.permute.xlu0 %4078
        %4080 = vrot.lane.b32.xlu0 %v4074, 24
        %v4081 = vpop.permute.xlu0 %4080
        %vm4085 = vcmask 1047747
        %4086 = vst.msk [vmem:[#allocation4] sm:$0xf8] %vm4085, %v4077
        %vm4087 = vcmask 195587
        %4088 = vst.msk [vmem:[#allocation4 + $0x8] sm:$0xf8] %vm4087, %v4077
        %vm4089 = vcmask 1047744
        %4090 = vst.msk [vmem:[#allocation4 + $0x10] sm:$0xff] %vm4089, %v4079
        %vm4091 = vcmask 195584
        %4092 = vst.msk [vmem:[#allocation4 + $0x18] sm:$0xff] %vm4091, %v4079
        %vm4093 = vcmask 1042624
        %4094 = vst.msk [vmem:[#allocation4 + $0x20] sm:$0x7] %vm4093, %v4081
        %vm4095 = vcmask 190464
        %4096 = vst.msk [vmem:[#allocation4 + $0x28] sm:$0x7] %vm4095, %v4081
        %v4097 = vld [vmem:[#allocation4] sm:$0xff]
        %v4098 = vld [vmem:[#allocation4 + $0x8] sm:$0xff]
        %v4099 = vld [vmem:[#allocation4 + $0x10] sm:$0xff]
        %v4100 = vld [vmem:[#allocation4 + $0x18] sm:$0xff]
        %v4101 = vld [vmem:[%s17] sm:$0xff]
        %v4102 = vld [vmem:[%s17 + $0x8] sm:$0xff]
        %v4103 = vld [vmem:[%s17 + $0x10] sm:$0xff]
        %v4104 = vld [vmem:[%s17 + $0x18] sm:$0xff]
        %v4105 = vld [vmem:[%s17 + $0x20] sm:$0xff]
        %v4106 = vld [vmem:[%s17 + $0x28] sm:$0xff]
        %v4107 = vld [vmem:[%s17 + $0x30] sm:$0xff]
        %v4108 = vld [vmem:[%s17 + $0x38] sm:$0xff]
        %v4109 = vld [vmem:[%s17 + $0x40] sm:$0xff]
        %v4110 = vld [vmem:[%s17 + $0x48] sm:$0xff]
        %v4111 = vld [vmem:[%s17 + $0x50] sm:$0xff]
        %v4112 = vld [vmem:[%s17 + $0x58] sm:$0xff]
        %v4113 = vld [vmem:[%s17 + $0x60] sm:$0xff]
        %v4114 = vld [vmem:[%s17 + $0x68] sm:$0xff]
        %v4115 = vld [vmem:[%s17 + $0x70] sm:$0xff]
        %v4116 = vld [vmem:[%s17 + $0x78] sm:$0xff]
        %v4117 = vld [vmem:[%s17 + $0x80] sm:$0xff]
        %v4118 = vld [vmem:[%s17 + $0x88] sm:$0xff]
        %v4119 = vld [vmem:[%s17 + $0x90] sm:$0xff]
        %v4120 = vld [vmem:[%s17 + $0x98] sm:$0xff]
        %v4121 = vld [vmem:[%s17 + $0xa0] sm:$0xff]
        %v4122 = vld [vmem:[%s17 + $0xa8] sm:$0xff]
        %v4123 = vld [vmem:[#allocation4] sm:$0xfe]
        %v4124 = vld [vmem:[#allocation4 + $0x8] sm:$0xfe]
        %v4125 = vld [vmem:[#allocation4 + $0x20] sm:$0x1]
        %v4126 = vld [vmem:[#allocation4 + $0x28] sm:$0x1]
        %s4127 = scalar_lea.vmem %s17, 176
        %v4128 = vld [vmem:[%s4127] sm:$0xff]
        %v4129 = vld [vmem:[%s4127 + $0x8] sm:$0xff]
        %v4130 = vld [vmem:[%s4127 + $0x10] sm:$0xff]
        %v4131 = vld [vmem:[%s4127 + $0x18] sm:$0xff]
        %v4132 = vld [vmem:[%s4127 + $0x20] sm:$0xff]
        %v4133 = vld [vmem:[%s4127 + $0x28] sm:$0xff]
        %v4134 = vld [vmem:[%s4127 + $0x30] sm:$0xff]
        %v4135 = vld [vmem:[%s4127 + $0x38] sm:$0xff]
        %v4136 = vld [vmem:[%s4127 + $0x40] sm:$0xff]
        %v4137 = vld [vmem:[%s4127 + $0x48] sm:$0xff]
        %v4138 = vld [vmem:[%s4127 + $0x50] sm:$0xff]
        %v4139 = vld [vmem:[%s4127 + $0x58] sm:$0xff]
        %v4140 = vld [vmem:[%s4127 + $0x60] sm:$0xff]
        %v4141 = vld [vmem:[%s4127 + $0x68] sm:$0xff]
        %v4142 = vld [vmem:[%s4127 + $0x70] sm:$0xff]
        %v4143 = vld [vmem:[%s4127 + $0x78] sm:$0xff]
        %v4144 = vld [vmem:[%s4127 + $0x80] sm:$0xff]
        %v4145 = vld [vmem:[%s4127 + $0x88] sm:$0xff]
        %v4146 = vld [vmem:[%s4127 + $0x90] sm:$0xff]
        %v4147 = vld [vmem:[%s4127 + $0x98] sm:$0xff]
        %v4148 = vld [vmem:[%s4127 + $0xa0] sm:$0xff]
        %v4149 = vld [vmem:[%s4127 + $0xa8] sm:$0xff]
        %v4156 = vrot.slane %v4123, 1
        %v4157 = vrot.slane %v4099, 1
        %v4158 = vsel %vm1896, %v4156, %v4157
        %v4159 = vrot.slane %v4124, 1
        %v4160 = vrot.slane %v4100, 1
        %v4161 = vsel %vm1896, %v4159, %v4160
        %v4162 = vrot.slane %v4125, 1
        %v4163 = vsel %vm1896, %v4157, %v4162
        %v4164 = vrot.slane %v4126, 1
        %v4165 = vsel %vm1896, %v4160, %v4164
        %vm4168 = vcmask 392192
        %v4169 = vsel %vm4168, %v4161, 0
        %v4171 = vsel %vm4168, %v4165, 0
        %4173 = vmatprep.subr.mxu0 0.0
        %4174 = vmatpush1.msra.mxu0 %v4128
        %4175 = vmatprep.subr.mxu0 0.0
        %4176 = vmatpush1.msra.mxu0 %v4129
        %4177 = vmatprep.subr.mxu0 0.0
        %4178 = vmatpush1.msra.mxu0 %v4130
        %4179 = vmatprep.subr.mxu0 0.0
        %4180 = vmatpush1.msra.mxu0 %v4131
        %4181 = vmatprep.subr.mxu0 0.0
        %4182 = vmatpush1.msra.mxu0 %v4132
        %4183 = vmatprep.subr.mxu0 0.0
        %4184 = vmatpush1.msra.mxu0 %v4133
        %4185 = vmatprep.subr.mxu0 0.0
        %4186 = vmatpush1.msra.mxu0 %v4134
        %4187 = vmatprep.subr.mxu0 0.0
        %4188 = vmatpush1.msra.mxu0 %v4135
        %4189 = vmatprep.subr.mxu0 0.0
        %4190 = vmatpush1.msra.mxu0 %v4136
        %4191 = vmatprep.subr.mxu0 0.0
        %4192 = vmatpush1.msra.mxu0 %v4137
        %4193 = vmatprep.subr.mxu0 0.0
        %4194 = vmatpush1.msra.mxu0 %v4138
        %4195 = vmatprep.subr.mxu0 0.0
        %4196 = vmatpush1.msra.mxu0 %v4139
        %4197 = vmatprep.subr.mxu0 0.0
        %4198 = vmatpush1.msra.mxu0 %v4140
        %4199 = vmatprep.subr.mxu0 0.0
        %4200 = vmatpush1.msra.mxu0 %v4141
        %4201 = vmatprep.subr.mxu0 0.0
        %4202 = vmatpush1.msra.mxu0 %v4142
        %4203 = vmatprep.subr.mxu0 0.0
        %4204 = vmatpush1.msra.mxu0 %v4143
        %4205 = vmatprep.subr.mxu0 0.0
        %4206 = vmatpush1.msra.mxu0 %v4144
        %4207 = vmatprep.subr.mxu0 0.0
        %4208 = vmatpush1.msra.mxu0 %v4145
        %4209 = vmatprep.subr.mxu0 0.0
        %4210 = vmatpush1.msra.mxu0 %v4146
        %4211 = vmatprep.subr.mxu0 0.0
        %4212 = vmatpush1.msra.mxu0 %v4147
        %4213 = vmatprep.subr.mxu0 0.0
        %4214 = vmatpush1.msra.mxu0 %v4148
        %4215 = vmatprep.subr.mxu0 0.0
        %4216 = vmatpush1.msra.mxu0 %v4149
        %4217 = vmatprep.subr.mxu0 0.0
        %4218 = vmatpush1.msra.mxu0 0.0
        %4219 = vmatprep.subr.mxu0 0.0
        %4220 = vmatpush1.msra.mxu0 0.0
        %4221 = vmatprep.subr.mxu0 0.0
        %4222 = vmatpush1.msra.mxu0 0.0
        %4223 = vmatprep.subr.mxu0 0.0
        %4224 = vmatpush1.msra.mxu0 0.0
        %4225 = vmatprep.subr.mxu0 0.0
        %4226 = vmatpush1.msra.mxu0 0.0
        %4227 = vmatprep.subr.mxu0 0.0
        %4228 = vmatpush1.msra.mxu0 0.0
        %4229 = vmatprep.subr.mxu0 0.0
        %4230 = vmatpush1.msra.mxu0 0.0
        %4231 = vmatprep.subr.mxu0 0.0
        %4232 = vmatpush1.msra.mxu0 0.0
        %4233 = vmatprep.subr.mxu0 0.0
        %4234 = vmatpush1.msra.mxu0 0.0
        %4235 = vmatprep.subr.mxu0 0.0
        %4236 = vmatpush1.msra.mxu0 0.0
        %4237 = vmatprep.mubr.f32.mxu0 %v4169
        %4238 = vmatmul.mubr.f32.gmra.mrb[0].mxu0 %v4158
        %v4239 = vpop.f32.mrb[0].mxu0
        %v4240 = vadd.f32 0.0, %v4239
        %v4241 = vpop.f32.mrb[0].mxu0
        %4242 = vmatprep.mubr.f32.mxu0 %v4171
        %4243 = vmatmul.mubr.f32.gmra.mrb[0].mxu0 %v4163
        %v4244 = vpop.f32.mrb[0].mxu0
        %v4245 = vadd.f32 0.0, %v4244
        %v4246 = vpop.f32.mrb[0].mxu0
        %4247 = vdwg.mxu0
        %v4249 = vsel %vm4168, %v4098, 0
        %v4251 = vsel %vm4168, %v4100, 0
        %4253 = vmatprep.subr.mxu0 0.0
        %4254 = vmatpush1.msra.mxu0 %v4101
        %4255 = vmatprep.subr.mxu0 0.0
        %4256 = vmatpush1.msra.mxu0 %v4102
        %4257 = vmatprep.subr.mxu0 0.0
        %4258 = vmatpush1.msra.mxu0 %v4103
        %4259 = vmatprep.subr.mxu0 0.0
        %4260 = vmatpush1.msra.mxu0 %v4104
        %4261 = vmatprep.subr.mxu0 0.0
        %4262 = vmatpush1.msra.mxu0 %v4105
        %4263 = vmatprep.subr.mxu0 0.0
        %4264 = vmatpush1.msra.mxu0 %v4106
        %4265 = vmatprep.subr.mxu0 0.0
        %4266 = vmatpush1.msra.mxu0 %v4107
        %4267 = vmatprep.subr.mxu0 0.0
        %4268 = vmatpush1.msra.mxu0 %v4108
        %4269 = vmatprep.subr.mxu0 0.0
        %4270 = vmatpush1.msra.mxu0 %v4109
        %4271 = vmatprep.subr.mxu0 0.0
        %4272 = vmatpush1.msra.mxu0 %v4110
        %4273 = vmatprep.subr.mxu0 0.0
        %4274 = vmatpush1.msra.mxu0 %v4111
        %4275 = vmatprep.subr.mxu0 0.0
        %4276 = vmatpush1.msra.mxu0 %v4112
        %4277 = vmatprep.subr.mxu0 0.0
        %4278 = vmatpush1.msra.mxu0 %v4113
        %4279 = vmatprep.subr.mxu0 0.0
        %4280 = vmatpush1.msra.mxu0 %v4114
        %4281 = vmatprep.subr.mxu0 0.0
        %4282 = vmatpush1.msra.mxu0 %v4115
        %4283 = vmatprep.subr.mxu0 0.0
        %4284 = vmatpush1.msra.mxu0 %v4116
        %4285 = vmatprep.subr.mxu0 0.0
        %4286 = vmatpush1.msra.mxu0 %v4117
        %4287 = vmatprep.subr.mxu0 0.0
        %4288 = vmatpush1.msra.mxu0 %v4118
        %4289 = vmatprep.subr.mxu0 0.0
        %4290 = vmatpush1.msra.mxu0 %v4119
        %4291 = vmatprep.subr.mxu0 0.0
        %4292 = vmatpush1.msra.mxu0 %v4120
        %4293 = vmatprep.subr.mxu0 0.0
        %4294 = vmatpush1.msra.mxu0 %v4121
        %4295 = vmatprep.subr.mxu0 0.0
        %4296 = vmatpush1.msra.mxu0 %v4122
        %4297 = vmatprep.subr.mxu0 0.0
        %4298 = vmatpush1.msra.mxu0 0.0
        %4299 = vmatprep.subr.mxu0 0.0
        %4300 = vmatpush1.msra.mxu0 0.0
        %4301 = vmatprep.subr.mxu0 0.0
        %4302 = vmatpush1.msra.mxu0 0.0
        %4303 = vmatprep.subr.mxu0 0.0
        %4304 = vmatpush1.msra.mxu0 0.0
        %4305 = vmatprep.subr.mxu0 0.0
        %4306 = vmatpush1.msra.mxu0 0.0
        %4307 = vmatprep.subr.mxu0 0.0
        %4308 = vmatpush1.msra.mxu0 0.0
        %4309 = vmatprep.subr.mxu0 0.0
        %4310 = vmatpush1.msra.mxu0 0.0
        %4311 = vmatprep.subr.mxu0 0.0
        %4312 = vmatpush1.msra.mxu0 0.0
        %4313 = vmatprep.subr.mxu0 0.0
        %4314 = vmatpush1.msra.mxu0 0.0
        %4315 = vmatprep.subr.mxu0 0.0
        %4316 = vmatpush1.msra.mxu0 0.0
        %4317 = vmatprep.mubr.f32.mxu0 %v4249
        %4318 = vmatmul.mubr.f32.gmra.mrb[0].mxu0 %v4097
        %v4319 = vpop.f32.mrb[0].mxu0
        %v4320 = vadd.f32 %v4240, %v4319
        %v4321 = vpop.f32.mrb[0].mxu0
        %4322 = vmatprep.mubr.f32.mxu0 %v4251
        %4323 = vmatmul.mubr.f32.gmra.mrb[0].mxu0 %v4099
        %v4324 = vpop.f32.mrb[0].mxu0
        %v4325 = vadd.f32 %v4245, %v4324
        %v4326 = vpop.f32.mrb[0].mxu0
        %4327 = vdwg.mxu0
        %v4328 = vld [vmem:[#allocation4] sm:$0xfc]
        %v4329 = vld [vmem:[#allocation4 + $0x8] sm:$0xfc]
        %v4330 = vld [vmem:[#allocation4 + $0x20] sm:$0x3]
        %v4331 = vld [vmem:[#allocation4 + $0x28] sm:$0x3]
        %s4332 = scalar_lea.vmem %s17, 352
        %v4333 = vld [vmem:[%s4332] sm:$0xff]
        %v4334 = vld [vmem:[%s4332 + $0x8] sm:$0xff]
        %v4335 = vld [vmem:[%s4332 + $0x10] sm:$0xff]
        %v4336 = vld [vmem:[%s4332 + $0x18] sm:$0xff]
        %v4337 = vld [vmem:[%s4332 + $0x20] sm:$0xff]
        %v4338 = vld [vmem:[%s4332 + $0x28] sm:$0xff]
        %v4339 = vld [vmem:[%s4332 + $0x30] sm:$0xff]
        %v4340 = vld [vmem:[%s4332 + $0x38] sm:$0xff]
        %v4341 = vld [vmem:[%s4332 + $0x40] sm:$0xff]
        %v4342 = vld [vmem:[%s4332 + $0x48] sm:$0xff]
        %v4343 = vld [vmem:[%s4332 + $0x50] sm:$0xff]
        %v4344 = vld [vmem:[%s4332 + $0x58] sm:$0xff]
        %v4345 = vld [vmem:[%s4332 + $0x60] sm:$0xff]
        %v4346 = vld [vmem:[%s4332 + $0x68] sm:$0xff]
        %v4347 = vld [vmem:[%s4332 + $0x70] sm:$0xff]
        %v4348 = vld [vmem:[%s4332 + $0x78] sm:$0xff]
        %v4349 = vld [vmem:[%s4332 + $0x80] sm:$0xff]
        %v4350 = vld [vmem:[%s4332 + $0x88] sm:$0xff]
        %v4351 = vld [vmem:[%s4332 + $0x90] sm:$0xff]
        %v4352 = vld [vmem:[%s4332 + $0x98] sm:$0xff]
        %v4353 = vld [vmem:[%s4332 + $0xa0] sm:$0xff]
        %v4354 = vld [vmem:[%s4332 + $0xa8] sm:$0xff]
        %v4359 = vrot.slane %v4328, 2
        %v4360 = vrot.slane %v4099, 2
        %v4361 = vsel %vm2096, %v4359, %v4360
        %v4362 = vrot.slane %v4329, 2
        %v4363 = vrot.slane %v4100, 2
        %v4364 = vsel %vm2096, %v4362, %v4363
        %v4365 = vrot.slane %v4330, 2
        %v4366 = vsel %vm2096, %v4360, %v4365
        %v4367 = vrot.slane %v4331, 2
        %v4368 = vsel %vm2096, %v4363, %v4367
        %v4371 = vsel %vm4168, %v4364, 0
        %v4373 = vsel %vm4168, %v4368, 0
        %4375 = vmatprep.subr.mxu0 0.0
        %4376 = vmatpush1.msra.mxu0 %v4333
        %4377 = vmatprep.subr.mxu0 0.0
        %4378 = vmatpush1.msra.mxu0 %v4334
        %4379 = vmatprep.subr.mxu0 0.0
        %4380 = vmatpush1.msra.mxu0 %v4335
        %4381 = vmatprep.subr.mxu0 0.0
        %4382 = vmatpush1.msra.mxu0 %v4336
        %4383 = vmatprep.subr.mxu0 0.0
        %4384 = vmatpush1.msra.mxu0 %v4337
        %4385 = vmatprep.subr.mxu0 0.0
        %4386 = vmatpush1.msra.mxu0 %v4338
        %4387 = vmatprep.subr.mxu0 0.0
        %4388 = vmatpush1.msra.mxu0 %v4339
        %4389 = vmatprep.subr.mxu0 0.0
        %4390 = vmatpush1.msra.mxu0 %v4340
        %4391 = vmatprep.subr.mxu0 0.0
        %4392 = vmatpush1.msra.mxu0 %v4341
        %4393 = vmatprep.subr.mxu0 0.0
        %4394 = vmatpush1.msra.mxu0 %v4342
        %4395 = vmatprep.subr.mxu0 0.0
        %4396 = vmatpush1.msra.mxu0 %v4343
        %4397 = vmatprep.subr.mxu0 0.0
        %4398 = vmatpush1.msra.mxu0 %v4344
        %4399 = vmatprep.subr.mxu0 0.0
        %4400 = vmatpush1.msra.mxu0 %v4345
        %4401 = vmatprep.subr.mxu0 0.0
        %4402 = vmatpush1.msra.mxu0 %v4346
        %4403 = vmatprep.subr.mxu0 0.0
        %4404 = vmatpush1.msra.mxu0 %v4347
        %4405 = vmatprep.subr.mxu0 0.0
        %4406 = vmatpush1.msra.mxu0 %v4348
        %4407 = vmatprep.subr.mxu0 0.0
        %4408 = vmatpush1.msra.mxu0 %v4349
        %4409 = vmatprep.subr.mxu0 0.0
        %4410 = vmatpush1.msra.mxu0 %v4350
        %4411 = vmatprep.subr.mxu0 0.0
        %4412 = vmatpush1.msra.mxu0 %v4351
        %4413 = vmatprep.subr.mxu0 0.0
        %4414 = vmatpush1.msra.mxu0 %v4352
        %4415 = vmatprep.subr.mxu0 0.0
        %4416 = vmatpush1.msra.mxu0 %v4353
        %4417 = vmatprep.subr.mxu0 0.0
        %4418 = vmatpush1.msra.mxu0 %v4354
        %4419 = vmatprep.subr.mxu0 0.0
        %4420 = vmatpush1.msra.mxu0 0.0
        %4421 = vmatprep.subr.mxu0 0.0
        %4422 = vmatpush1.msra.mxu0 0.0
        %4423 = vmatprep.subr.mxu0 0.0
        %4424 = vmatpush1.msra.mxu0 0.0
        %4425 = vmatprep.subr.mxu0 0.0
        %4426 = vmatpush1.msra.mxu0 0.0
        %4427 = vmatprep.subr.mxu0 0.0
        %4428 = vmatpush1.msra.mxu0 0.0
        %4429 = vmatprep.subr.mxu0 0.0
        %4430 = vmatpush1.msra.mxu0 0.0
        %4431 = vmatprep.subr.mxu0 0.0
        %4432 = vmatpush1.msra.mxu0 0.0
        %4433 = vmatprep.subr.mxu0 0.0
        %4434 = vmatpush1.msra.mxu0 0.0
        %4435 = vmatprep.subr.mxu0 0.0
        %4436 = vmatpush1.msra.mxu0 0.0
        %4437 = vmatprep.subr.mxu0 0.0
        %4438 = vmatpush1.msra.mxu0 0.0
        %4439 = vmatprep.mubr.f32.mxu0 %v4371
        %4440 = vmatmul.mubr.f32.gmra.mrb[0].mxu0 %v4361
        %v4441 = vpop.f32.mrb[0].mxu0
        %v4442 = vadd.f32 0.0, %v4441
        %v4443 = vpop.f32.mrb[0].mxu0
        %4444 = vmatprep.mubr.f32.mxu0 %v4373
        %4445 = vmatmul.mubr.f32.gmra.mrb[0].mxu0 %v4366
        %v4446 = vpop.f32.mrb[0].mxu0
        %v4447 = vadd.f32 0.0, %v4446
        %v4448 = vpop.f32.mrb[0].mxu0
        %4449 = vdwg.mxu0
        %v4450 = vadd.f32 %v4320, %v4442
        %v4451 = vadd.f32 %v4325, %v4447
        %v4452 = vld [vmem:[#allocation4] sm:$0xf8]
        %v4453 = vld [vmem:[#allocation4 + $0x8] sm:$0xf8]
        %v4454 = vld [vmem:[#allocation4 + $0x20] sm:$0x7]
        %v4455 = vld [vmem:[#allocation4 + $0x28] sm:$0x7]
        %s4456 = scalar_lea.vmem %s17, 528
        %v4457 = vld [vmem:[%s4456] sm:$0xff]
        %v4458 = vld [vmem:[%s4456 + $0x8] sm:$0xff]
        %v4459 = vld [vmem:[%s4456 + $0x10] sm:$0xff]
        %v4460 = vld [vmem:[%s4456 + $0x18] sm:$0xff]
        %v4461 = vld [vmem:[%s4456 + $0x20] sm:$0xff]
        %v4462 = vld [vmem:[%s4456 + $0x28] sm:$0xff]
        %v4463 = vld [vmem:[%s4456 + $0x30] sm:$0xff]
        %v4464 = vld [vmem:[%s4456 + $0x38] sm:$0xff]
        %v4465 = vld [vmem:[%s4456 + $0x40] sm:$0xff]
        %v4466 = vld [vmem:[%s4456 + $0x48] sm:$0xff]
        %v4467 = vld [vmem:[%s4456 + $0x50] sm:$0xff]
        %v4468 = vld [vmem:[%s4456 + $0x58] sm:$0xff]
        %v4469 = vld [vmem:[%s4456 + $0x60] sm:$0xff]
        %v4470 = vld [vmem:[%s4456 + $0x68] sm:$0xff]
        %v4471 = vld [vmem:[%s4456 + $0x70] sm:$0xff]
        %v4472 = vld [vmem:[%s4456 + $0x78] sm:$0xff]
        %v4473 = vld [vmem:[%s4456 + $0x80] sm:$0xff]
        %v4474 = vld [vmem:[%s4456 + $0x88] sm:$0xff]
        %v4475 = vld [vmem:[%s4456 + $0x90] sm:$0xff]
        %v4476 = vld [vmem:[%s4456 + $0x98] sm:$0xff]
        %v4477 = vld [vmem:[%s4456 + $0xa0] sm:$0xff]
        %v4478 = vld [vmem:[%s4456 + $0xa8] sm:$0xff]
        %vm4483 = vcmask 1044480
        %v4484 = vrot.slane %v4452, 3
        %v4485 = vrot.slane %v4099, 3
        %v4486 = vsel %vm4483, %v4484, %v4485
        %v4487 = vrot.slane %v4453, 3
        %v4488 = vrot.slane %v4100, 3
        %v4489 = vsel %vm4483, %v4487, %v4488
        %v4490 = vrot.slane %v4454, 3
        %v4491 = vsel %vm4483, %v4485, %v4490
        %v4492 = vrot.slane %v4455, 3
        %v4493 = vsel %vm4483, %v4488, %v4492
        %v4496 = vsel %vm4168, %v4489, 0
        %v4498 = vsel %vm4168, %v4493, 0
        %4500 = vmatprep.subr.mxu0 0.0
        %4501 = vmatpush1.msra.mxu0 %v4457
        %4502 = vmatprep.subr.mxu0 0.0
        %4503 = vmatpush1.msra.mxu0 %v4458
        %4504 = vmatprep.subr.mxu0 0.0
        %4505 = vmatpush1.msra.mxu0 %v4459
        %4506 = vmatprep.subr.mxu0 0.0
        %4507 = vmatpush1.msra.mxu0 %v4460
        %4508 = vmatprep.subr.mxu0 0.0
        %4509 = vmatpush1.msra.mxu0 %v4461
        %4510 = vmatprep.subr.mxu0 0.0
        %4511 = vmatpush1.msra.mxu0 %v4462
        %4512 = vmatprep.subr.mxu0 0.0
        %4513 = vmatpush1.msra.mxu0 %v4463
        %4514 = vmatprep.subr.mxu0 0.0
        %4515 = vmatpush1.msra.mxu0 %v4464
        %4516 = vmatprep.subr.mxu0 0.0
        %4517 = vmatpush1.msra.mxu0 %v4465
        %4518 = vmatprep.subr.mxu0 0.0
        %4519 = vmatpush1.msra.mxu0 %v4466
        %4520 = vmatprep.subr.mxu0 0.0
        %4521 = vmatpush1.msra.mxu0 %v4467
        %4522 = vmatprep.subr.mxu0 0.0
        %4523 = vmatpush1.msra.mxu0 %v4468
        %4524 = vmatprep.subr.mxu0 0.0
        %4525 = vmatpush1.msra.mxu0 %v4469
        %4526 = vmatprep.subr.mxu0 0.0
        %4527 = vmatpush1.msra.mxu0 %v4470
        %4528 = vmatprep.subr.mxu0 0.0
        %4529 = vmatpush1.msra.mxu0 %v4471
        %4530 = vmatprep.subr.mxu0 0.0
        %4531 = vmatpush1.msra.mxu0 %v4472
        %4532 = vmatprep.subr.mxu0 0.0
        %4533 = vmatpush1.msra.mxu0 %v4473
        %4534 = vmatprep.subr.mxu0 0.0
        %4535 = vmatpush1.msra.mxu0 %v4474
        %4536 = vmatprep.subr.mxu0 0.0
        %4537 = vmatpush1.msra.mxu0 %v4475
        %4538 = vmatprep.subr.mxu0 0.0
        %4539 = vmatpush1.msra.mxu0 %v4476
        %4540 = vmatprep.subr.mxu0 0.0
        %4541 = vmatpush1.msra.mxu0 %v4477
        %4542 = vmatprep.subr.mxu0 0.0
        %4543 = vmatpush1.msra.mxu0 %v4478
        %4544 = vmatprep.subr.mxu0 0.0
        %4545 = vmatpush1.msra.mxu0 0.0
        %4546 = vmatprep.subr.mxu0 0.0
        %4547 = vmatpush1.msra.mxu0 0.0
        %4548 = vmatprep.subr.mxu0 0.0
        %4549 = vmatpush1.msra.mxu0 0.0
        %4550 = vmatprep.subr.mxu0 0.0
        %4551 = vmatpush1.msra.mxu0 0.0
        %4552 = vmatprep.subr.mxu0 0.0
        %4553 = vmatpush1.msra.mxu0 0.0
        %4554 = vmatprep.subr.mxu0 0.0
        %4555 = vmatpush1.msra.mxu0 0.0
        %4556 = vmatprep.subr.mxu0 0.0
        %4557 = vmatpush1.msra.mxu0 0.0
        %4558 = vmatprep.subr.mxu0 0.0
        %4559 = vmatpush1.msra.mxu0 0.0
        %4560 = vmatprep.subr.mxu0 0.0
        %4561 = vmatpush1.msra.mxu0 0.0
        %4562 = vmatprep.subr.mxu0 0.0
        %4563 = vmatpush1.msra.mxu0 0.0
        %4564 = vmatprep.mubr.f32.mxu0 %v4496
        %4565 = vmatmul.mubr.f32.gmra.mrb[0].mxu0 %v4486
        %v4566 = vpop.f32.mrb[0].mxu0
        %v4567 = vadd.f32 0.0, %v4566
        %v4568 = vpop.f32.mrb[0].mxu0
        %4569 = vmatprep.mubr.f32.mxu0 %v4498
        %4570 = vmatmul.mubr.f32.gmra.mrb[0].mxu0 %v4491
        %v4571 = vpop.f32.mrb[0].mxu0
        %v4572 = vadd.f32 0.0, %v4571
        %v4573 = vpop.f32.mrb[0].mxu0
        %4574 = vdwg.mxu0
        %v4575 = vadd.f32 %v4450, %v4567
        %v4576 = vadd.f32 %v4451, %v4572
        %v4577 = vld [vmem:[#allocation4] sm:$0xf0]
        %v4578 = vld [vmem:[#allocation4 + $0x8] sm:$0xf0]
        %v4579 = vld [vmem:[#allocation4 + $0x20] sm:$0xf]
        %v4580 = vld [vmem:[#allocation4 + $0x28] sm:$0xf]
        %s4581 = scalar_lea.vmem %s17, 704
        %v4582 = vld [vmem:[%s4581] sm:$0xff]
        %v4583 = vld [vmem:[%s4581 + $0x8] sm:$0xff]
        %v4584 = vld [vmem:[%s4581 + $0x10] sm:$0xff]
        %v4585 = vld [vmem:[%s4581 + $0x18] sm:$0xff]
        %v4586 = vld [vmem:[%s4581 + $0x20] sm:$0xff]
        %v4587 = vld [vmem:[%s4581 + $0x28] sm:$0xff]
        %v4588 = vld [vmem:[%s4581 + $0x30] sm:$0xff]
        %v4589 = vld [vmem:[%s4581 + $0x38] sm:$0xff]
        %v4590 = vld [vmem:[%s4581 + $0x40] sm:$0xff]
        %v4591 = vld [vmem:[%s4581 + $0x48] sm:$0xff]
        %v4592 = vld [vmem:[%s4581 + $0x50] sm:$0xff]
        %v4593 = vld [vmem:[%s4581 + $0x58] sm:$0xff]
        %v4594 = vld [vmem:[%s4581 + $0x60] sm:$0xff]
        %v4595 = vld [vmem:[%s4581 + $0x68] sm:$0xff]
        %v4596 = vld [vmem:[%s4581 + $0x70] sm:$0xff]
        %v4597 = vld [vmem:[%s4581 + $0x78] sm:$0xff]
        %v4598 = vld [vmem:[%s4581 + $0x80] sm:$0xff]
        %v4599 = vld [vmem:[%s4581 + $0x88] sm:$0xff]
        %v4600 = vld [vmem:[%s4581 + $0x90] sm:$0xff]
        %v4601 = vld [vmem:[%s4581 + $0x98] sm:$0xff]
        %v4602 = vld [vmem:[%s4581 + $0xa0] sm:$0xff]
        %v4603 = vld [vmem:[%s4581 + $0xa8] sm:$0xff]
        %vm4608 = vcmask 1043456
        %v4609 = vrot.slane %v4577, 4
        %v4610 = vrot.slane %v4099, 4
        %v4611 = vsel %vm4608, %v4609, %v4610
        %v4612 = vrot.slane %v4578, 4
        %v4613 = vrot.slane %v4100, 4
        %v4614 = vsel %vm4608, %v4612, %v4613
        %v4615 = vrot.slane %v4579, 4
        %v4616 = vsel %vm4608, %v4610, %v4615
        %v4617 = vrot.slane %v4580, 4
        %v4618 = vsel %vm4608, %v4613, %v4617
        %v4621 = vsel %vm4168, %v4614, 0
        %v4623 = vsel %vm4168, %v4618, 0
        %4625 = vmatprep.subr.mxu0 0.0
        %4626 = vmatpush1.msra.mxu0 %v4582
        %4627 = vmatprep.subr.mxu0 0.0
        %4628 = vmatpush1.msra.mxu0 %v4583
        %4629 = vmatprep.subr.mxu0 0.0
        %4630 = vmatpush1.msra.mxu0 %v4584
        %4631 = vmatprep.subr.mxu0 0.0
        %4632 = vmatpush1.msra.mxu0 %v4585
        %4633 = vmatprep.subr.mxu0 0.0
        %4634 = vmatpush1.msra.mxu0 %v4586
        %4635 = vmatprep.subr.mxu0 0.0
        %4636 = vmatpush1.msra.mxu0 %v4587
        %4637 = vmatprep.subr.mxu0 0.0
        %4638 = vmatpush1.msra.mxu0 %v4588
        %4639 = vmatprep.subr.mxu0 0.0
        %4640 = vmatpush1.msra.mxu0 %v4589
        %4641 = vmatprep.subr.mxu0 0.0
        %4642 = vmatpush1.msra.mxu0 %v4590
        %4643 = vmatprep.subr.mxu0 0.0
        %4644 = vmatpush1.msra.mxu0 %v4591
        %4645 = vmatprep.subr.mxu0 0.0
        %4646 = vmatpush1.msra.mxu0 %v4592
        %4647 = vmatprep.subr.mxu0 0.0
        %4648 = vmatpush1.msra.mxu0 %v4593
        %4649 = vmatprep.subr.mxu0 0.0
        %4650 = vmatpush1.msra.mxu0 %v4594
        %4651 = vmatprep.subr.mxu0 0.0
        %4652 = vmatpush1.msra.mxu0 %v4595
        %4653 = vmatprep.subr.mxu0 0.0
        %4654 = vmatpush1.msra.mxu0 %v4596
        %4655 = vmatprep.subr.mxu0 0.0
        %4656 = vmatpush1.msra.mxu0 %v4597
        %4657 = vmatprep.subr.mxu0 0.0
        %4658 = vmatpush1.msra.mxu0 %v4598
        %4659 = vmatprep.subr.mxu0 0.0
        %4660 = vmatpush1.msra.mxu0 %v4599
        %4661 = vmatprep.subr.mxu0 0.0
        %4662 = vmatpush1.msra.mxu0 %v4600
        %4663 = vmatprep.subr.mxu0 0.0
        %4664 = vmatpush1.msra.mxu0 %v4601
        %4665 = vmatprep.subr.mxu0 0.0
        %4666 = vmatpush1.msra.mxu0 %v4602
        %4667 = vmatprep.subr.mxu0 0.0
        %4668 = vmatpush1.msra.mxu0 %v4603
        %4669 = vmatprep.subr.mxu0 0.0
        %4670 = vmatpush1.msra.mxu0 0.0
        %4671 = vmatprep.subr.mxu0 0.0
        %4672 = vmatpush1.msra.mxu0 0.0
        %4673 = vmatprep.subr.mxu0 0.0
        %4674 = vmatpush1.msra.mxu0 0.0
        %4675 = vmatprep.subr.mxu0 0.0
        %4676 = vmatpush1.msra.mxu0 0.0
        %4677 = vmatprep.subr.mxu0 0.0
        %4678 = vmatpush1.msra.mxu0 0.0
        %4679 = vmatprep.subr.mxu0 0.0
        %4680 = vmatpush1.msra.mxu0 0.0
        %4681 = vmatprep.subr.mxu0 0.0
        %4682 = vmatpush1.msra.mxu0 0.0
        %4683 = vmatprep.subr.mxu0 0.0
        %4684 = vmatpush1.msra.mxu0 0.0
        %4685 = vmatprep.subr.mxu0 0.0
        %4686 = vmatpush1.msra.mxu0 0.0
        %4687 = vmatprep.subr.mxu0 0.0
        %4688 = vmatpush1.msra.mxu0 0.0
        %4689 = vmatprep.mubr.f32.mxu0 %v4621
        %4690 = vmatmul.mubr.f32.gmra.mrb[0].mxu0 %v4611
        %v4691 = vpop.f32.mrb[0].mxu0
        %v4692 = vadd.f32 0.0, %v4691
        %v4693 = vpop.f32.mrb[0].mxu0
        %4694 = vmatprep.mubr.f32.mxu0 %v4623
        %4695 = vmatmul.mubr.f32.gmra.mrb[0].mxu0 %v4616
        %v4696 = vpop.f32.mrb[0].mxu0
        %v4697 = vadd.f32 0.0, %v4696
        %v4698 = vpop.f32.mrb[0].mxu0
        %4699 = vdwg.mxu0
        %v4700 = vadd.f32 %v4575, %v4692
        %v4701 = vadd.f32 %v4576, %v4697
        %v4702 = vld [vmem:[#allocation4] sm:$0xe0]
        %v4703 = vld [vmem:[#allocation4 + $0x8] sm:$0xe0]
        %v4704 = vld [vmem:[#allocation4 + $0x20] sm:$0x1f]
        %v4705 = vld [vmem:[#allocation4 + $0x28] sm:$0x1f]
        %s4706 = scalar_lea.vmem %s17, 880
        %v4707 = vld [vmem:[%s4706] sm:$0xff]
        %v4708 = vld [vmem:[%s4706 + $0x8] sm:$0xff]
        %v4709 = vld [vmem:[%s4706 + $0x10] sm:$0xff]
        %v4710 = vld [vmem:[%s4706 + $0x18] sm:$0xff]
        %v4711 = vld [vmem:[%s4706 + $0x20] sm:$0xff]
        %v4712 = vld [vmem:[%s4706 + $0x28] sm:$0xff]
        %v4713 = vld [vmem:[%s4706 + $0x30] sm:$0xff]
        %v4714 = vld [vmem:[%s4706 + $0x38] sm:$0xff]
        %v4715 = vld [vmem:[%s4706 + $0x40] sm:$0xff]
        %v4716 = vld [vmem:[%s4706 + $0x48] sm:$0xff]
        %v4717 = vld [vmem:[%s4706 + $0x50] sm:$0xff]
        %v4718 = vld [vmem:[%s4706 + $0x58] sm:$0xff]
        %v4719 = vld [vmem:[%s4706 + $0x60] sm:$0xff]
        %v4720 = vld [vmem:[%s4706 + $0x68] sm:$0xff]
        %v4721 = vld [vmem:[%s4706 + $0x70] sm:$0xff]
        %v4722 = vld [vmem:[%s4706 + $0x78] sm:$0xff]
        %v4723 = vld [vmem:[%s4706 + $0x80] sm:$0xff]
        %v4724 = vld [vmem:[%s4706 + $0x88] sm:$0xff]
        %v4725 = vld [vmem:[%s4706 + $0x90] sm:$0xff]
        %v4726 = vld [vmem:[%s4706 + $0x98] sm:$0xff]
        %v4727 = vld [vmem:[%s4706 + $0xa0] sm:$0xff]
        %v4728 = vld [vmem:[%s4706 + $0xa8] sm:$0xff]
        %v4733 = vrot.slane %v4702, 5
        %v4734 = vrot.slane %v4099, 5
        %v4735 = vsel %vm4072, %v4733, %v4734
        %v4736 = vrot.slane %v4703, 5
        %v4737 = vrot.slane %v4100, 5
        %v4738 = vsel %vm4072, %v4736, %v4737
        %v4739 = vrot.slane %v4704, 5
        %v4740 = vsel %vm4072, %v4734, %v4739
        %v4741 = vrot.slane %v4705, 5
        %v4742 = vsel %vm4072, %v4737, %v4741
        %v4745 = vsel %vm4168, %v4738, 0
        %v4747 = vsel %vm4168, %v4742, 0
        %4749 = vmatprep.subr.mxu0 0.0
        %4750 = vmatpush1.msra.mxu0 %v4707
        %4751 = vmatprep.subr.mxu0 0.0
        %4752 = vmatpush1.msra.mxu0 %v4708
        %4753 = vmatprep.subr.mxu0 0.0
        %4754 = vmatpush1.msra.mxu0 %v4709
        %4755 = vmatprep.subr.mxu0 0.0
        %4756 = vmatpush1.msra.mxu0 %v4710
        %4757 = vmatprep.subr.mxu0 0.0
        %4758 = vmatpush1.msra.mxu0 %v4711
        %4759 = vmatprep.subr.mxu0 0.0
        %4760 = vmatpush1.msra.mxu0 %v4712
        %4761 = vmatprep.subr.mxu0 0.0
        %4762 = vmatpush1.msra.mxu0 %v4713
        %4763 = vmatprep.subr.mxu0 0.0
        %4764 = vmatpush1.msra.mxu0 %v4714
        %4765 = vmatprep.subr.mxu0 0.0
        %4766 = vmatpush1.msra.mxu0 %v4715
        %4767 = vmatprep.subr.mxu0 0.0
        %4768 = vmatpush1.msra.mxu0 %v4716
        %4769 = vmatprep.subr.mxu0 0.0
        %4770 = vmatpush1.msra.mxu0 %v4717
        %4771 = vmatprep.subr.mxu0 0.0
        %4772 = vmatpush1.msra.mxu0 %v4718
        %4773 = vmatprep.subr.mxu0 0.0
        %4774 = vmatpush1.msra.mxu0 %v4719
        %4775 = vmatprep.subr.mxu0 0.0
        %4776 = vmatpush1.msra.mxu0 %v4720
        %4777 = vmatprep.subr.mxu0 0.0
        %4778 = vmatpush1.msra.mxu0 %v4721
        %4779 = vmatprep.subr.mxu0 0.0
        %4780 = vmatpush1.msra.mxu0 %v4722
        %4781 = vmatprep.subr.mxu0 0.0
        %4782 = vmatpush1.msra.mxu0 %v4723
        %4783 = vmatprep.subr.mxu0 0.0
        %4784 = vmatpush1.msra.mxu0 %v4724
        %4785 = vmatprep.subr.mxu0 0.0
        %4786 = vmatpush1.msra.mxu0 %v4725
        %4787 = vmatprep.subr.mxu0 0.0
        %4788 = vmatpush1.msra.mxu0 %v4726
        %4789 = vmatprep.subr.mxu0 0.0
        %4790 = vmatpush1.msra.mxu0 %v4727
        %4791 = vmatprep.subr.mxu0 0.0
        %4792 = vmatpush1.msra.mxu0 %v4728
        %4793 = vmatprep.subr.mxu0 0.0
        %4794 = vmatpush1.msra.mxu0 0.0
        %4795 = vmatprep.subr.mxu0 0.0
        %4796 = vmatpush1.msra.mxu0 0.0
        %4797 = vmatprep.subr.mxu0 0.0
        %4798 = vmatpush1.msra.mxu0 0.0
        %4799 = vmatprep.subr.mxu0 0.0
        %4800 = vmatpush1.msra.mxu0 0.0
        %4801 = vmatprep.subr.mxu0 0.0
        %4802 = vmatpush1.msra.mxu0 0.0
        %4803 = vmatprep.subr.mxu0 0.0
        %4804 = vmatpush1.msra.mxu0 0.0
        %4805 = vmatprep.subr.mxu0 0.0
        %4806 = vmatpush1.msra.mxu0 0.0
        %4807 = vmatprep.subr.mxu0 0.0
        %4808 = vmatpush1.msra.mxu0 0.0
        %4809 = vmatprep.subr.mxu0 0.0
        %4810 = vmatpush1.msra.mxu0 0.0
        %4811 = vmatprep.subr.mxu0 0.0
        %4812 = vmatpush1.msra.mxu0 0.0
        %4813 = vmatprep.mubr.f32.mxu0 %v4745
        %4814 = vmatmul.mubr.f32.gmra.mrb[0].mxu0 %v4735
        %v4815 = vpop.f32.mrb[0].mxu0
        %v4816 = vadd.f32 0.0, %v4815
        %v4817 = vpop.f32.mrb[0].mxu0
        %4818 = vmatprep.mubr.f32.mxu0 %v4747
        %4819 = vmatmul.mubr.f32.gmra.mrb[0].mxu0 %v4740
        %v4820 = vpop.f32.mrb[0].mxu0
        %v4821 = vadd.f32 0.0, %v4820
        %v4822 = vpop.f32.mrb[0].mxu0
        %4823 = vdwg.mxu0
        %v4824 = vadd.f32 %v4700, %v4816
        %v4825 = vadd.f32 %v4701, %v4821
        %v4826 = vld [vmem:[#allocation4] sm:$0xc0]
        %v4827 = vld [vmem:[#allocation4 + $0x8] sm:$0xc0]
        %v4828 = vld [vmem:[#allocation4 + $0x20] sm:$0x3f]
        %v4829 = vld [vmem:[#allocation4 + $0x28] sm:$0x3f]
        %s4830 = scalar_lea.vmem %s17, 1056
        %v4831 = vld [vmem:[%s4830] sm:$0xff]
        %v4832 = vld [vmem:[%s4830 + $0x8] sm:$0xff]
        %v4833 = vld [vmem:[%s4830 + $0x10] sm:$0xff]
        %v4834 = vld [vmem:[%s4830 + $0x18] sm:$0xff]
        %v4835 = vld [vmem:[%s4830 + $0x20] sm:$0xff]
        %v4836 = vld [vmem:[%s4830 + $0x28] sm:$0xff]
        %v4837 = vld [vmem:[%s4830 + $0x30] sm:$0xff]
        %v4838 = vld [vmem:[%s4830 + $0x38] sm:$0xff]
        %v4839 = vld [vmem:[%s4830 + $0x40] sm:$0xff]
        %v4840 = vld [vmem:[%s4830 + $0x48] sm:$0xff]
        %v4841 = vld [vmem:[%s4830 + $0x50] sm:$0xff]
        %v4842 = vld [vmem:[%s4830 + $0x58] sm:$0xff]
        %v4843 = vld [vmem:[%s4830 + $0x60] sm:$0xff]
        %v4844 = vld [vmem:[%s4830 + $0x68] sm:$0xff]
        %v4845 = vld [vmem:[%s4830 + $0x70] sm:$0xff]
        %v4846 = vld [vmem:[%s4830 + $0x78] sm:$0xff]
        %v4847 = vld [vmem:[%s4830 + $0x80] sm:$0xff]
        %v4848 = vld [vmem:[%s4830 + $0x88] sm:$0xff]
        %v4849 = vld [vmem:[%s4830 + $0x90] sm:$0xff]
        %v4850 = vld [vmem:[%s4830 + $0x98] sm:$0xff]
        %v4851 = vld [vmem:[%s4830 + $0xa0] sm:$0xff]
        %v4852 = vld [vmem:[%s4830 + $0xa8] sm:$0xff]
        %vm4857 = vcmask 1041408
        %v4858 = vrot.slane %v4826, 6
        %v4859 = vrot.slane %v4099, 6
        %v4860 = vsel %vm4857, %v4858, %v4859
        %v4861 = vrot.slane %v4827, 6
        %v4862 = vrot.slane %v4100, 6
        %v4863 = vsel %vm4857, %v4861, %v4862
        %v4864 = vrot.slane %v4828, 6
        %v4865 = vsel %vm4857, %v4859, %v4864
        %v4866 = vrot.slane %v4829, 6
        %v4867 = vsel %vm4857, %v4862, %v4866
        %v4870 = vsel %vm4168, %v4863, 0
        %v4872 = vsel %vm4168, %v4867, 0
        %4874 = vmatprep.subr.mxu0 0.0
        %4875 = vmatpush1.msra.mxu0 %v4831
        %4876 = vmatprep.subr.mxu0 0.0
        %4877 = vmatpush1.msra.mxu0 %v4832
        %4878 = vmatprep.subr.mxu0 0.0
        %4879 = vmatpush1.msra.mxu0 %v4833
        %4880 = vmatprep.subr.mxu0 0.0
        %4881 = vmatpush1.msra.mxu0 %v4834
        %4882 = vmatprep.subr.mxu0 0.0
        %4883 = vmatpush1.msra.mxu0 %v4835
        %4884 = vmatprep.subr.mxu0 0.0
        %4885 = vmatpush1.msra.mxu0 %v4836
        %4886 = vmatprep.subr.mxu0 0.0
        %4887 = vmatpush1.msra.mxu0 %v4837
        %4888 = vmatprep.subr.mxu0 0.0
        %4889 = vmatpush1.msra.mxu0 %v4838
        %4890 = vmatprep.subr.mxu0 0.0
        %4891 = vmatpush1.msra.mxu0 %v4839
        %4892 = vmatprep.subr.mxu0 0.0
        %4893 = vmatpush1.msra.mxu0 %v4840
        %4894 = vmatprep.subr.mxu0 0.0
        %4895 = vmatpush1.msra.mxu0 %v4841
        %4896 = vmatprep.subr.mxu0 0.0
        %4897 = vmatpush1.msra.mxu0 %v4842
        %4898 = vmatprep.subr.mxu0 0.0
        %4899 = vmatpush1.msra.mxu0 %v4843
        %4900 = vmatprep.subr.mxu0 0.0
        %4901 = vmatpush1.msra.mxu0 %v4844
        %4902 = vmatprep.subr.mxu0 0.0
        %4903 = vmatpush1.msra.mxu0 %v4845
        %4904 = vmatprep.subr.mxu0 0.0
        %4905 = vmatpush1.msra.mxu0 %v4846
        %4906 = vmatprep.subr.mxu0 0.0
        %4907 = vmatpush1.msra.mxu0 %v4847
        %4908 = vmatprep.subr.mxu0 0.0
        %4909 = vmatpush1.msra.mxu0 %v4848
        %4910 = vmatprep.subr.mxu0 0.0
        %4911 = vmatpush1.msra.mxu0 %v4849
        %4912 = vmatprep.subr.mxu0 0.0
        %4913 = vmatpush1.msra.mxu0 %v4850
        %4914 = vmatprep.subr.mxu0 0.0
        %4915 = vmatpush1.msra.mxu0 %v4851
        %4916 = vmatprep.subr.mxu0 0.0
        %4917 = vmatpush1.msra.mxu0 %v4852
        %4918 = vmatprep.subr.mxu0 0.0
        %4919 = vmatpush1.msra.mxu0 0.0
        %4920 = vmatprep.subr.mxu0 0.0
        %4921 = vmatpush1.msra.mxu0 0.0
        %4922 = vmatprep.subr.mxu0 0.0
        %4923 = vmatpush1.msra.mxu0 0.0
        %4924 = vmatprep.subr.mxu0 0.0
        %4925 = vmatpush1.msra.mxu0 0.0
        %4926 = vmatprep.subr.mxu0 0.0
        %4927 = vmatpush1.msra.mxu0 0.0
        %4928 = vmatprep.subr.mxu0 0.0
        %4929 = vmatpush1.msra.mxu0 0.0
        %4930 = vmatprep.subr.mxu0 0.0
        %4931 = vmatpush1.msra.mxu0 0.0
        %4932 = vmatprep.subr.mxu0 0.0
        %4933 = vmatpush1.msra.mxu0 0.0
        %4934 = vmatprep.subr.mxu0 0.0
        %4935 = vmatpush1.msra.mxu0 0.0
        %4936 = vmatprep.subr.mxu0 0.0
        %4937 = vmatpush1.msra.mxu0 0.0
        %4938 = vmatprep.mubr.f32.mxu0 %v4870
        %4939 = vmatmul.mubr.f32.gmra.mrb[0].mxu0 %v4860
        %v4940 = vpop.f32.mrb[0].mxu0
        %v4941 = vadd.f32 0.0, %v4940
        %v4942 = vpop.f32.mrb[0].mxu0
        %4943 = vmatprep.mubr.f32.mxu0 %v4872
        %4944 = vmatmul.mubr.f32.gmra.mrb[0].mxu0 %v4865
        %v4945 = vpop.f32.mrb[0].mxu0
        %v4946 = vadd.f32 0.0, %v4945
        %v4947 = vpop.f32.mrb[0].mxu0
        %4948 = vdwg.mxu0
        %v4949 = vadd.f32 %v4824, %v4941
        %v4950 = vadd.f32 %v4825, %v4946
        %v4951 = vstv %s862
        %v4952 = vadd.f32 %v4949, %v4951
        %v4953 = vadd.f32 %v4950, %v4951
        %4954 = vst.msk [vmem:[%s841] sm:$0xff] %vm1909, %v4952
        %4955 = vst.msk [vmem:[%s841 + $0x8] sm:$0xff] %vm1909, %v4953
        %p4956 = scmp.lt.s32.totalorder %s43, 1
        %s4957 = scalar_select %p4956, %s43, 1
        %s4958 = smul.addr %s4957, 2
        %s4959 = smul.addr %s4958, 8
        %s4960 = scalar_lea.vmem %s21, %s4959
        %s4961 = sand.u32 %s533, 1
        %s4962 = scalar_lea.sflag [#allocation7], %s4961
        %s4963 = sand.u32 %s533, 1
        %s4964 = smul.addr %s4963, 16
        %s4965 = scalar_lea.vmem [#allocation22], %s4964
        // Predicated region
        $region149: #{sobe_block_forward.1} parent=103 // pred_check
          %p4966 = pneg %p517
        $region150: #{sobe_block_forward.1} parent=103 // pred_check_branch
          %4968 = sbr.rel (%p4966) target = $region152
        $region151: #{sobe_block_forward.1} parent=103 // pred_region
          _
        $region152: #{sobe_block_forward.1} parent=103 // pred_fallthru
          _
        // Predicated region
        $region153: #{sobe_block_forward.1} parent=103 // pred_check
          %p4969 = pneg %p543
        $region154: #{sobe_block_forward.1} parent=103 // pred_check_branch
          %4971 = sbr.rel (%p4969) target = $region156
        $region155: #{sobe_block_forward.1} parent=103 // pred_region
          %s4973 = ssub.s32 256, 256
          %4974 = vsyncadd %s4962, %s4973
          %s4975 = smul.addr %s43, 2
          %s4976 = smul.addr %s4975, 128
          %s4977 = scalar_lea.hbm %s22, %s4976
          %s4978 = sshll.u32 %s4965, 4
          %s4979 = int_to_ptr.vmem [resolvable:$true] %s4978
          %4984 = dma.vmem_to_hbm [thread:$0]  %s4979, 256, %s4977, %s4962, 128, 128, 8
        $region156: #{sobe_block_forward.1} parent=103 // pred_fallthru
          _
      $region104: #{sobe_block_forward.1} parent=5 // pred_fallthru
        _
      %p4985 = scmp.le.s32.totalorder 2, %s38
      // Predicated region
      $region157: #{sobe_block_forward.1} parent=5 // pred_check
        %p4986 = pneg %p4985
      $region158: #{sobe_block_forward.1} parent=5 // pred_check_branch
        %4988 = sbr.rel (%p4986) target = $region160
      $region159: #{sobe_block_forward.1} parent=5 // pred_region
        %s4989 = ssub.s32 %s38, 2
        // Predicated region
        $region161: #{sobe_block_forward.1} parent=159 // pred_check
          %p4990 = pneg %p523
        $region162: #{sobe_block_forward.1} parent=159 // pred_check_branch
          %4992 = sbr.rel (%p4990) target = $region164
        $region163: #{sobe_block_forward.1} parent=159 // pred_region
          %p4993 = scmp.lt.s32.totalorder %s44, 1
          %s4994 = scalar_select %p4993, %s44, 1
          %s4995 = smul.addr %s4994, 2
          %s4996 = smul.addr %s4995, 8
          %s4997 = scalar_lea.vmem %s21, %s4996
        $region164: #{sobe_block_forward.1} parent=159 // pred_fallthru
          _
        // Predicated region
        $region165: #{sobe_block_forward.1} parent=159 // pred_check
          %p4998 = pneg %p549
        $region166: #{sobe_block_forward.1} parent=159 // pred_check_branch
          %5000 = sbr.rel (%p4998) target = $region168
        $region167: #{sobe_block_forward.1} parent=159 // pred_region
          %s5001 = sand.u32 %s534, 1
          %s5002 = scalar_lea.sflag [#allocation7], %s5001
          %s5003 = sand.u32 %s534, 1
          %s5004 = smul.addr %s5003, 16
          %s5005 = scalar_lea.vmem [#allocation22], %s5004
          %5006 = dma.done %s5002, 256
        $region168: #{sobe_block_forward.1} parent=159 // pred_fallthru
          _
      $region160: #{sobe_block_forward.1} parent=5 // pred_fallthru
        _
    $region6: #{sobe_block_forward.1} parent=1 // loop_footer
      %s42 = sadd.s32 1, %s38
    $region7: #{sobe_block_forward.1} parent=1 // loop_footer_branch
      %37 = sbr.rel target = $region3
    $region8: #{sobe_block_forward.1} parent=1 // loop_exit
      _
    %5007 = vsyncpa [#allocation6], 1
    %s5008 = scalar_lea.sflag [#allocation6], 1
    %5009 = vsyncpa %s5008, 1
    %5010 = vsyncpa [#allocation11], 1
    %5011 = vsyncpa [#allocation14], 1
    %5012 = vsyncpa [#allocation17], 1
    %5013 = vsyncpa [#allocation20], 1
    %5014 = vsyncpa [#allocation7], 1
    %s5015 = scalar_lea.sflag [#allocation7], 1
    %5016 = vsyncpa %s5015, 1
    %5017 = vsyncpa [#allocation8], 1
    %s5018 = scalar_lea.sflag [#allocation8], 1
    %5019 = vsyncpa %s5018, 1

</llo_original>
